<compile_context>
chip_gen: v6e
topology: v6e:2x2x1
jax: 0.10.0
libtpu: 0.0.40
codegen_flags: <defaults>
</compile_context>

<pallas_src>
import math

import jax
import jax.numpy as jnp
from jax import lax
from jax.experimental import pallas as pl
from jax.experimental.pallas import tpu as pltpu

# ---- hyper-parameters (small shapes consistent with SASRec args) ----
N_ITEM   = 64           # n_item (item 0 = padding)
DIM      = 32           # args.dim
MAX_LEN  = 8            # args.max_len == sequence length L
NUM_HEAD = 2            # args.num_head
EXP      = 2            # args.exp_factor
DEPTH    = 2            # args.depth
HEAD_DIM = DIM // NUM_HEAD
FF_DIM   = DIM * EXP
LN_EPS   = 1e-5
NEG_INF  = -1e9

TB    = 8               # sequences per grid step.  Softmax (the binding cost) scales
                        # with TB, so keep it small; 8 also guarantees >=2 grid steps
                        # for B>=16 (v7x megacore) and keeps the (TB,128) store legal.
NROWS = TB * MAX_LEN    # flattened (sequence, position) rows per grid step = 64
NPAD  = 128             # lane-padded n_item width for W_out / logits store


def _layer_norm(x, g, b):
    mu = jnp.mean(x, axis=-1, keepdims=True)
    var = jnp.mean((x - mu) ** 2, axis=-1, keepdims=True)
    return (x - mu) * lax.rsqrt(var + LN_EPS) * g + b


def sasrec_kernel(seqr_ref, seqc_ref, dsc_ref, struct_ref, pos_ref, emb_ref,
                  wqkvo_ref, bqkvo_ref, ln_ref,
                  w1_ref, w2_ref, bffn_ref,
                  wout_ref, bout_ref,
                  out_ref):
    seq_row = seqr_ref[0]                                    # (1, NROWS) int32
    seq_col = seqc_ref[0]                                    # (NROWS, 1) int32
    ds_col = dsc_ref[0]                                      # (TB, 1)    int32

    # ---- item embedding as a one-hot MXU matmul (padding row 0 of emb_loc is zero) ----
    onehot = (lax.broadcasted_iota(jnp.int32, (NROWS, N_ITEM), 1)
              == seq_col).astype(jnp.float32)                # (NROWS, N_ITEM)
    x = jnp.dot(onehot, emb_ref[...], preferred_element_type=jnp.float32)  # (NROWS, DIM)
    h = x + pos_ref[...]                                     # positional add (dropout = id)

    # ---- attention predicate: host-precomputed structural mask & per-tile key padding ----
    allow = (struct_ref[...] != 0) & (seq_row != 0)          # (NROWS, NROWS) bool (vmask)

    for l in range(DEPTH):
        w = wqkvo_ref[l]                                     # (DIM, 4*DIM) [Wq|Wk|Wv|Wo]
        bias = bqkvo_ref[l]                                  # (1, 4*DIM)   [bq|bk|bv|bo]
        lnp = ln_ref[l]                                      # (1, 4*DIM)   [g1|b1|g2|b2]

        # fused Q/K/V(/O) projection: one lane-dense (NROWS,32)@(32,128) matmul
        # (softmax scale already folded into Wq/bq on the host)
        qkvo = jnp.dot(h, w, preferred_element_type=jnp.float32) + bias     # (NROWS, 4*DIM)

        attn = jnp.zeros((NROWS, DIM), jnp.float32)
        for hh in range(NUM_HEAD):
            lo = hh * HEAD_DIM
            qh = qkvo[:, lo:lo + HEAD_DIM]
            kh = qkvo[:, DIM + lo:DIM + lo + HEAD_DIM]
            vh = qkvo[:, 2 * DIM + lo:2 * DIM + lo + HEAD_DIM]
            s = lax.dot_general(qh, kh, (((1,), (1,)), ((), ())),
                                preferred_element_type=jnp.float32)          # (NROWS, NROWS)
            s = jnp.where(allow, s, NEG_INF)                 # predicate mask (no f32 add)
            # keep the max-subtraction: fully-masked (all-padding) rows stay finite
            s = s - jnp.max(s, axis=-1, keepdims=True)
            p = jnp.exp(s)
            p = p * pl.reciprocal(jnp.sum(p, axis=-1, keepdims=True), approx=True)
            ctx = jnp.dot(p, vh, preferred_element_type=jnp.float32)        # (NROWS, HEAD_DIM)
            # head output folded straight through its W_o row-slice (no concatenate)
            attn = attn + jnp.dot(ctx, w[lo:lo + HEAD_DIM, 3 * DIM:4 * DIM],
                                  preferred_element_type=jnp.float32)
        attn = attn + bias[:, 3 * DIM:4 * DIM]
        h = _layer_norm(h + attn, lnp[:, 0:DIM], lnp[:, DIM:2 * DIM])

        # position-wise feed-forward (ReLU)
        f = jnp.dot(h, w1_ref[l], preferred_element_type=jnp.float32) \
            + bffn_ref[l][:, :FF_DIM]
        f = jnp.maximum(f, 0.0)
        f = jnp.dot(f, w2_ref[l], preferred_element_type=jnp.float32) \
            + bffn_ref[l][:, FF_DIM:FF_DIM + DIM]
        h = _layer_norm(h + f, lnp[:, 2 * DIM:3 * DIM], lnp[:, 3 * DIM:4 * DIM])

    # ---- gather h[t, data_size[t]-1, :] for all TB sequences via one-hot MXU matmul ----
    cc = lax.broadcasted_iota(jnp.int32, (TB, NROWS), 1)     # flat row index
    tt = lax.broadcasted_iota(jnp.int32, (TB, NROWS), 0)     # sequence index in tile
    sel = (cc == tt * MAX_LEN + ds_col - 1).astype(jnp.float32)             # (TB, NROWS)
    h_last = jnp.dot(sel, h, preferred_element_type=jnp.float32)            # (TB, DIM)

    logits = jnp.dot(h_last, wout_ref[...], preferred_element_type=jnp.float32) + bout_ref[...]
    out_ref[...] = logits                                    # (TB, NPAD) full-lane store


@jax.jit
def sasrec_forward(seq, data_size, params):
    B, L = seq.shape
    assert L == MAX_LEN
    n_tiles = pl.cdiv(B, TB)
    b_pad = n_tiles * TB

    seq = seq.astype(jnp.int32)
    data_size = data_size.astype(jnp.int32)
    seq_p = jnp.zeros((b_pad, L), jnp.int32).at[:B].set(seq)           # padded seqs = all 0
    ds_p = jnp.ones((b_pad,), jnp.int32).at[:B].set(data_size)         # padded lengths = 1

    seq_row = seq_p.reshape(n_tiles, 1, NROWS)       # flat row t*L+p within each tile
    seq_col = seq_p.reshape(n_tiles, NROWS, 1)
    ds_col = ds_p.reshape(n_tiles, TB, 1)
    pos_r = jnp.tile(params["emb_pos"][:L], (TB, 1))                   # (NROWS, DIM)

    # structural attention mask (same-sequence & causal), built once on the host
    rr = jnp.arange(NROWS, dtype=jnp.int32)
    struct_allow = (((rr[:, None] // MAX_LEN) == (rr[None, :] // MAX_LEN))
                    & (rr[:, None] >= rr[None, :])).astype(jnp.int8)   # (NROWS, NROWS)

    # fold the 1/sqrt(HEAD_DIM) softmax scale into Wq / bq (host-side, once)
    scale_vec = jnp.concatenate(
        [jnp.full((DIM,), 1.0 / math.sqrt(HEAD_DIM), jnp.float32),
         jnp.ones((3 * DIM,), jnp.float32)])
    w_qkvo_s = params["w_qkvo"] * scale_vec
    b_qkvo_s = params["b_qkvo"] * scale_vec

    # lane-pad the output projection to 128 columns (sliced back below)
    wout_p = jnp.zeros((DIM, NPAD), jnp.float32).at[:, :N_ITEM].set(params["w_out"])
    bout_p = jnp.zeros((1, NPAD), jnp.float32).at[:, :N_ITEM].set(params["b_out"])

    grid_spec = pltpu.PrefetchScalarGridSpec(
        num_scalar_prefetch=0,
        grid=(n_tiles,),
        in_specs=[
            pl.BlockSpec((1, 1, NROWS), lambda i: (i, 0, 0)),              # seq (row form)
            pl.BlockSpec((1, NROWS, 1), lambda i: (i, 0, 0)),              # seq (col form)
            pl.BlockSpec((1, TB, 1), lambda i: (i, 0, 0)),                 # data_size
            pl.BlockSpec((NROWS, NROWS), lambda i: (0, 0)),                # structural mask
            pl.BlockSpec((NROWS, DIM), lambda i: (0, 0)),                  # tiled pos emb
            pl.BlockSpec((N_ITEM, DIM), lambda i: (0, 0)),                 # item emb table
            pl.BlockSpec((DEPTH, DIM, 4 * DIM), lambda i: (0, 0, 0)),      # [Wq|Wk|Wv|Wo]
            pl.BlockSpec((DEPTH, 1, 4 * DIM), lambda i: (0, 0, 0)),        # [bq|bk|bv|bo]
            pl.BlockSpec((DEPTH, 1, 4 * DIM), lambda i: (0, 0, 0)),        # [g1|b1|g2|b2]
            pl.BlockSpec((DEPTH, DIM, FF_DIM), lambda i: (0, 0, 0)),       # W1
            pl.BlockSpec((DEPTH, FF_DIM, DIM), lambda i: (0, 0, 0)),       # W2
            pl.BlockSpec((DEPTH, 1, NPAD), lambda i: (0, 0, 0)),           # [b1|b2|0-pad]
            pl.BlockSpec((DIM, NPAD), lambda i: (0, 0)),                   # W_out (padded)
            pl.BlockSpec((1, NPAD), lambda i: (0, 0)),                     # b_out (padded)
        ],
        out_specs=pl.BlockSpec((TB, NPAD), lambda i: (i, 0)),
    )

    out = pl.pallas_call(
        sasrec_kernel,
        out_shape=jax.ShapeDtypeStruct((b_pad, NPAD), jnp.float32),
        grid_spec=grid_spec,
        compiler_params=pltpu.CompilerParams(dimension_semantics=("parallel",)),
    )(seq_row, seq_col, ds_col, struct_allow, pos_r, params["emb_loc"],
      w_qkvo_s, b_qkvo_s, params["ln"],
      params["w1"], params["w2"], params["b_ffn"],
      wout_p, bout_p)
    return out[:B, :N_ITEM]


def sasrec_reference(seq, data_size, params):
    """Pure-JAX reference of the same (assumed post-LN) forward, eval path."""
    B, L = seq.shape
    h = params["emb_loc"][seq] + params["emb_pos"][:L][None]
    pad = seq != 0
    causal = jnp.tril(jnp.ones((L, L), bool))
    mask = jnp.where(causal[None] & pad[:, None, :], 0.0, NEG_INF).astype(jnp.float32)
    scale = 1.0 / math.sqrt(HEAD_DIM)
    for l in range(DEPTH):
        w = params["w_qkvo"][l]
        bias = params["b_qkvo"][l][0]
        lnp = params["ln"][l][0]
        q = h @ w[:, 0:DIM] + bias[0:DIM]
        k = h @ w[:, DIM:2 * DIM] + bias[DIM:2 * DIM]
        v = h @ w[:, 2 * DIM:3 * DIM] + bias[2 * DIM:3 * DIM]
        heads = []
        for hh in range(NUM_HEAD):
            sl = slice(hh * HEAD_DIM, (hh + 1) * HEAD_DIM)
            s = jnp.einsum("bqd,bkd->bqk", q[..., sl], k[..., sl]) * scale + mask
            p = jax.nn.softmax(s, axis=-1)
            heads.append(jnp.einsum("bqk,bkd->bqd", p, v[..., sl]))
        attn = jnp.concatenate(heads, -1) @ w[:, 3 * DIM:4 * DIM] + bias[3 * DIM:4 * DIM]
        h = _layer_norm(h + attn, lnp[0:DIM], lnp[DIM:2 * DIM])
        f = jax.nn.relu(h @ params["w1"][l] + params["b_ffn"][l, 0, :FF_DIM])
        f = f @ params["w2"][l] + params["b_ffn"][l, 0, FF_DIM:FF_DIM + DIM]
        h = _layer_norm(h + f, lnp[2 * DIM:3 * DIM], lnp[3 * DIM:4 * DIM])
    h_last = h[jnp.arange(B), data_size - 1]
    return h_last @ params["w_out"] + params["b_out"][0]


def init_params(key):
    ks = jax.random.split(key, 6)

    def nrm(k, shape, scale=0.02):
        return (scale * jax.random.normal(k, shape)).astype(jnp.float32)

    emb_loc = nrm(ks[0], (N_ITEM, DIM)).at[0].set(0.0)        # nn.Embedding(padding_idx=0)
    emb_pos = nrm(ks[1], (MAX_LEN, DIM))                      # PositionalEmbedding weight
    ln = jnp.concatenate([                                    # [gamma1|beta1|gamma2|beta2]
        jnp.ones((DEPTH, 1, DIM), jnp.float32),
        jnp.zeros((DEPTH, 1, DIM), jnp.float32),
        jnp.ones((DEPTH, 1, DIM), jnp.float32),
        jnp.zeros((DEPTH, 1, DIM), jnp.float32)], axis=-1)
    return dict(
        emb_loc=emb_loc,
        emb_pos=emb_pos,
        w_qkvo=nrm(ks[2], (DEPTH, DIM, 4 * DIM)),             # [Wq|Wk|Wv|Wo] per layer
        b_qkvo=jnp.zeros((DEPTH, 1, 4 * DIM), jnp.float32),   # [bq|bk|bv|bo]
        ln=ln,
        w1=nrm(ks[3], (DEPTH, DIM, FF_DIM)),
        w2=nrm(ks[4], (DEPTH, FF_DIM, DIM)),
        b_ffn=jnp.zeros((DEPTH, 1, NPAD), jnp.float32),       # [b1(64)|b2(32)|pad(32)]
        w_out=nrm(ks[5], (DIM, N_ITEM)),                      # self.out = nn.Linear(dim, n_item)
        b_out=jnp.zeros((1, N_ITEM), jnp.float32),
    )


if __name__ == "__main__":
    key = jax.random.PRNGKey(0)
    pkey, skey = jax.random.split(key)
    params = init_params(pkey)

    B = 2
    data_size = jnp.array([MAX_LEN, 5], dtype=jnp.int32)      # valid lengths per sequence
    items = jax.random.randint(skey, (B, MAX_LEN), 1, N_ITEM)
    valid = jnp.arange(MAX_LEN)[None, :] < data_size[:, None]
    seq = jnp.where(valid, items, 0).astype(jnp.int32)        # 0 = padding item

    logits = sasrec_forward(seq, data_size, params)
    logits = jax.block_until_ready(logits)

    ref = sasrec_reference(seq, data_size, params)
    assert logits.shape == (B, N_ITEM)
    assert bool(jnp.all(jnp.isfinite(logits)))
    assert float(jnp.max(jnp.abs(logits - ref))) < 2e-2
    print("KERNEL_OK")
</pallas_src>

<mosaic_0001>
module attributes {stable_mosaic.version = 11 : i64} {
  func.func @sasrec_kernel(%arg0: i32, %arg1: memref<1x1x64xi32, #tpu.memory_space<vmem>>, %arg2: memref<1x64x1xi32, #tpu.memory_space<vmem>>, %arg3: memref<1x8x1xi32, #tpu.memory_space<vmem>>, %arg4: memref<64x64xi8, #tpu.memory_space<vmem>>, %arg5: memref<64x32xf32, #tpu.memory_space<vmem>>, %arg6: memref<64x32xf32, #tpu.memory_space<vmem>>, %arg7: memref<2x32x128xf32, #tpu.memory_space<vmem>>, %arg8: memref<2x1x128xf32, #tpu.memory_space<vmem>>, %arg9: memref<2x1x128xf32, #tpu.memory_space<vmem>>, %arg10: memref<2x32x64xf32, #tpu.memory_space<vmem>>, %arg11: memref<2x64x32xf32, #tpu.memory_space<vmem>>, %arg12: memref<2x1x128xf32, #tpu.memory_space<vmem>>, %arg13: memref<32x128xf32, #tpu.memory_space<vmem>>, %arg14: memref<1x128xf32, #tpu.memory_space<vmem>>, %arg15: memref<8x128xf32, #tpu.memory_space<vmem>>) attributes {dimension_semantics = [#tpu.dimension_semantics<parallel>], iteration_bounds = array<i64: 1>, scalar_prefetch = 0 : i64, scratch_operands = 0 : i64, tpu.core_type = #tpu.core_type<tc>, window_params = [{transform_indices = @transform_0, window_bounds = array<i64: 1, 1, 64>}, {transform_indices = @transform_1, window_bounds = array<i64: 1, 64, 1>}, {transform_indices = @transform_2, window_bounds = array<i64: 1, 8, 1>}, {pipeline_mode = #tpu.pipeline_mode<synchronous>, transform_indices = @transform_3, window_bounds = array<i64: 64, 64>}, {pipeline_mode = #tpu.pipeline_mode<synchronous>, transform_indices = @transform_4, window_bounds = array<i64: 64, 32>}, {pipeline_mode = #tpu.pipeline_mode<synchronous>, transform_indices = @transform_5, window_bounds = array<i64: 64, 32>}, {pipeline_mode = #tpu.pipeline_mode<synchronous>, transform_indices = @transform_6, window_bounds = array<i64: 2, 32, 128>}, {pipeline_mode = #tpu.pipeline_mode<synchronous>, transform_indices = @transform_7, window_bounds = array<i64: 2, 1, 128>}, {pipeline_mode = #tpu.pipeline_mode<synchronous>, transform_indices = @transform_8, window_bounds = array<i64: 2, 1, 128>}, {pipeline_mode = #tpu.pipeline_mode<synchronous>, transform_indices = @transform_9, window_bounds = array<i64: 2, 32, 64>}, {pipeline_mode = #tpu.pipeline_mode<synchronous>, transform_indices = @transform_10, window_bounds = array<i64: 2, 64, 32>}, {pipeline_mode = #tpu.pipeline_mode<synchronous>, transform_indices = @transform_11, window_bounds = array<i64: 2, 1, 128>}, {pipeline_mode = #tpu.pipeline_mode<synchronous>, transform_indices = @transform_12, window_bounds = array<i64: 32, 128>}, {pipeline_mode = #tpu.pipeline_mode<synchronous>, transform_indices = @transform_13, window_bounds = array<i64: 1, 128>}, {transform_indices = @transform_14, window_bounds = array<i64: 8, 128>}]} {
    %c0 = arith.constant 0 : index
    %c0_0 = arith.constant 0 : index
    %c0_1 = arith.constant 0 : index
    %0 = vector.load %arg1[%c0, %c0_0, %c0_1] : memref<1x1x64xi32, #tpu.memory_space<vmem>>, vector<1x1x64xi32>
    %1 = vector.shape_cast %0 : vector<1x1x64xi32> to vector<1x64xi32>
    %c0_2 = arith.constant 0 : index
    %c0_3 = arith.constant 0 : index
    %c0_4 = arith.constant 0 : index
    %2 = vector.load %arg2[%c0_2, %c0_3, %c0_4] : memref<1x64x1xi32, #tpu.memory_space<vmem>>, vector<1x64x1xi32>
    %3 = vector.shape_cast %2 : vector<1x64x1xi32> to vector<64x1xi32>
    %c0_5 = arith.constant 0 : index
    %c0_6 = arith.constant 0 : index
    %c0_7 = arith.constant 0 : index
    %4 = vector.load %arg3[%c0_5, %c0_6, %c0_7] : memref<1x8x1xi32, #tpu.memory_space<vmem>>, vector<1x8x1xi32>
    %5 = vector.shape_cast %4 : vector<1x8x1xi32> to vector<8x1xi32>
    %6 = tpu.iota {dimensions = array<i32: 1>} : vector<64x64xi32>
    %7 = vector.broadcast %3 : vector<64x1xi32> to vector<64x64xi32>
    %8 = arith.cmpi eq, %6, %7 : vector<64x64xi32>
    %9 = arith.extui %8 : vector<64x64xi1> to vector<64x64xi32>
    %10 = arith.sitofp %9 : vector<64x64xi32> to vector<64x64xf32>
    %c0_8 = arith.constant 0 : index
    %c0_9 = arith.constant 0 : index
    %11 = vector.load %arg6[%c0_8, %c0_9] : memref<64x32xf32, #tpu.memory_space<vmem>>, vector<64x32xf32>
    %cst = arith.constant dense<0.000000e+00> : vector<64x32xf32>
    %12 = tpu.matmul %10, %11, %cst {dimension_numbers = #tpu.dot_dimension_numbers<[1], [0], [0], [1], [0, 0, 1, 1], [], []>} : vector<64x64xf32>, vector<64x32xf32>, vector<64x32xf32> -> vector<64x32xf32>
    %c0_10 = arith.constant 0 : index
    %c0_11 = arith.constant 0 : index
    %13 = vector.load %arg5[%c0_10, %c0_11] : memref<64x32xf32, #tpu.memory_space<vmem>>, vector<64x32xf32>
    %14 = arith.addf %12, %13 : vector<64x32xf32>
    %c0_12 = arith.constant 0 : index
    %c0_13 = arith.constant 0 : index
    %15 = vector.load %arg4[%c0_12, %c0_13] : memref<64x64xi8, #tpu.memory_space<vmem>>, vector<64x64xi8>
    %c0_i8 = arith.constant 0 : i8
    %16 = vector.broadcast %c0_i8 : i8 to vector<64x64xi8>
    %17 = arith.cmpi ne, %15, %16 : vector<64x64xi8>
    %c0_i32 = arith.constant 0 : i32
    %18 = vector.broadcast %c0_i32 : i32 to vector<1x64xi32>
    %19 = arith.cmpi ne, %1, %18 : vector<1x64xi32>
    %20 = vector.broadcast %19 : vector<1x64xi1> to vector<64x64xi1>
    %21 = arith.andi %17, %20 : vector<64x64xi1>
    %c0_14 = arith.constant 0 : index
    %c0_15 = arith.constant 0 : index
    %c0_16 = arith.constant 0 : index
    %22 = vector.load %arg7[%c0_14, %c0_15, %c0_16] : memref<2x32x128xf32, #tpu.memory_space<vmem>>, vector<1x32x128xf32>
    %23 = vector.shape_cast %22 : vector<1x32x128xf32> to vector<32x128xf32>
    %c0_17 = arith.constant 0 : index
    %c0_18 = arith.constant 0 : index
    %c0_19 = arith.constant 0 : index
    %24 = vector.load %arg8[%c0_17, %c0_18, %c0_19] : memref<2x1x128xf32, #tpu.memory_space<vmem>>, vector<1x1x128xf32>
    %25 = vector.shape_cast %24 : vector<1x1x128xf32> to vector<1x128xf32>
    %c0_20 = arith.constant 0 : index
    %c0_21 = arith.constant 0 : index
    %c0_22 = arith.constant 0 : index
    %26 = vector.load %arg9[%c0_20, %c0_21, %c0_22] : memref<2x1x128xf32, #tpu.memory_space<vmem>>, vector<1x1x128xf32>
    %27 = vector.shape_cast %26 : vector<1x1x128xf32> to vector<1x128xf32>
    %cst_23 = arith.constant dense<0.000000e+00> : vector<64x128xf32>
    %28 = tpu.matmul %14, %23, %cst_23 {dimension_numbers = #tpu.dot_dimension_numbers<[1], [0], [0], [1], [0, 0, 1, 1], [], []>} : vector<64x32xf32>, vector<32x128xf32>, vector<64x128xf32> -> vector<64x128xf32>
    %29 = vector.broadcast %25 : vector<1x128xf32> to vector<64x128xf32>
    %30 = arith.addf %28, %29 : vector<64x128xf32>
    %cst_24 = arith.constant 0.000000e+00 : f32
    %31 = vector.broadcast %cst_24 : f32 to vector<64x32xf32>
    %32 = vector.extract_strided_slice %30 {offsets = [0, 0], sizes = [64, 16], strides = [1, 1]} : vector<64x128xf32> to vector<64x16xf32>
    %33 = vector.extract_strided_slice %30 {offsets = [0, 32], sizes = [64, 16], strides = [1, 1]} : vector<64x128xf32> to vector<64x16xf32>
    %34 = vector.extract_strided_slice %30 {offsets = [0, 64], sizes = [64, 16], strides = [1, 1]} : vector<64x128xf32> to vector<64x16xf32>
    %cst_25 = arith.constant dense<0.000000e+00> : vector<64x64xf32>
    %35 = tpu.matmul %32, %33, %cst_25 {dimension_numbers = #tpu.dot_dimension_numbers<[1], [1], [0], [0], [0, 0, 1, 0], [], []>} : vector<64x16xf32>, vector<64x16xf32>, vector<64x64xf32> -> vector<64x64xf32>
    %cst_26 = arith.constant -1.000000e+09 : f32
    %36 = vector.broadcast %cst_26 : f32 to vector<64x64xf32>
    %37 = arith.select %21, %35, %36 : vector<64x64xi1>, vector<64x64xf32>
    %cst_27 = arith.constant dense<0xFF800000> : vector<64xf32>
    %38 = vector.multi_reduction <maximumf>, %37, %cst_27 [1] : vector<64x64xf32> to vector<64xf32>
    %39 = vector.shape_cast %38 : vector<64xf32> to vector<64x1xf32>
    %40 = vector.broadcast %39 : vector<64x1xf32> to vector<64x64xf32>
    %41 = arith.subf %37, %40 : vector<64x64xf32>
    %42 = math.exp %41 : vector<64x64xf32>
    %cst_28 = arith.constant dense<0.000000e+00> : vector<64xf32>
    %43 = vector.multi_reduction <add>, %42, %cst_28 [1] : vector<64x64xf32> to vector<64xf32>
    %44 = vector.shape_cast %43 : vector<64xf32> to vector<64x1xf32>
    %45 = tpu.reciprocal %44 {approx = true} : vector<64x1xf32> -> vector<64x1xf32>
    %46 = vector.broadcast %45 : vector<64x1xf32> to vector<64x64xf32>
    %47 = arith.mulf %42, %46 : vector<64x64xf32>
    %cst_29 = arith.constant dense<0.000000e+00> : vector<64x16xf32>
    %48 = tpu.matmul %47, %34, %cst_29 {dimension_numbers = #tpu.dot_dimension_numbers<[1], [0], [0], [1], [0, 0, 1, 1], [], []>} : vector<64x64xf32>, vector<64x16xf32>, vector<64x16xf32> -> vector<64x16xf32>
    %49 = vector.extract_strided_slice %23 {offsets = [0, 96], sizes = [16, 32], strides = [1, 1]} : vector<32x128xf32> to vector<16x32xf32>
    %cst_30 = arith.constant dense<0.000000e+00> : vector<64x32xf32>
    %50 = tpu.matmul %48, %49, %cst_30 {dimension_numbers = #tpu.dot_dimension_numbers<[1], [0], [0], [1], [0, 0, 1, 1], [], []>} : vector<64x16xf32>, vector<16x32xf32>, vector<64x32xf32> -> vector<64x32xf32>
    %51 = arith.addf %31, %50 : vector<64x32xf32>
    %52 = vector.extract_strided_slice %30 {offsets = [0, 16], sizes = [64, 16], strides = [1, 1]} : vector<64x128xf32> to vector<64x16xf32>
    %53 = vector.extract_strided_slice %30 {offsets = [0, 48], sizes = [64, 16], strides = [1, 1]} : vector<64x128xf32> to vector<64x16xf32>
    %54 = vector.extract_strided_slice %30 {offsets = [0, 80], sizes = [64, 16], strides = [1, 1]} : vector<64x128xf32> to vector<64x16xf32>
    %cst_31 = arith.constant dense<0.000000e+00> : vector<64x64xf32>
    %55 = tpu.matmul %52, %53, %cst_31 {dimension_numbers = #tpu.dot_dimension_numbers<[1], [1], [0], [0], [0, 0, 1, 0], [], []>} : vector<64x16xf32>, vector<64x16xf32>, vector<64x64xf32> -> vector<64x64xf32>
    %cst_32 = arith.constant -1.000000e+09 : f32
    %56 = vector.broadcast %cst_32 : f32 to vector<64x64xf32>
    %57 = arith.select %21, %55, %56 : vector<64x64xi1>, vector<64x64xf32>
    %cst_33 = arith.constant dense<0xFF800000> : vector<64xf32>
    %58 = vector.multi_reduction <maximumf>, %57, %cst_33 [1] : vector<64x64xf32> to vector<64xf32>
    %59 = vector.shape_cast %58 : vector<64xf32> to vector<64x1xf32>
    %60 = vector.broadcast %59 : vector<64x1xf32> to vector<64x64xf32>
    %61 = arith.subf %57, %60 : vector<64x64xf32>
    %62 = math.exp %61 : vector<64x64xf32>
    %cst_34 = arith.constant dense<0.000000e+00> : vector<64xf32>
    %63 = vector.multi_reduction <add>, %62, %cst_34 [1] : vector<64x64xf32> to vector<64xf32>
    %64 = vector.shape_cast %63 : vector<64xf32> to vector<64x1xf32>
    %65 = tpu.reciprocal %64 {approx = true} : vector<64x1xf32> -> vector<64x1xf32>
    %66 = vector.broadcast %65 : vector<64x1xf32> to vector<64x64xf32>
    %67 = arith.mulf %62, %66 : vector<64x64xf32>
    %cst_35 = arith.constant dense<0.000000e+00> : vector<64x16xf32>
    %68 = tpu.matmul %67, %54, %cst_35 {dimension_numbers = #tpu.dot_dimension_numbers<[1], [0], [0], [1], [0, 0, 1, 1], [], []>} : vector<64x64xf32>, vector<64x16xf32>, vector<64x16xf32> -> vector<64x16xf32>
    %69 = vector.extract_strided_slice %23 {offsets = [16, 96], sizes = [16, 32], strides = [1, 1]} : vector<32x128xf32> to vector<16x32xf32>
    %cst_36 = arith.constant dense<0.000000e+00> : vector<64x32xf32>
    %70 = tpu.matmul %68, %69, %cst_36 {dimension_numbers = #tpu.dot_dimension_numbers<[1], [0], [0], [1], [0, 0, 1, 1], [], []>} : vector<64x16xf32>, vector<16x32xf32>, vector<64x32xf32> -> vector<64x32xf32>
    %71 = arith.addf %51, %70 : vector<64x32xf32>
    %72 = vector.extract_strided_slice %25 {offsets = [0, 96], sizes = [1, 32], strides = [1, 1]} : vector<1x128xf32> to vector<1x32xf32>
    %73 = vector.broadcast %72 : vector<1x32xf32> to vector<64x32xf32>
    %74 = arith.addf %71, %73 : vector<64x32xf32>
    %75 = arith.addf %14, %74 : vector<64x32xf32>
    %76 = vector.extract_strided_slice %27 {offsets = [0, 0], sizes = [1, 32], strides = [1, 1]} : vector<1x128xf32> to vector<1x32xf32>
    %77 = vector.extract_strided_slice %27 {offsets = [0, 32], sizes = [1, 32], strides = [1, 1]} : vector<1x128xf32> to vector<1x32xf32>
    %cst_37 = arith.constant dense<0.000000e+00> : vector<64xf32>
    %78 = vector.multi_reduction <add>, %75, %cst_37 [1] : vector<64x32xf32> to vector<64xf32>
    %79 = vector.shape_cast %78 : vector<64xf32> to vector<64x1xf32>
    %cst_38 = arith.constant 3.200000e+01 : f32
    %80 = vector.broadcast %cst_38 : f32 to vector<64x1xf32>
    %81 = arith.divf %79, %80 : vector<64x1xf32>
    %82 = vector.broadcast %81 : vector<64x1xf32> to vector<64x32xf32>
    %83 = arith.subf %75, %82 : vector<64x32xf32>
    %84 = arith.mulf %83, %83 : vector<64x32xf32>
    %cst_39 = arith.constant dense<0.000000e+00> : vector<64xf32>
    %85 = vector.multi_reduction <add>, %84, %cst_39 [1] : vector<64x32xf32> to vector<64xf32>
    %86 = vector.shape_cast %85 : vector<64xf32> to vector<64x1xf32>
    %cst_40 = arith.constant 3.200000e+01 : f32
    %87 = vector.broadcast %cst_40 : f32 to vector<64x1xf32>
    %88 = arith.divf %86, %87 : vector<64x1xf32>
    %89 = vector.broadcast %81 : vector<64x1xf32> to vector<64x32xf32>
    %90 = arith.subf %75, %89 : vector<64x32xf32>
    %cst_41 = arith.constant 9.99999974E-6 : f32
    %91 = vector.broadcast %cst_41 : f32 to vector<64x1xf32>
    %92 = arith.addf %88, %91 : vector<64x1xf32>
    %93 = math.rsqrt %92 : vector<64x1xf32>
    %94 = vector.broadcast %93 : vector<64x1xf32> to vector<64x32xf32>
    %95 = arith.mulf %90, %94 : vector<64x32xf32>
    %96 = vector.broadcast %76 : vector<1x32xf32> to vector<64x32xf32>
    %97 = arith.mulf %95, %96 : vector<64x32xf32>
    %98 = vector.broadcast %77 : vector<1x32xf32> to vector<64x32xf32>
    %99 = arith.addf %97, %98 : vector<64x32xf32>
    %c0_42 = arith.constant 0 : index
    %c0_43 = arith.constant 0 : index
    %c0_44 = arith.constant 0 : index
    %100 = vector.load %arg10[%c0_42, %c0_43, %c0_44] : memref<2x32x64xf32, #tpu.memory_space<vmem>>, vector<1x32x64xf32>
    %101 = vector.shape_cast %100 : vector<1x32x64xf32> to vector<32x64xf32>
    %cst_45 = arith.constant dense<0.000000e+00> : vector<64x64xf32>
    %102 = tpu.matmul %99, %101, %cst_45 {dimension_numbers = #tpu.dot_dimension_numbers<[1], [0], [0], [1], [0, 0, 1, 1], [], []>} : vector<64x32xf32>, vector<32x64xf32>, vector<64x64xf32> -> vector<64x64xf32>
    %c0_46 = arith.constant 0 : index
    %c0_47 = arith.constant 0 : index
    %c0_48 = arith.constant 0 : index
    %103 = vector.load %arg12[%c0_46, %c0_47, %c0_48] : memref<2x1x128xf32, #tpu.memory_space<vmem>>, vector<1x1x128xf32>
    %104 = vector.shape_cast %103 : vector<1x1x128xf32> to vector<1x128xf32>
    %105 = vector.extract_strided_slice %104 {offsets = [0, 0], sizes = [1, 64], strides = [1, 1]} : vector<1x128xf32> to vector<1x64xf32>
    %106 = vector.broadcast %105 : vector<1x64xf32> to vector<64x64xf32>
    %107 = arith.addf %102, %106 : vector<64x64xf32>
    %cst_49 = arith.constant 0.000000e+00 : f32
    %108 = vector.broadcast %cst_49 : f32 to vector<64x64xf32>
    %109 = arith.maximumf %107, %108 : vector<64x64xf32>
    %c0_50 = arith.constant 0 : index
    %c0_51 = arith.constant 0 : index
    %c0_52 = arith.constant 0 : index
    %110 = vector.load %arg11[%c0_50, %c0_51, %c0_52] : memref<2x64x32xf32, #tpu.memory_space<vmem>>, vector<1x64x32xf32>
    %111 = vector.shape_cast %110 : vector<1x64x32xf32> to vector<64x32xf32>
    %cst_53 = arith.constant dense<0.000000e+00> : vector<64x32xf32>
    %112 = tpu.matmul %109, %111, %cst_53 {dimension_numbers = #tpu.dot_dimension_numbers<[1], [0], [0], [1], [0, 0, 1, 1], [], []>} : vector<64x64xf32>, vector<64x32xf32>, vector<64x32xf32> -> vector<64x32xf32>
    %c0_54 = arith.constant 0 : index
    %c0_55 = arith.constant 0 : index
    %c0_56 = arith.constant 0 : index
    %113 = vector.load %arg12[%c0_54, %c0_55, %c0_56] : memref<2x1x128xf32, #tpu.memory_space<vmem>>, vector<1x1x128xf32>
    %114 = vector.shape_cast %113 : vector<1x1x128xf32> to vector<1x128xf32>
    %115 = vector.extract_strided_slice %114 {offsets = [0, 64], sizes = [1, 32], strides = [1, 1]} : vector<1x128xf32> to vector<1x32xf32>
    %116 = vector.broadcast %115 : vector<1x32xf32> to vector<64x32xf32>
    %117 = arith.addf %112, %116 : vector<64x32xf32>
    %118 = arith.addf %99, %117 : vector<64x32xf32>
    %119 = vector.extract_strided_slice %27 {offsets = [0, 64], sizes = [1, 32], strides = [1, 1]} : vector<1x128xf32> to vector<1x32xf32>
    %120 = vector.extract_strided_slice %27 {offsets = [0, 96], sizes = [1, 32], strides = [1, 1]} : vector<1x128xf32> to vector<1x32xf32>
    %cst_57 = arith.constant dense<0.000000e+00> : vector<64xf32>
    %121 = vector.multi_reduction <add>, %118, %cst_57 [1] : vector<64x32xf32> to vector<64xf32>
    %122 = vector.shape_cast %121 : vector<64xf32> to vector<64x1xf32>
    %cst_58 = arith.constant 3.200000e+01 : f32
    %123 = vector.broadcast %cst_58 : f32 to vector<64x1xf32>
    %124 = arith.divf %122, %123 : vector<64x1xf32>
    %125 = vector.broadcast %124 : vector<64x1xf32> to vector<64x32xf32>
    %126 = arith.subf %118, %125 : vector<64x32xf32>
    %127 = arith.mulf %126, %126 : vector<64x32xf32>
    %cst_59 = arith.constant dense<0.000000e+00> : vector<64xf32>
    %128 = vector.multi_reduction <add>, %127, %cst_59 [1] : vector<64x32xf32> to vector<64xf32>
    %129 = vector.shape_cast %128 : vector<64xf32> to vector<64x1xf32>
    %cst_60 = arith.constant 3.200000e+01 : f32
    %130 = vector.broadcast %cst_60 : f32 to vector<64x1xf32>
    %131 = arith.divf %129, %130 : vector<64x1xf32>
    %132 = vector.broadcast %124 : vector<64x1xf32> to vector<64x32xf32>
    %133 = arith.subf %118, %132 : vector<64x32xf32>
    %cst_61 = arith.constant 9.99999974E-6 : f32
    %134 = vector.broadcast %cst_61 : f32 to vector<64x1xf32>
    %135 = arith.addf %131, %134 : vector<64x1xf32>
    %136 = math.rsqrt %135 : vector<64x1xf32>
    %137 = vector.broadcast %136 : vector<64x1xf32> to vector<64x32xf32>
    %138 = arith.mulf %133, %137 : vector<64x32xf32>
    %139 = vector.broadcast %119 : vector<1x32xf32> to vector<64x32xf32>
    %140 = arith.mulf %138, %139 : vector<64x32xf32>
    %141 = vector.broadcast %120 : vector<1x32xf32> to vector<64x32xf32>
    %142 = arith.addf %140, %141 : vector<64x32xf32>
    %c1 = arith.constant 1 : index
    %c0_62 = arith.constant 0 : index
    %c0_63 = arith.constant 0 : index
    %143 = vector.load %arg7[%c1, %c0_62, %c0_63] : memref<2x32x128xf32, #tpu.memory_space<vmem>>, vector<1x32x128xf32>
    %144 = vector.shape_cast %143 : vector<1x32x128xf32> to vector<32x128xf32>
    %c1_64 = arith.constant 1 : index
    %c0_65 = arith.constant 0 : index
    %c0_66 = arith.constant 0 : index
    %145 = vector.load %arg8[%c1_64, %c0_65, %c0_66] : memref<2x1x128xf32, #tpu.memory_space<vmem>>, vector<1x1x128xf32>
    %146 = vector.shape_cast %145 : vector<1x1x128xf32> to vector<1x128xf32>
    %c1_67 = arith.constant 1 : index
    %c0_68 = arith.constant 0 : index
    %c0_69 = arith.constant 0 : index
    %147 = vector.load %arg9[%c1_67, %c0_68, %c0_69] : memref<2x1x128xf32, #tpu.memory_space<vmem>>, vector<1x1x128xf32>
    %148 = vector.shape_cast %147 : vector<1x1x128xf32> to vector<1x128xf32>
    %cst_70 = arith.constant dense<0.000000e+00> : vector<64x128xf32>
    %149 = tpu.matmul %142, %144, %cst_70 {dimension_numbers = #tpu.dot_dimension_numbers<[1], [0], [0], [1], [0, 0, 1, 1], [], []>} : vector<64x32xf32>, vector<32x128xf32>, vector<64x128xf32> -> vector<64x128xf32>
    %150 = vector.broadcast %146 : vector<1x128xf32> to vector<64x128xf32>
    %151 = arith.addf %149, %150 : vector<64x128xf32>
    %cst_71 = arith.constant 0.000000e+00 : f32
    %152 = vector.broadcast %cst_71 : f32 to vector<64x32xf32>
    %153 = vector.extract_strided_slice %151 {offsets = [0, 0], sizes = [64, 16], strides = [1, 1]} : vector<64x128xf32> to vector<64x16xf32>
    %154 = vector.extract_strided_slice %151 {offsets = [0, 32], sizes = [64, 16], strides = [1, 1]} : vector<64x128xf32> to vector<64x16xf32>
    %155 = vector.extract_strided_slice %151 {offsets = [0, 64], sizes = [64, 16], strides = [1, 1]} : vector<64x128xf32> to vector<64x16xf32>
    %cst_72 = arith.constant dense<0.000000e+00> : vector<64x64xf32>
    %156 = tpu.matmul %153, %154, %cst_72 {dimension_numbers = #tpu.dot_dimension_numbers<[1], [1], [0], [0], [0, 0, 1, 0], [], []>} : vector<64x16xf32>, vector<64x16xf32>, vector<64x64xf32> -> vector<64x64xf32>
    %cst_73 = arith.constant -1.000000e+09 : f32
    %157 = vector.broadcast %cst_73 : f32 to vector<64x64xf32>
    %158 = arith.select %21, %156, %157 : vector<64x64xi1>, vector<64x64xf32>
    %cst_74 = arith.constant dense<0xFF800000> : vector<64xf32>
    %159 = vector.multi_reduction <maximumf>, %158, %cst_74 [1] : vector<64x64xf32> to vector<64xf32>
    %160 = vector.shape_cast %159 : vector<64xf32> to vector<64x1xf32>
    %161 = vector.broadcast %160 : vector<64x1xf32> to vector<64x64xf32>
    %162 = arith.subf %158, %161 : vector<64x64xf32>
    %163 = math.exp %162 : vector<64x64xf32>
    %cst_75 = arith.constant dense<0.000000e+00> : vector<64xf32>
    %164 = vector.multi_reduction <add>, %163, %cst_75 [1] : vector<64x64xf32> to vector<64xf32>
    %165 = vector.shape_cast %164 : vector<64xf32> to vector<64x1xf32>
    %166 = tpu.reciprocal %165 {approx = true} : vector<64x1xf32> -> vector<64x1xf32>
    %167 = vector.broadcast %166 : vector<64x1xf32> to vector<64x64xf32>
    %168 = arith.mulf %163, %167 : vector<64x64xf32>
    %cst_76 = arith.constant dense<0.000000e+00> : vector<64x16xf32>
    %169 = tpu.matmul %168, %155, %cst_76 {dimension_numbers = #tpu.dot_dimension_numbers<[1], [0], [0], [1], [0, 0, 1, 1], [], []>} : vector<64x64xf32>, vector<64x16xf32>, vector<64x16xf32> -> vector<64x16xf32>
    %170 = vector.extract_strided_slice %144 {offsets = [0, 96], sizes = [16, 32], strides = [1, 1]} : vector<32x128xf32> to vector<16x32xf32>
    %cst_77 = arith.constant dense<0.000000e+00> : vector<64x32xf32>
    %171 = tpu.matmul %169, %170, %cst_77 {dimension_numbers = #tpu.dot_dimension_numbers<[1], [0], [0], [1], [0, 0, 1, 1], [], []>} : vector<64x16xf32>, vector<16x32xf32>, vector<64x32xf32> -> vector<64x32xf32>
    %172 = arith.addf %152, %171 : vector<64x32xf32>
    %173 = vector.extract_strided_slice %151 {offsets = [0, 16], sizes = [64, 16], strides = [1, 1]} : vector<64x128xf32> to vector<64x16xf32>
    %174 = vector.extract_strided_slice %151 {offsets = [0, 48], sizes = [64, 16], strides = [1, 1]} : vector<64x128xf32> to vector<64x16xf32>
    %175 = vector.extract_strided_slice %151 {offsets = [0, 80], sizes = [64, 16], strides = [1, 1]} : vector<64x128xf32> to vector<64x16xf32>
    %cst_78 = arith.constant dense<0.000000e+00> : vector<64x64xf32>
    %176 = tpu.matmul %173, %174, %cst_78 {dimension_numbers = #tpu.dot_dimension_numbers<[1], [1], [0], [0], [0, 0, 1, 0], [], []>} : vector<64x16xf32>, vector<64x16xf32>, vector<64x64xf32> -> vector<64x64xf32>
    %cst_79 = arith.constant -1.000000e+09 : f32
    %177 = vector.broadcast %cst_79 : f32 to vector<64x64xf32>
    %178 = arith.select %21, %176, %177 : vector<64x64xi1>, vector<64x64xf32>
    %cst_80 = arith.constant dense<0xFF800000> : vector<64xf32>
    %179 = vector.multi_reduction <maximumf>, %178, %cst_80 [1] : vector<64x64xf32> to vector<64xf32>
    %180 = vector.shape_cast %179 : vector<64xf32> to vector<64x1xf32>
    %181 = vector.broadcast %180 : vector<64x1xf32> to vector<64x64xf32>
    %182 = arith.subf %178, %181 : vector<64x64xf32>
    %183 = math.exp %182 : vector<64x64xf32>
    %cst_81 = arith.constant dense<0.000000e+00> : vector<64xf32>
    %184 = vector.multi_reduction <add>, %183, %cst_81 [1] : vector<64x64xf32> to vector<64xf32>
    %185 = vector.shape_cast %184 : vector<64xf32> to vector<64x1xf32>
    %186 = tpu.reciprocal %185 {approx = true} : vector<64x1xf32> -> vector<64x1xf32>
    %187 = vector.broadcast %186 : vector<64x1xf32> to vector<64x64xf32>
    %188 = arith.mulf %183, %187 : vector<64x64xf32>
    %cst_82 = arith.constant dense<0.000000e+00> : vector<64x16xf32>
    %189 = tpu.matmul %188, %175, %cst_82 {dimension_numbers = #tpu.dot_dimension_numbers<[1], [0], [0], [1], [0, 0, 1, 1], [], []>} : vector<64x64xf32>, vector<64x16xf32>, vector<64x16xf32> -> vector<64x16xf32>
    %190 = vector.extract_strided_slice %144 {offsets = [16, 96], sizes = [16, 32], strides = [1, 1]} : vector<32x128xf32> to vector<16x32xf32>
    %cst_83 = arith.constant dense<0.000000e+00> : vector<64x32xf32>
    %191 = tpu.matmul %189, %190, %cst_83 {dimension_numbers = #tpu.dot_dimension_numbers<[1], [0], [0], [1], [0, 0, 1, 1], [], []>} : vector<64x16xf32>, vector<16x32xf32>, vector<64x32xf32> -> vector<64x32xf32>
    %192 = arith.addf %172, %191 : vector<64x32xf32>
    %193 = vector.extract_strided_slice %146 {offsets = [0, 96], sizes = [1, 32], strides = [1, 1]} : vector<1x128xf32> to vector<1x32xf32>
    %194 = vector.broadcast %193 : vector<1x32xf32> to vector<64x32xf32>
    %195 = arith.addf %192, %194 : vector<64x32xf32>
    %196 = arith.addf %142, %195 : vector<64x32xf32>
    %197 = vector.extract_strided_slice %148 {offsets = [0, 0], sizes = [1, 32], strides = [1, 1]} : vector<1x128xf32> to vector<1x32xf32>
    %198 = vector.extract_strided_slice %148 {offsets = [0, 32], sizes = [1, 32], strides = [1, 1]} : vector<1x128xf32> to vector<1x32xf32>
    %cst_84 = arith.constant dense<0.000000e+00> : vector<64xf32>
    %199 = vector.multi_reduction <add>, %196, %cst_84 [1] : vector<64x32xf32> to vector<64xf32>
    %200 = vector.shape_cast %199 : vector<64xf32> to vector<64x1xf32>
    %cst_85 = arith.constant 3.200000e+01 : f32
    %201 = vector.broadcast %cst_85 : f32 to vector<64x1xf32>
    %202 = arith.divf %200, %201 : vector<64x1xf32>
    %203 = vector.broadcast %202 : vector<64x1xf32> to vector<64x32xf32>
    %204 = arith.subf %196, %203 : vector<64x32xf32>
    %205 = arith.mulf %204, %204 : vector<64x32xf32>
    %cst_86 = arith.constant dense<0.000000e+00> : vector<64xf32>
    %206 = vector.multi_reduction <add>, %205, %cst_86 [1] : vector<64x32xf32> to vector<64xf32>
    %207 = vector.shape_cast %206 : vector<64xf32> to vector<64x1xf32>
    %cst_87 = arith.constant 3.200000e+01 : f32
    %208 = vector.broadcast %cst_87 : f32 to vector<64x1xf32>
    %209 = arith.divf %207, %208 : vector<64x1xf32>
    %210 = vector.broadcast %202 : vector<64x1xf32> to vector<64x32xf32>
    %211 = arith.subf %196, %210 : vector<64x32xf32>
    %cst_88 = arith.constant 9.99999974E-6 : f32
    %212 = vector.broadcast %cst_88 : f32 to vector<64x1xf32>
    %213 = arith.addf %209, %212 : vector<64x1xf32>
    %214 = math.rsqrt %213 : vector<64x1xf32>
    %215 = vector.broadcast %214 : vector<64x1xf32> to vector<64x32xf32>
    %216 = arith.mulf %211, %215 : vector<64x32xf32>
    %217 = vector.broadcast %197 : vector<1x32xf32> to vector<64x32xf32>
    %218 = arith.mulf %216, %217 : vector<64x32xf32>
    %219 = vector.broadcast %198 : vector<1x32xf32> to vector<64x32xf32>
    %220 = arith.addf %218, %219 : vector<64x32xf32>
    %c1_89 = arith.constant 1 : index
    %c0_90 = arith.constant 0 : index
    %c0_91 = arith.constant 0 : index
    %221 = vector.load %arg10[%c1_89, %c0_90, %c0_91] : memref<2x32x64xf32, #tpu.memory_space<vmem>>, vector<1x32x64xf32>
    %222 = vector.shape_cast %221 : vector<1x32x64xf32> to vector<32x64xf32>
    %cst_92 = arith.constant dense<0.000000e+00> : vector<64x64xf32>
    %223 = tpu.matmul %220, %222, %cst_92 {dimension_numbers = #tpu.dot_dimension_numbers<[1], [0], [0], [1], [0, 0, 1, 1], [], []>} : vector<64x32xf32>, vector<32x64xf32>, vector<64x64xf32> -> vector<64x64xf32>
    %c1_93 = arith.constant 1 : index
    %c0_94 = arith.constant 0 : index
    %c0_95 = arith.constant 0 : index
    %224 = vector.load %arg12[%c1_93, %c0_94, %c0_95] : memref<2x1x128xf32, #tpu.memory_space<vmem>>, vector<1x1x128xf32>
    %225 = vector.shape_cast %224 : vector<1x1x128xf32> to vector<1x128xf32>
    %226 = vector.extract_strided_slice %225 {offsets = [0, 0], sizes = [1, 64], strides = [1, 1]} : vector<1x128xf32> to vector<1x64xf32>
    %227 = vector.broadcast %226 : vector<1x64xf32> to vector<64x64xf32>
    %228 = arith.addf %223, %227 : vector<64x64xf32>
    %cst_96 = arith.constant 0.000000e+00 : f32
    %229 = vector.broadcast %cst_96 : f32 to vector<64x64xf32>
    %230 = arith.maximumf %228, %229 : vector<64x64xf32>
    %c1_97 = arith.constant 1 : index
    %c0_98 = arith.constant 0 : index
    %c0_99 = arith.constant 0 : index
    %231 = vector.load %arg11[%c1_97, %c0_98, %c0_99] : memref<2x64x32xf32, #tpu.memory_space<vmem>>, vector<1x64x32xf32>
    %232 = vector.shape_cast %231 : vector<1x64x32xf32> to vector<64x32xf32>
    %cst_100 = arith.constant dense<0.000000e+00> : vector<64x32xf32>
    %233 = tpu.matmul %230, %232, %cst_100 {dimension_numbers = #tpu.dot_dimension_numbers<[1], [0], [0], [1], [0, 0, 1, 1], [], []>} : vector<64x64xf32>, vector<64x32xf32>, vector<64x32xf32> -> vector<64x32xf32>
    %c1_101 = arith.constant 1 : index
    %c0_102 = arith.constant 0 : index
    %c0_103 = arith.constant 0 : index
    %234 = vector.load %arg12[%c1_101, %c0_102, %c0_103] : memref<2x1x128xf32, #tpu.memory_space<vmem>>, vector<1x1x128xf32>
    %235 = vector.shape_cast %234 : vector<1x1x128xf32> to vector<1x128xf32>
    %236 = vector.extract_strided_slice %235 {offsets = [0, 64], sizes = [1, 32], strides = [1, 1]} : vector<1x128xf32> to vector<1x32xf32>
    %237 = vector.broadcast %236 : vector<1x32xf32> to vector<64x32xf32>
    %238 = arith.addf %233, %237 : vector<64x32xf32>
    %239 = arith.addf %220, %238 : vector<64x32xf32>
    %240 = vector.extract_strided_slice %148 {offsets = [0, 64], sizes = [1, 32], strides = [1, 1]} : vector<1x128xf32> to vector<1x32xf32>
    %241 = vector.extract_strided_slice %148 {offsets = [0, 96], sizes = [1, 32], strides = [1, 1]} : vector<1x128xf32> to vector<1x32xf32>
    %cst_104 = arith.constant dense<0.000000e+00> : vector<64xf32>
    %242 = vector.multi_reduction <add>, %239, %cst_104 [1] : vector<64x32xf32> to vector<64xf32>
    %243 = vector.shape_cast %242 : vector<64xf32> to vector<64x1xf32>
    %cst_105 = arith.constant 3.200000e+01 : f32
    %244 = vector.broadcast %cst_105 : f32 to vector<64x1xf32>
    %245 = arith.divf %243, %244 : vector<64x1xf32>
    %246 = vector.broadcast %245 : vector<64x1xf32> to vector<64x32xf32>
    %247 = arith.subf %239, %246 : vector<64x32xf32>
    %248 = arith.mulf %247, %247 : vector<64x32xf32>
    %cst_106 = arith.constant dense<0.000000e+00> : vector<64xf32>
    %249 = vector.multi_reduction <add>, %248, %cst_106 [1] : vector<64x32xf32> to vector<64xf32>
    %250 = vector.shape_cast %249 : vector<64xf32> to vector<64x1xf32>
    %cst_107 = arith.constant 3.200000e+01 : f32
    %251 = vector.broadcast %cst_107 : f32 to vector<64x1xf32>
    %252 = arith.divf %250, %251 : vector<64x1xf32>
    %253 = vector.broadcast %245 : vector<64x1xf32> to vector<64x32xf32>
    %254 = arith.subf %239, %253 : vector<64x32xf32>
    %cst_108 = arith.constant 9.99999974E-6 : f32
    %255 = vector.broadcast %cst_108 : f32 to vector<64x1xf32>
    %256 = arith.addf %252, %255 : vector<64x1xf32>
    %257 = math.rsqrt %256 : vector<64x1xf32>
    %258 = vector.broadcast %257 : vector<64x1xf32> to vector<64x32xf32>
    %259 = arith.mulf %254, %258 : vector<64x32xf32>
    %260 = vector.broadcast %240 : vector<1x32xf32> to vector<64x32xf32>
    %261 = arith.mulf %259, %260 : vector<64x32xf32>
    %262 = vector.broadcast %241 : vector<1x32xf32> to vector<64x32xf32>
    %263 = arith.addf %261, %262 : vector<64x32xf32>
    %264 = tpu.iota {dimensions = array<i32: 1>} : vector<8x64xi32>
    %265 = tpu.iota {dimensions = array<i32: 0>} : vector<8x64xi32>
    %c8_i32 = arith.constant 8 : i32
    %266 = vector.broadcast %c8_i32 : i32 to vector<8x64xi32>
    %267 = arith.muli %265, %266 : vector<8x64xi32>
    %268 = vector.broadcast %5 : vector<8x1xi32> to vector<8x64xi32>
    %269 = arith.addi %267, %268 : vector<8x64xi32>
    %c1_i32 = arith.constant 1 : i32
    %270 = vector.broadcast %c1_i32 : i32 to vector<8x64xi32>
    %271 = arith.subi %269, %270 : vector<8x64xi32>
    %272 = arith.cmpi eq, %264, %271 : vector<8x64xi32>
    %273 = arith.extui %272 : vector<8x64xi1> to vector<8x64xi32>
    %274 = arith.sitofp %273 : vector<8x64xi32> to vector<8x64xf32>
    %cst_109 = arith.constant dense<0.000000e+00> : vector<8x32xf32>
    %275 = tpu.matmul %274, %263, %cst_109 {dimension_numbers = #tpu.dot_dimension_numbers<[1], [0], [0], [1], [0, 0, 1, 1], [], []>} : vector<8x64xf32>, vector<64x32xf32>, vector<8x32xf32> -> vector<8x32xf32>
    %c0_110 = arith.constant 0 : index
    %c0_111 = arith.constant 0 : index
    %276 = vector.load %arg13[%c0_110, %c0_111] : memref<32x128xf32, #tpu.memory_space<vmem>>, vector<32x128xf32>
    %cst_112 = arith.constant dense<0.000000e+00> : vector<8x128xf32>
    %277 = tpu.matmul %275, %276, %cst_112 {dimension_numbers = #tpu.dot_dimension_numbers<[1], [0], [0], [1], [0, 0, 1, 1], [], []>} : vector<8x32xf32>, vector<32x128xf32>, vector<8x128xf32> -> vector<8x128xf32>
    %c0_113 = arith.constant 0 : index
    %c0_114 = arith.constant 0 : index
    %278 = vector.load %arg14[%c0_113, %c0_114] : memref<1x128xf32, #tpu.memory_space<vmem>>, vector<1x128xf32>
    %279 = vector.broadcast %278 : vector<1x128xf32> to vector<8x128xf32>
    %280 = arith.addf %277, %279 : vector<8x128xf32>
    %c0_115 = arith.constant 0 : index
    %c0_116 = arith.constant 0 : index
    %281 = vector.load %arg15[%c0_115, %c0_116] : memref<8x128xf32, #tpu.memory_space<vmem>>, vector<8x128xf32>
    tpu.vector_store %arg15[%c0_115, %c0_116], %280 {strides = array<i32>} : memref<8x128xf32, #tpu.memory_space<vmem>>, vector<8x128xf32>,
    return
  }
  func.func @transform_0(%arg0: i32) -> (i32, i32, i32) {
    %c0_i32 = arith.constant 0 : i32
    %c0_i32_0 = arith.constant 0 : i32
    %c0_i32_1 = arith.constant 0 : i32
    return %arg0, %c0_i32, %c0_i32_0 : i32, i32, i32
  }
  func.func @transform_1(%arg0: i32) -> (i32, i32, i32) {
    %c0_i32 = arith.constant 0 : i32
    %c0_i32_0 = arith.constant 0 : i32
    %c0_i32_1 = arith.constant 0 : i32
    return %arg0, %c0_i32, %c0_i32_0 : i32, i32, i32
  }
  func.func @transform_2(%arg0: i32) -> (i32, i32, i32) {
    %c0_i32 = arith.constant 0 : i32
    %c0_i32_0 = arith.constant 0 : i32
    %c0_i32_1 = arith.constant 0 : i32
    return %arg0, %c0_i32, %c0_i32_0 : i32, i32, i32
  }
  func.func @transform_3(%arg0: i32) -> (i32, i32) {
    %c0_i32 = arith.constant 0 : i32
    %c0_i32_0 = arith.constant 0 : i32
    %c0_i32_1 = arith.constant 0 : i32
    return %c0_i32, %c0_i32_0 : i32, i32
  }
  func.func @transform_4(%arg0: i32) -> (i32, i32) {
    %c0_i32 = arith.constant 0 : i32
    %c0_i32_0 = arith.constant 0 : i32
    %c0_i32_1 = arith.constant 0 : i32
    return %c0_i32, %c0_i32_0 : i32, i32
  }
  func.func @transform_5(%arg0: i32) -> (i32, i32) {
    %c0_i32 = arith.constant 0 : i32
    %c0_i32_0 = arith.constant 0 : i32
    %c0_i32_1 = arith.constant 0 : i32
    return %c0_i32, %c0_i32_0 : i32, i32
  }
  func.func @transform_6(%arg0: i32) -> (i32, i32, i32) {
    %c0_i32 = arith.constant 0 : i32
    %c0_i32_0 = arith.constant 0 : i32
    %c0_i32_1 = arith.constant 0 : i32
    %c0_i32_2 = arith.constant 0 : i32
    return %c0_i32, %c0_i32_0, %c0_i32_1 : i32, i32, i32
  }
  func.func @transform_7(%arg0: i32) -> (i32, i32, i32) {
    %c0_i32 = arith.constant 0 : i32
    %c0_i32_0 = arith.constant 0 : i32
    %c0_i32_1 = arith.constant 0 : i32
    %c0_i32_2 = arith.constant 0 : i32
    return %c0_i32, %c0_i32_0, %c0_i32_1 : i32, i32, i32
  }
  func.func @transform_8(%arg0: i32) -> (i32, i32, i32) {
    %c0_i32 = arith.constant 0 : i32
    %c0_i32_0 = arith.constant 0 : i32
    %c0_i32_1 = arith.constant 0 : i32
    %c0_i32_2 = arith.constant 0 : i32
    return %c0_i32, %c0_i32_0, %c0_i32_1 : i32, i32, i32
  }
  func.func @transform_9(%arg0: i32) -> (i32, i32, i32) {
    %c0_i32 = arith.constant 0 : i32
    %c0_i32_0 = arith.constant 0 : i32
    %c0_i32_1 = arith.constant 0 : i32
    %c0_i32_2 = arith.constant 0 : i32
    return %c0_i32, %c0_i32_0, %c0_i32_1 : i32, i32, i32
  }
  func.func @transform_10(%arg0: i32) -> (i32, i32, i32) {
    %c0_i32 = arith.constant 0 : i32
    %c0_i32_0 = arith.constant 0 : i32
    %c0_i32_1 = arith.constant 0 : i32
    %c0_i32_2 = arith.constant 0 : i32
    return %c0_i32, %c0_i32_0, %c0_i32_1 : i32, i32, i32
  }
  func.func @transform_11(%arg0: i32) -> (i32, i32, i32) {
    %c0_i32 = arith.constant 0 : i32
    %c0_i32_0 = arith.constant 0 : i32
    %c0_i32_1 = arith.constant 0 : i32
    %c0_i32_2 = arith.constant 0 : i32
    return %c0_i32, %c0_i32_0, %c0_i32_1 : i32, i32, i32
  }
  func.func @transform_12(%arg0: i32) -> (i32, i32) {
    %c0_i32 = arith.constant 0 : i32
    %c0_i32_0 = arith.constant 0 : i32
    %c0_i32_1 = arith.constant 0 : i32
    return %c0_i32, %c0_i32_0 : i32, i32
  }
  func.func @transform_13(%arg0: i32) -> (i32, i32) {
    %c0_i32 = arith.constant 0 : i32
    %c0_i32_0 = arith.constant 0 : i32
    %c0_i32_1 = arith.constant 0 : i32
    return %c0_i32, %c0_i32_0 : i32, i32
  }
  func.func @transform_14(%arg0: i32) -> (i32, i32) {
    %c0_i32 = arith.constant 0 : i32
    %c0_i32_0 = arith.constant 0 : i32
    return %arg0, %c0_i32 : i32, i32
  }
}

</mosaic_0001>

<llo_original>
// kernel: sasrec_forward.1
$region0: #{sasrec_forward.1}
  #allocation0 [shape = 'u32[]', space=smem, size = 0x4, offset = 0x4, fixed_abs, tag = 'smem constant byte address 0x4 - core index']
  #allocation1 [shape = 'u32[144,128]{1,0:T(1,128)}', space=vmem, size = 0x12000, scoped, tag = 'internal scratch']
  %s0 = inlined_call_operand.vmem [shape: s32[1,1,64], index: 0, kind: input, shape index: {}]
  %s1 = inlined_call_operand.vmem [shape: s32[1,64,1], index: 1, kind: input, shape index: {}]
  %s2 = inlined_call_operand.vmem [shape: s32[1,8,1], index: 2, kind: input, shape index: {}]
  %s3 = inlined_call_operand.vmem [shape: s8[64,64], index: 3, kind: input, shape index: {}]
  %s4 = inlined_call_operand.vmem [shape: f32[64,32], index: 4, kind: input, shape index: {}]
  %s5 = inlined_call_operand.vmem [shape: f32[64,32], index: 5, kind: input, shape index: {}]
  %s6 = inlined_call_operand.vmem [shape: f32[2,32,128], index: 6, kind: input, shape index: {}]
  %s7 = inlined_call_operand.vmem [shape: f32[2,1,128], index: 7, kind: input, shape index: {}]
  %s8 = inlined_call_operand.vmem [shape: f32[2,1,128], index: 8, kind: input, shape index: {}]
  %s9 = inlined_call_operand.vmem [shape: f32[2,32,64], index: 9, kind: input, shape index: {}]
  %s10 = inlined_call_operand.vmem [shape: f32[2,64,32], index: 10, kind: input, shape index: {}]
  %s11 = inlined_call_operand.vmem [shape: f32[2,1,128], index: 11, kind: input, shape index: {}]
  %s12 = inlined_call_operand.vmem [shape: f32[32,128], index: 12, kind: input, shape index: {}]
  %s13 = inlined_call_operand.vmem [shape: f32[1,128], index: 13, kind: input, shape index: {}]
  %s14 = inlined_call_operand.vmem [shape: f32[8,128], index: 14, kind: output, shape index: {}]
  %s15 = sld [smem:[#allocation0]]
  $region66: #{sasrec_forward.1} parent=0
    _
  %s17 = ssub.s32 1, %s15
  %s18 = scalar_select 0, %s17, %s15
  // Predicated region
  $region2: #{sasrec_forward.1} parent=0 // pred_check
    _
  $region3: #{sasrec_forward.1} parent=0 // pred_check_branch
    %20 = sbr.rel (0) target = $region5
  $region4: #{sasrec_forward.1} parent=0 // pred_region
    _
  $region5: #{sasrec_forward.1} parent=0 // pred_fallthru
    _
  // Predicated region
  $region6: #{sasrec_forward.1} parent=0 // pred_check
    _
  $region7: #{sasrec_forward.1} parent=0 // pred_check_branch
    %22 = sbr.rel (0) target = $region9
  $region8: #{sasrec_forward.1} parent=0 // pred_region
    _
  $region9: #{sasrec_forward.1} parent=0 // pred_fallthru
    _
  // Predicated region
  $region10: #{sasrec_forward.1} parent=0 // pred_check
    _
  $region11: #{sasrec_forward.1} parent=0 // pred_check_branch
    %24 = sbr.rel (0) target = $region13
  $region12: #{sasrec_forward.1} parent=0 // pred_region
    _
  $region13: #{sasrec_forward.1} parent=0 // pred_fallthru
    _
  // Predicated region
  $region14: #{sasrec_forward.1} parent=0 // pred_check
    _
  $region15: #{sasrec_forward.1} parent=0 // pred_check_branch
    %26 = sbr.rel (0) target = $region17
  $region16: #{sasrec_forward.1} parent=0 // pred_region
    _
  $region17: #{sasrec_forward.1} parent=0 // pred_fallthru
    _
  // Predicated region
  $region18: #{sasrec_forward.1} parent=0 // pred_check
    _
  $region19: #{sasrec_forward.1} parent=0 // pred_check_branch
    %28 = sbr.rel (0) target = $region21
  $region20: #{sasrec_forward.1} parent=0 // pred_region
    _
  $region21: #{sasrec_forward.1} parent=0 // pred_fallthru
    _
  // Predicated region
  $region22: #{sasrec_forward.1} parent=0 // pred_check
    _
  $region23: #{sasrec_forward.1} parent=0 // pred_check_branch
    %30 = sbr.rel (0) target = $region25
  $region24: #{sasrec_forward.1} parent=0 // pred_region
    _
  $region25: #{sasrec_forward.1} parent=0 // pred_fallthru
    _
  // Predicated region
  $region26: #{sasrec_forward.1} parent=0 // pred_check
    _
  $region27: #{sasrec_forward.1} parent=0 // pred_check_branch
    %32 = sbr.rel (0) target = $region29
  $region28: #{sasrec_forward.1} parent=0 // pred_region
    _
  $region29: #{sasrec_forward.1} parent=0 // pred_fallthru
    _
  // Predicated region
  $region30: #{sasrec_forward.1} parent=0 // pred_check
    _
  $region31: #{sasrec_forward.1} parent=0 // pred_check_branch
    %34 = sbr.rel (0) target = $region33
  $region32: #{sasrec_forward.1} parent=0 // pred_region
    _
  $region33: #{sasrec_forward.1} parent=0 // pred_fallthru
    _
  // Predicated region
  $region34: #{sasrec_forward.1} parent=0 // pred_check
    _
  $region35: #{sasrec_forward.1} parent=0 // pred_check_branch
    %36 = sbr.rel (0) target = $region37
  $region36: #{sasrec_forward.1} parent=0 // pred_region
    _
  $region37: #{sasrec_forward.1} parent=0 // pred_fallthru
    _
  // Predicated region
  $region38: #{sasrec_forward.1} parent=0 // pred_check
    _
  $region39: #{sasrec_forward.1} parent=0 // pred_check_branch
    %38 = sbr.rel (0) target = $region41
  $region40: #{sasrec_forward.1} parent=0 // pred_region
    _
  $region41: #{sasrec_forward.1} parent=0 // pred_fallthru
    _
  // Predicated region
  $region42: #{sasrec_forward.1} parent=0 // pred_check
    _
  $region43: #{sasrec_forward.1} parent=0 // pred_check_branch
    %40 = sbr.rel (0) target = $region45
  $region44: #{sasrec_forward.1} parent=0 // pred_region
    _
  $region45: #{sasrec_forward.1} parent=0 // pred_fallthru
    _
  // Predicated region
  $region46: #{sasrec_forward.1} parent=0 // pred_check
    _
  $region47: #{sasrec_forward.1} parent=0 // pred_check_branch
    %42 = sbr.rel (0) target = $region49
  $region48: #{sasrec_forward.1} parent=0 // pred_region
    _
  $region49: #{sasrec_forward.1} parent=0 // pred_fallthru
    _
  // Predicated region
  $region50: #{sasrec_forward.1} parent=0 // pred_check
    _
  $region51: #{sasrec_forward.1} parent=0 // pred_check_branch
    %44 = sbr.rel (0) target = $region53
  $region52: #{sasrec_forward.1} parent=0 // pred_region
    _
  $region53: #{sasrec_forward.1} parent=0 // pred_fallthru
    _
  // Predicated region
  $region54: #{sasrec_forward.1} parent=0 // pred_check
    _
  $region55: #{sasrec_forward.1} parent=0 // pred_check_branch
    %46 = sbr.rel (0) target = $region57
  $region56: #{sasrec_forward.1} parent=0 // pred_region
    _
  $region57: #{sasrec_forward.1} parent=0 // pred_fallthru
    _
  %v49 = vld [vmem:[%s0] sm:$0x1]
  %v50 = vld [vmem:[%s1] sm:$0xff]
  %v51 = vld [vmem:[%s1 + $0x8] sm:$0xff]
  %v52 = vld [vmem:[%s1 + $0x10] sm:$0xff]
  %v53 = vld [vmem:[%s1 + $0x18] sm:$0xff]
  %v54 = vld [vmem:[%s1 + $0x20] sm:$0xff]
  %v55 = vld [vmem:[%s1 + $0x28] sm:$0xff]
  %v56 = vld [vmem:[%s1 + $0x30] sm:$0xff]
  %v57 = vld [vmem:[%s1 + $0x38] sm:$0xff]
  %v58 = vld [vmem:[%s2] sm:$0xff]
  %v59 = vlaneseq
  %v60 = vand.u32 %v59, 127
  %61 = vset.pattern.permute.xlu0 0
  %62 = vperm.xlu0 %61, %v50
  %v63 = vpop.permute.xlu0 %62
  %64 = vset.pattern.permute.xlu0 0
  %65 = vperm.xlu0 %64, %v51
  %v66 = vpop.permute.xlu0 %65
  %67 = vset.pattern.permute.xlu0 0
  %68 = vperm.xlu0 %67, %v52
  %v69 = vpop.permute.xlu0 %68
  %70 = vset.pattern.permute.xlu0 0
  %71 = vperm.xlu0 %70, %v53
  %v72 = vpop.permute.xlu0 %71
  %73 = vset.pattern.permute.xlu0 0
  %74 = vperm.xlu0 %73, %v54
  %v75 = vpop.permute.xlu0 %74
  %76 = vset.pattern.permute.xlu0 0
  %77 = vperm.xlu0 %76, %v55
  %v78 = vpop.permute.xlu0 %77
  %79 = vset.pattern.permute.xlu0 0
  %80 = vperm.xlu0 %79, %v56
  %v81 = vpop.permute.xlu0 %80
  %82 = vset.pattern.permute.xlu0 0
  %83 = vperm.xlu0 %82, %v57
  %v84 = vpop.permute.xlu0 %83
  %vm85 = vcmp.eq.s32.totalorder %v60, %v63
  %vm86 = vcmp.eq.s32.totalorder %v60, %v66
  %vm87 = vcmp.eq.s32.totalorder %v60, %v69
  %vm88 = vcmp.eq.s32.totalorder %v60, %v72
  %vm89 = vcmp.eq.s32.totalorder %v60, %v75
  %vm90 = vcmp.eq.s32.totalorder %v60, %v78
  %vm91 = vcmp.eq.s32.totalorder %v60, %v81
  %vm92 = vcmp.eq.s32.totalorder %v60, %v84
  %v93 = vsel %vm85, 1, 0
  %v94 = vsel %vm86, 1, 0
  %v95 = vsel %vm87, 1, 0
  %v96 = vsel %vm88, 1, 0
  %v97 = vsel %vm89, 1, 0
  %v98 = vsel %vm90, 1, 0
  %v99 = vsel %vm91, 1, 0
  %v100 = vsel %vm92, 1, 0
  %v101 = vcvt.s32.f32 %v93
  %v102 = vcvt.s32.f32 %v94
  %v103 = vcvt.s32.f32 %v95
  %v104 = vcvt.s32.f32 %v96
  %v105 = vcvt.s32.f32 %v97
  %v106 = vcvt.s32.f32 %v98
  %v107 = vcvt.s32.f32 %v99
  %v108 = vcvt.s32.f32 %v100
  %v109 = vld [vmem:[%s5] sm:$0xff]
  %v110 = vld [vmem:[%s5 + $0x8] sm:$0xff]
  %v111 = vld [vmem:[%s5 + $0x10] sm:$0xff]
  %v112 = vld [vmem:[%s5 + $0x18] sm:$0xff]
  %v113 = vld [vmem:[%s5 + $0x20] sm:$0xff]
  %v114 = vld [vmem:[%s5 + $0x28] sm:$0xff]
  %v115 = vld [vmem:[%s5 + $0x30] sm:$0xff]
  %v116 = vld [vmem:[%s5 + $0x38] sm:$0xff]
  %v117 = vld [vmem:[%s4] sm:$0xff]
  %v118 = vld [vmem:[%s4 + $0x8] sm:$0xff]
  %v119 = vld [vmem:[%s4 + $0x10] sm:$0xff]
  %v120 = vld [vmem:[%s4 + $0x18] sm:$0xff]
  %v121 = vld [vmem:[%s4 + $0x20] sm:$0xff]
  %v122 = vld [vmem:[%s4 + $0x28] sm:$0xff]
  %v123 = vld [vmem:[%s4 + $0x30] sm:$0xff]
  %v124 = vld [vmem:[%s4 + $0x38] sm:$0xff]
  %vm125 = vcmask 523264
  %v127 = vsel %vm125, %v101, 0
  %v130 = vsel %vm125, %v102, 0
  %v133 = vsel %vm125, %v103, 0
  %v136 = vsel %vm125, %v104, 0
  %v139 = vsel %vm125, %v105, 0
  %v142 = vsel %vm125, %v106, 0
  %v145 = vsel %vm125, %v107, 0
  %v148 = vsel %vm125, %v108, 0
  %150 = vmatprep.subr.mxu0 0.0
  %151 = vmatpush1.msra.mxu0 0.0
  %152 = vmatprep.subr.mxu0 0.0
  %153 = vmatpush1.msra.mxu0 0.0
  %154 = vmatprep.subr.mxu0 0.0
  %155 = vmatpush1.msra.mxu0 0.0
  %156 = vmatprep.subr.mxu0 0.0
  %157 = vmatpush1.msra.mxu0 0.0
  %158 = vmatprep.subr.mxu0 0.0
  %159 = vmatpush1.msra.mxu0 0.0
  %160 = vmatprep.subr.mxu0 0.0
  %161 = vmatpush1.msra.mxu0 0.0
  %162 = vmatprep.subr.mxu0 0.0
  %163 = vmatpush1.msra.mxu0 0.0
  %164 = vmatprep.subr.mxu0 0.0
  %165 = vmatpush1.msra.mxu0 0.0
  %166 = vmatprep.subr.mxu0 0.0
  %167 = vmatpush1.msra.mxu0 %v116
  %168 = vmatprep.subr.mxu0 0.0
  %169 = vmatpush1.msra.mxu0 %v115
  %170 = vmatprep.subr.mxu0 0.0
  %171 = vmatpush1.msra.mxu0 %v114
  %172 = vmatprep.subr.mxu0 0.0
  %173 = vmatpush1.msra.mxu0 %v113
  %174 = vmatprep.subr.mxu0 0.0
  %175 = vmatpush1.msra.mxu0 %v112
  %176 = vmatprep.subr.mxu0 0.0
  %177 = vmatpush1.msra.mxu0 %v111
  %178 = vmatprep.subr.mxu0 0.0
  %179 = vmatpush1.msra.mxu0 %v110
  %180 = vmatprep.subr.mxu0 0.0
  %181 = vmatpush1.msra.mxu0 %v109
  %182 = vmatprep.subr.mxu0 0.0
  %183 = vmatpush2.msra.mxu0 0.0
  %184 = vmatprep.subr.mxu0 0.0
  %185 = vmatpush2.msra.mxu0 0.0
  %186 = vmatprep.subr.mxu0 0.0
  %187 = vmatpush2.msra.mxu0 0.0
  %188 = vmatprep.subr.mxu0 0.0
  %189 = vmatpush2.msra.mxu0 0.0
  %190 = vmatprep.subr.mxu0 0.0
  %191 = vmatpush2.msra.mxu0 0.0
  %192 = vmatprep.subr.mxu0 0.0
  %193 = vmatpush2.msra.mxu0 0.0
  %194 = vmatprep.subr.mxu0 0.0
  %195 = vmatpush2.msra.mxu0 0.0
  %196 = vmatprep.subr.mxu0 0.0
  %197 = vmatpush2.msra.mxu0 0.0
  %198 = vmatprep.subr.mxu0 0.0
  %199 = vmatpush2.msra.mxu0 0.0
  %200 = vmatprep.subr.mxu0 0.0
  %201 = vmatpush2.msra.mxu0 0.0
  %202 = vmatprep.subr.mxu0 0.0
  %203 = vmatpush2.msra.mxu0 0.0
  %204 = vmatprep.subr.mxu0 0.0
  %205 = vmatpush2.msra.mxu0 0.0
  %206 = vmatprep.subr.mxu0 0.0
  %207 = vmatpush2.msra.mxu0 0.0
  %208 = vmatprep.subr.mxu0 0.0
  %209 = vmatpush2.msra.mxu0 0.0
  %210 = vmatprep.subr.mxu0 0.0
  %211 = vmatpush2.msra.mxu0 0.0
  %212 = vmatprep.subr.mxu0 0.0
  %213 = vmatpush2.msra.mxu0 0.0
  %214 = vmatprep.mubr.f32.mxu0 0.0
  %215 = vmatmul.mubr.f32.gmra.mxu0 %v127
  %v216 = vpop.f32.mrf.mxu0
  %v217 = vadd.f32 %v117, %v216
  %v218 = vpop.f32.mrf.mxu0
  %219 = vmatprep.mubr.f32.mxu0 0.0
  %220 = vmatmul.mubr.f32.gmra.mxu0 %v130
  %v221 = vpop.f32.mrf.mxu0
  %v222 = vadd.f32 %v118, %v221
  %v223 = vpop.f32.mrf.mxu0
  %224 = vmatprep.mubr.f32.mxu0 0.0
  %225 = vmatmul.mubr.f32.gmra.mxu0 %v133
  %v226 = vpop.f32.mrf.mxu0
  %v227 = vadd.f32 %v119, %v226
  %v228 = vpop.f32.mrf.mxu0
  %229 = vmatprep.mubr.f32.mxu0 0.0
  %230 = vmatmul.mubr.f32.gmra.mxu0 %v136
  %v231 = vpop.f32.mrf.mxu0
  %v232 = vadd.f32 %v120, %v231
  %v233 = vpop.f32.mrf.mxu0
  %234 = vmatprep.mubr.f32.mxu0 0.0
  %235 = vmatmul.mubr.f32.gmra.mxu0 %v139
  %v236 = vpop.f32.mrf.mxu0
  %v237 = vadd.f32 %v121, %v236
  %v238 = vpop.f32.mrf.mxu0
  %239 = vmatprep.mubr.f32.mxu0 0.0
  %240 = vmatmul.mubr.f32.gmra.mxu0 %v142
  %v241 = vpop.f32.mrf.mxu0
  %v242 = vadd.f32 %v122, %v241
  %v243 = vpop.f32.mrf.mxu0
  %244 = vmatprep.mubr.f32.mxu0 0.0
  %245 = vmatmul.mubr.f32.gmra.mxu0 %v145
  %v246 = vpop.f32.mrf.mxu0
  %v247 = vadd.f32 %v123, %v246
  %v248 = vpop.f32.mrf.mxu0
  %249 = vmatprep.mubr.f32.mxu0 0.0
  %250 = vmatmul.mubr.f32.gmra.mxu0 %v148
  %v251 = vpop.f32.mrf.mxu0
  %v252 = vadd.f32 %v124, %v251
  %v253 = vpop.f32.mrf.mxu0
  %254 = vdwg.mxu0
  %v255 = vld [vmem:[%s3] sm:$0xff]
  %v256 = vld [vmem:[%s3 + $0x8] sm:$0xff]
  %vm257 = vnez %v255
  %vm258 = vnez %v256
  %vm259 = vcmp.ne.s32.totalorder %v49, 0
  %v260 = vsel %vm259, 1, 0
  %v261 = vlaneseq
  %v262 = vshrl.u32 %v261, 7
  %v263 = vsub.s32 0, %v262
  %v264 = vrot.slane %v260, %v263
  %vm265 = vcmp.eq.s32.totalorder %v264, 1
  %vm266 = vmpackc.low %vm265, %vm265
  %vm267 = vmpackc.even %vm266, %vm266
  %v268 = vsel %vm267, 16843009, 0
  %v269 = vlaneseq
  %v270 = vshrl.u32 %v269, 7
  %v271 = vsub.s32 0, %v270
  %v272 = vrot.slane %v268, %v271
  %vm273 = vnez %v272
  %vm274 = vmand %vm257, %vm273
  %vm275 = vmand %vm258, %vm273
  %v276 = vld [vmem:[%s6] sm:$0xff]
  %v277 = vld [vmem:[%s6 + $0x8] sm:$0xff]
  %v278 = vld [vmem:[%s6 + $0x10] sm:$0xff]
  %v279 = vld [vmem:[%s6 + $0x18] sm:$0xff]
  %v280 = vld [vmem:[%s7] sm:$0x1]
  %v281 = vld [vmem:[%s8] sm:$0x1]
  %v283 = vlaneseq
  %v284 = vshrl.u32 %v283, 7
  %v285 = vsub.s32 0, %v284
  %v286 = vrot.slane %v280, %v285
  %vm288 = vcmask 261120
  %v290 = vsel %vm288, %v217, 0
  %v293 = vsel %vm288, %v222, 0
  %v296 = vsel %vm288, %v227, 0
  %v299 = vsel %vm288, %v232, 0
  %v302 = vsel %vm288, %v237, 0
  %v305 = vsel %vm288, %v242, 0
  %v308 = vsel %vm288, %v247, 0
  %v311 = vsel %vm288, %v252, 0
  %313 = vmatprep.subr.mxu0 0.0
  %314 = vmatpush1.msra.mxu0 0.0
  %315 = vmatprep.subr.mxu0 0.0
  %316 = vmatpush1.msra.mxu0 0.0
  %317 = vmatprep.subr.mxu0 0.0
  %318 = vmatpush1.msra.mxu0 0.0
  %319 = vmatprep.subr.mxu0 0.0
  %320 = vmatpush1.msra.mxu0 0.0
  %321 = vmatprep.subr.mxu0 0.0
  %322 = vmatpush1.msra.mxu0 0.0
  %323 = vmatprep.subr.mxu0 0.0
  %324 = vmatpush1.msra.mxu0 0.0
  %325 = vmatprep.subr.mxu0 0.0
  %326 = vmatpush1.msra.mxu0 0.0
  %327 = vmatprep.subr.mxu0 0.0
  %328 = vmatpush1.msra.mxu0 0.0
  %329 = vmatprep.subr.mxu0 0.0
  %330 = vmatpush1.msra.mxu0 0.0
  %331 = vmatprep.subr.mxu0 0.0
  %332 = vmatpush1.msra.mxu0 0.0
  %333 = vmatprep.subr.mxu0 0.0
  %334 = vmatpush1.msra.mxu0 0.0
  %335 = vmatprep.subr.mxu0 0.0
  %336 = vmatpush1.msra.mxu0 0.0
  %337 = vmatprep.subr.mxu0 0.0
  %338 = vmatpush1.msra.mxu0 %v279
  %339 = vmatprep.subr.mxu0 0.0
  %340 = vmatpush1.msra.mxu0 %v278
  %341 = vmatprep.subr.mxu0 0.0
  %342 = vmatpush1.msra.mxu0 %v277
  %343 = vmatprep.subr.mxu0 0.0
  %344 = vmatpush1.msra.mxu0 %v276
  %345 = vmatprep.subr.mxu0 0.0
  %346 = vmatpush2.msra.mxu0 0.0
  %347 = vmatprep.subr.mxu0 0.0
  %348 = vmatpush2.msra.mxu0 0.0
  %349 = vmatprep.subr.mxu0 0.0
  %350 = vmatpush2.msra.mxu0 0.0
  %351 = vmatprep.subr.mxu0 0.0
  %352 = vmatpush2.msra.mxu0 0.0
  %353 = vmatprep.subr.mxu0 0.0
  %354 = vmatpush2.msra.mxu0 0.0
  %355 = vmatprep.subr.mxu0 0.0
  %356 = vmatpush2.msra.mxu0 0.0
  %357 = vmatprep.subr.mxu0 0.0
  %358 = vmatpush2.msra.mxu0 0.0
  %359 = vmatprep.subr.mxu0 0.0
  %360 = vmatpush2.msra.mxu0 0.0
  %361 = vmatprep.subr.mxu0 0.0
  %362 = vmatpush2.msra.mxu0 0.0
  %363 = vmatprep.subr.mxu0 0.0
  %364 = vmatpush2.msra.mxu0 0.0
  %365 = vmatprep.subr.mxu0 0.0
  %366 = vmatpush2.msra.mxu0 0.0
  %367 = vmatprep.subr.mxu0 0.0
  %368 = vmatpush2.msra.mxu0 0.0
  %369 = vmatprep.subr.mxu0 0.0
  %370 = vmatpush2.msra.mxu0 0.0
  %371 = vmatprep.subr.mxu0 0.0
  %372 = vmatpush2.msra.mxu0 0.0
  %373 = vmatprep.subr.mxu0 0.0
  %374 = vmatpush2.msra.mxu0 0.0
  %375 = vmatprep.subr.mxu0 0.0
  %376 = vmatpush2.msra.mxu0 0.0
  %377 = vmatprep.mubr.f32.mxu0 0.0
  %378 = vmatmul.mubr.f32.gmra.mxu0 %v290
  %v379 = vpop.f32.mrf.mxu0
  %v380 = vadd.f32 %v286, %v379
  %v381 = vpop.f32.mrf.mxu0
  %382 = vmatprep.mubr.f32.mxu0 0.0
  %383 = vmatmul.mubr.f32.gmra.mxu0 %v293
  %v384 = vpop.f32.mrf.mxu0
  %v385 = vadd.f32 %v286, %v384
  %v386 = vpop.f32.mrf.mxu0
  %387 = vmatprep.mubr.f32.mxu0 0.0
  %388 = vmatmul.mubr.f32.gmra.mxu0 %v296
  %v389 = vpop.f32.mrf.mxu0
  %v390 = vadd.f32 %v286, %v389
  %v391 = vpop.f32.mrf.mxu0
  %392 = vmatprep.mubr.f32.mxu0 0.0
  %393 = vmatmul.mubr.f32.gmra.mxu0 %v299
  %v394 = vpop.f32.mrf.mxu0
  %v395 = vadd.f32 %v286, %v394
  %v396 = vpop.f32.mrf.mxu0
  %397 = vmatprep.mubr.f32.mxu0 0.0
  %398 = vmatmul.mubr.f32.gmra.mxu0 %v302
  %v399 = vpop.f32.mrf.mxu0
  %v400 = vadd.f32 %v286, %v399
  %v401 = vpop.f32.mrf.mxu0
  %402 = vmatprep.mubr.f32.mxu0 0.0
  %403 = vmatmul.mubr.f32.gmra.mxu0 %v305
  %v404 = vpop.f32.mrf.mxu0
  %v405 = vadd.f32 %v286, %v404
  %v406 = vpop.f32.mrf.mxu0
  %407 = vmatprep.mubr.f32.mxu0 0.0
  %408 = vmatmul.mubr.f32.gmra.mxu0 %v308
  %v409 = vpop.f32.mrf.mxu0
  %v410 = vadd.f32 %v286, %v409
  %v411 = vpop.f32.mrf.mxu0
  %412 = vmatprep.mubr.f32.mxu0 0.0
  %413 = vmatmul.mubr.f32.gmra.mxu0 %v311
  %v414 = vpop.f32.mrf.mxu0
  %v415 = vadd.f32 %v286, %v414
  %v416 = vpop.f32.mrf.mxu0
  %417 = vdwg.mxu0
  %426 = vrot.lane.b32.xlu0 %v380, 96
  %v427 = vpop.permute.xlu0 %426
  %428 = vrot.lane.b32.xlu0 %v385, 96
  %v429 = vpop.permute.xlu0 %428
  %430 = vrot.lane.b32.xlu0 %v390, 96
  %v431 = vpop.permute.xlu0 %430
  %432 = vrot.lane.b32.xlu0 %v395, 96
  %v433 = vpop.permute.xlu0 %432
  %434 = vrot.lane.b32.xlu0 %v400, 96
  %v435 = vpop.permute.xlu0 %434
  %436 = vrot.lane.b32.xlu0 %v405, 96
  %v437 = vpop.permute.xlu0 %436
  %438 = vrot.lane.b32.xlu0 %v410, 96
  %v439 = vpop.permute.xlu0 %438
  %440 = vrot.lane.b32.xlu0 %v415, 96
  %v441 = vpop.permute.xlu0 %440
  %vm442 = vcmask 130048
  %v443 = vsel %vm442, %v380, 0
  %v445 = vsel %vm442, %v385, 0
  %v447 = vsel %vm442, %v390, 0
  %v449 = vsel %vm442, %v395, 0
  %v451 = vsel %vm442, %v400, 0
  %v453 = vsel %vm442, %v405, 0
  %v455 = vsel %vm442, %v410, 0
  %v457 = vsel %vm442, %v415, 0
  %v459 = vsel %vm442, %v427, 0
  %v461 = vsel %vm442, %v429, 0
  %v463 = vsel %vm442, %v431, 0
  %v465 = vsel %vm442, %v433, 0
  %v467 = vsel %vm442, %v435, 0
  %v469 = vsel %vm442, %v437, 0
  %v471 = vsel %vm442, %v439, 0
  %v473 = vsel %vm442, %v441, 0
  %475 = vmatprep.subr.mxu0 0.0
  %476 = vmatpush1.xpose.msra.mxu0 0.0
  %477 = vmatprep.subr.mxu0 0.0
  %478 = vmatpush1.xpose.msra.mxu0 0.0
  %479 = vmatprep.subr.mxu0 0.0
  %480 = vmatpush1.xpose.msra.mxu0 0.0
  %481 = vmatprep.subr.mxu0 0.0
  %482 = vmatpush1.xpose.msra.mxu0 0.0
  %483 = vmatprep.subr.mxu0 0.0
  %484 = vmatpush1.xpose.msra.mxu0 0.0
  %485 = vmatprep.subr.mxu0 0.0
  %486 = vmatpush1.xpose.msra.mxu0 0.0
  %487 = vmatprep.subr.mxu0 0.0
  %488 = vmatpush1.xpose.msra.mxu0 0.0
  %489 = vmatprep.subr.mxu0 0.0
  %490 = vmatpush1.xpose.msra.mxu0 0.0
  %491 = vmatprep.subr.mxu0 0.0
  %492 = vmatpush1.xpose.msra.mxu0 %v473
  %493 = vmatprep.subr.mxu0 0.0
  %494 = vmatpush1.xpose.msra.mxu0 %v471
  %495 = vmatprep.subr.mxu0 0.0
  %496 = vmatpush1.xpose.msra.mxu0 %v469
  %497 = vmatprep.subr.mxu0 0.0
  %498 = vmatpush1.xpose.msra.mxu0 %v467
  %499 = vmatprep.subr.mxu0 0.0
  %500 = vmatpush1.xpose.msra.mxu0 %v465
  %501 = vmatprep.subr.mxu0 0.0
  %502 = vmatpush1.xpose.msra.mxu0 %v463
  %503 = vmatprep.subr.mxu0 0.0
  %504 = vmatpush1.xpose.msra.mxu0 %v461
  %505 = vmatprep.subr.mxu0 0.0
  %506 = vmatpush1.xpose.msra.mxu0 %v459
  %507 = vmatprep.subr.mxu0 0.0
  %508 = vmatpush2.xpose.msra.mxu0 0.0
  %509 = vmatprep.subr.mxu0 0.0
  %510 = vmatpush2.xpose.msra.mxu0 0.0
  %511 = vmatprep.subr.mxu0 0.0
  %512 = vmatpush2.xpose.msra.mxu0 0.0
  %513 = vmatprep.subr.mxu0 0.0
  %514 = vmatpush2.xpose.msra.mxu0 0.0
  %515 = vmatprep.subr.mxu0 0.0
  %516 = vmatpush2.xpose.msra.mxu0 0.0
  %517 = vmatprep.subr.mxu0 0.0
  %518 = vmatpush2.xpose.msra.mxu0 0.0
  %519 = vmatprep.subr.mxu0 0.0
  %520 = vmatpush2.xpose.msra.mxu0 0.0
  %521 = vmatprep.subr.mxu0 0.0
  %522 = vmatpush2.xpose.msra.mxu0 0.0
  %523 = vmatprep.subr.mxu0 0.0
  %524 = vmatpush2.xpose.msra.mxu0 0.0
  %525 = vmatprep.subr.mxu0 0.0
  %526 = vmatpush2.xpose.msra.mxu0 0.0
  %527 = vmatprep.subr.mxu0 0.0
  %528 = vmatpush2.xpose.msra.mxu0 0.0
  %529 = vmatprep.subr.mxu0 0.0
  %530 = vmatpush2.xpose.msra.mxu0 0.0
  %531 = vmatprep.subr.mxu0 0.0
  %532 = vmatpush2.xpose.msra.mxu0 0.0
  %533 = vmatprep.subr.mxu0 0.0
  %534 = vmatpush2.xpose.msra.mxu0 0.0
  %535 = vmatprep.subr.mxu0 0.0
  %536 = vmatpush2.xpose.msra.mxu0 0.0
  %537 = vmatprep.subr.mxu0 0.0
  %538 = vmatpush2.xpose.msra.mxu0 0.0
  %539 = vmatprep.mubr.f32.mxu0 0.0
  %540 = vmatmul.mubr.f32.gmra.mxu0 %v443
  %v541 = vpop.f32.mrf.mxu0
  %v542 = vadd.f32 0.0, %v541
  %v543 = vpop.f32.mrf.mxu0
  %544 = vmatprep.mubr.f32.mxu0 0.0
  %545 = vmatmul.mubr.f32.gmra.mxu0 %v445
  %v546 = vpop.f32.mrf.mxu0
  %v547 = vadd.f32 0.0, %v546
  %v548 = vpop.f32.mrf.mxu0
  %549 = vmatprep.mubr.f32.mxu0 0.0
  %550 = vmatmul.mubr.f32.gmra.mxu0 %v447
  %v551 = vpop.f32.mrf.mxu0
  %v552 = vadd.f32 0.0, %v551
  %v553 = vpop.f32.mrf.mxu0
  %554 = vmatprep.mubr.f32.mxu0 0.0
  %555 = vmatmul.mubr.f32.gmra.mxu0 %v449
  %v556 = vpop.f32.mrf.mxu0
  %v557 = vadd.f32 0.0, %v556
  %v558 = vpop.f32.mrf.mxu0
  %559 = vmatprep.mubr.f32.mxu0 0.0
  %560 = vmatmul.mubr.f32.gmra.mxu0 %v451
  %v561 = vpop.f32.mrf.mxu0
  %v562 = vadd.f32 0.0, %v561
  %v563 = vpop.f32.mrf.mxu0
  %564 = vmatprep.mubr.f32.mxu0 0.0
  %565 = vmatmul.mubr.f32.gmra.mxu0 %v453
  %v566 = vpop.f32.mrf.mxu0
  %v567 = vadd.f32 0.0, %v566
  %v568 = vpop.f32.mrf.mxu0
  %569 = vmatprep.mubr.f32.mxu0 0.0
  %570 = vmatmul.mubr.f32.gmra.mxu0 %v455
  %v571 = vpop.f32.mrf.mxu0
  %v572 = vadd.f32 0.0, %v571
  %v573 = vpop.f32.mrf.mxu0
  %574 = vmatprep.mubr.f32.mxu0 0.0
  %575 = vmatmul.mubr.f32.gmra.mxu0 %v457
  %v576 = vpop.f32.mrf.mxu0
  %v577 = vadd.f32 0.0, %v576
  %v578 = vpop.f32.mrf.mxu0
  %579 = vdwg.mxu0
  %v580 = vsel %vm274, 16843009, 0
  %v581 = vsel %vm275, 16843009, 0
  %v582 = vunpack.c.0.s8 %v580
  %v583 = vunpack.c.1.s8 %v580
  %v584 = vunpack.c.2.s8 %v580
  %v585 = vunpack.c.3.s8 %v580
  %v586 = vunpack.c.0.s8 %v581
  %v587 = vunpack.c.1.s8 %v581
  %v588 = vunpack.c.2.s8 %v581
  %v589 = vunpack.c.3.s8 %v581
  %v590 = vpack.c.b16 %v582, %v582
  %v591 = vpack.c.b8 %v590, %v590
  %v592 = vpack.c.b16 %v583, %v583
  %v593 = vpack.c.b8 %v592, %v592
  %v594 = vpack.c.b16 %v584, %v584
  %v595 = vpack.c.b8 %v594, %v594
  %v596 = vpack.c.b16 %v585, %v585
  %v597 = vpack.c.b8 %v596, %v596
  %v598 = vpack.c.b16 %v586, %v586
  %v599 = vpack.c.b8 %v598, %v598
  %v600 = vpack.c.b16 %v587, %v587
  %v601 = vpack.c.b8 %v600, %v600
  %v602 = vpack.c.b16 %v588, %v588
  %v603 = vpack.c.b8 %v602, %v602
  %v604 = vpack.c.b16 %v589, %v589
  %v605 = vpack.c.b8 %v604, %v604
  %vm606 = vnez %v591
  %vm607 = vnez %v593
  %vm608 = vnez %v595
  %vm609 = vnez %v597
  %vm610 = vnez %v599
  %vm611 = vnez %v601
  %vm612 = vnez %v603
  %vm613 = vnez %v605
  %v614 = vsel %vm606, 16843009, 0
  %v615 = vsel %vm607, 16843009, 0
  %v616 = vsel %vm608, 16843009, 0
  %v617 = vsel %vm609, 16843009, 0
  %v618 = vsel %vm610, 16843009, 0
  %v619 = vsel %vm611, 16843009, 0
  %v620 = vsel %vm612, 16843009, 0
  %v621 = vsel %vm613, 16843009, 0
  %v622 = vunpack.c.0.s8 %v614
  %v623 = vunpack.c.0.s8 %v615
  %v624 = vunpack.c.0.s8 %v616
  %v625 = vunpack.c.0.s8 %v617
  %v626 = vunpack.c.0.s8 %v618
  %v627 = vunpack.c.0.s8 %v619
  %v628 = vunpack.c.0.s8 %v620
  %v629 = vunpack.c.0.s8 %v621
  %vm630 = vcmp.ne.s32.totalorder %v622, 0
  %vm631 = vcmp.ne.s32.totalorder %v623, 0
  %vm632 = vcmp.ne.s32.totalorder %v624, 0
  %vm633 = vcmp.ne.s32.totalorder %v625, 0
  %vm634 = vcmp.ne.s32.totalorder %v626, 0
  %vm635 = vcmp.ne.s32.totalorder %v627, 0
  %vm636 = vcmp.ne.s32.totalorder %v628, 0
  %vm637 = vcmp.ne.s32.totalorder %v629, 0
  %v638 = vsel %vm630, %v542, -1e+09
  %v639 = vsel %vm631, %v547, -1e+09
  %v640 = vsel %vm632, %v552, -1e+09
  %v641 = vsel %vm633, %v557, -1e+09
  %v642 = vsel %vm634, %v562, -1e+09
  %v643 = vsel %vm635, %v567, -1e+09
  %v644 = vsel %vm636, %v572, -1e+09
  %v645 = vsel %vm637, %v577, -1e+09
  %v646 = vsel %vm125, %v638, -inf
  %647 = vmax.xlane.f32.xlu0 %v646
  %v648 = vpop.xlane.xlu0 %647
  %v649 = vsel %vm125, %v639, -inf
  %650 = vmax.xlane.f32.xlu0 %v649
  %v651 = vpop.xlane.xlu0 %650
  %v652 = vsel %vm125, %v640, -inf
  %653 = vmax.xlane.f32.xlu0 %v652
  %v654 = vpop.xlane.xlu0 %653
  %v655 = vsel %vm125, %v641, -inf
  %656 = vmax.xlane.f32.xlu0 %v655
  %v657 = vpop.xlane.xlu0 %656
  %v658 = vsel %vm125, %v642, -inf
  %659 = vmax.xlane.f32.xlu0 %v658
  %v660 = vpop.xlane.xlu0 %659
  %v661 = vsel %vm125, %v643, -inf
  %662 = vmax.xlane.f32.xlu0 %v661
  %v663 = vpop.xlane.xlu0 %662
  %v664 = vsel %vm125, %v644, -inf
  %665 = vmax.xlane.f32.xlu0 %v664
  %v666 = vpop.xlane.xlu0 %665
  %v667 = vsel %vm125, %v645, -inf
  %668 = vmax.xlane.f32.xlu0 %v667
  %v669 = vpop.xlane.xlu0 %668
  %v670 = vsub.f32 %v638, %v648
  %v671 = vsub.f32 %v639, %v651
  %v672 = vsub.f32 %v640, %v654
  %v673 = vsub.f32 %v641, %v657
  %v674 = vsub.f32 %v642, %v660
  %v675 = vsub.f32 %v643, %v663
  %v676 = vsub.f32 %v644, %v666
  %v677 = vsub.f32 %v645, %v669
  %v678 = vmul.f32 %v670, 1.442695
  %v679 = vpow.pop %v678
  %v680 = vmul.f32 %v671, 1.442695
  %v681 = vpow.pop %v680
  %v682 = vmul.f32 %v672, 1.442695
  %v683 = vpow.pop %v682
  %v684 = vmul.f32 %v673, 1.442695
  %v685 = vpow.pop %v684
  %v686 = vmul.f32 %v674, 1.442695
  %v687 = vpow.pop %v686
  %v688 = vmul.f32 %v675, 1.442695
  %v689 = vpow.pop %v688
  %v690 = vmul.f32 %v676, 1.442695
  %v691 = vpow.pop %v690
  %v692 = vmul.f32 %v677, 1.442695
  %v693 = vpow.pop %v692
  %v694 = vsel %vm125, %v679, 0.0
  %695 = vadd.xlane.f32.xlu0 %v694
  %v696 = vpop.xlane.xlu0 %695
  %v697 = vsel %vm125, %v681, 0.0
  %698 = vadd.xlane.f32.xlu0 %v697
  %v699 = vpop.xlane.xlu0 %698
  %v700 = vsel %vm125, %v683, 0.0
  %701 = vadd.xlane.f32.xlu0 %v700
  %v702 = vpop.xlane.xlu0 %701
  %v703 = vsel %vm125, %v685, 0.0
  %704 = vadd.xlane.f32.xlu0 %v703
  %v705 = vpop.xlane.xlu0 %704
  %v706 = vsel %vm125, %v687, 0.0
  %707 = vadd.xlane.f32.xlu0 %v706
  %v708 = vpop.xlane.xlu0 %707
  %v709 = vsel %vm125, %v689, 0.0
  %710 = vadd.xlane.f32.xlu0 %v709
  %v711 = vpop.xlane.xlu0 %710
  %v712 = vsel %vm125, %v691, 0.0
  %713 = vadd.xlane.f32.xlu0 %v712
  %v714 = vpop.xlane.xlu0 %713
  %v715 = vsel %vm125, %v693, 0.0
  %716 = vadd.xlane.f32.xlu0 %v715
  %v717 = vpop.xlane.xlu0 %716
  %v718 = vrcp.pop %v696
  %v719 = vrcp.pop %v699
  %v720 = vrcp.pop %v702
  %v721 = vrcp.pop %v705
  %v722 = vrcp.pop %v708
  %v723 = vrcp.pop %v711
  %v724 = vrcp.pop %v714
  %v725 = vrcp.pop %v717
  %v726 = vmul.f32 %v679, %v718
  %v727 = vmul.f32 %v681, %v719
  %v728 = vmul.f32 %v683, %v720
  %v729 = vmul.f32 %v685, %v721
  %v730 = vmul.f32 %v687, %v722
  %v731 = vmul.f32 %v689, %v723
  %v732 = vmul.f32 %v691, %v724
  %v733 = vmul.f32 %v693, %v725
  %734 = vrot.lane.b32.xlu0 %v380, 64
  %v735 = vpop.permute.xlu0 %734
  %736 = vrot.lane.b32.xlu0 %v385, 64
  %v737 = vpop.permute.xlu0 %736
  %738 = vrot.lane.b32.xlu0 %v390, 64
  %v739 = vpop.permute.xlu0 %738
  %740 = vrot.lane.b32.xlu0 %v395, 64
  %v741 = vpop.permute.xlu0 %740
  %742 = vrot.lane.b32.xlu0 %v400, 64
  %v743 = vpop.permute.xlu0 %742
  %744 = vrot.lane.b32.xlu0 %v405, 64
  %v745 = vpop.permute.xlu0 %744
  %746 = vrot.lane.b32.xlu0 %v410, 64
  %v747 = vpop.permute.xlu0 %746
  %748 = vrot.lane.b32.xlu0 %v415, 64
  %v749 = vpop.permute.xlu0 %748
  %v759 = vsel %vm125, %v726, 0
  %v762 = vsel %vm125, %v727, 0
  %v765 = vsel %vm125, %v728, 0
  %v768 = vsel %vm125, %v729, 0
  %v771 = vsel %vm125, %v730, 0
  %v774 = vsel %vm125, %v731, 0
  %v777 = vsel %vm125, %v732, 0
  %v780 = vsel %vm125, %v733, 0
  %782 = vmatprep.subr.mxu0 0.0
  %783 = vmatpush1.msra.mxu0 0.0
  %784 = vmatprep.subr.mxu0 0.0
  %785 = vmatpush1.msra.mxu0 0.0
  %786 = vmatprep.subr.mxu0 0.0
  %787 = vmatpush1.msra.mxu0 0.0
  %788 = vmatprep.subr.mxu0 0.0
  %789 = vmatpush1.msra.mxu0 0.0
  %790 = vmatprep.subr.mxu0 0.0
  %791 = vmatpush1.msra.mxu0 0.0
  %792 = vmatprep.subr.mxu0 0.0
  %793 = vmatpush1.msra.mxu0 0.0
  %794 = vmatprep.subr.mxu0 0.0
  %795 = vmatpush1.msra.mxu0 0.0
  %796 = vmatprep.subr.mxu0 0.0
  %797 = vmatpush1.msra.mxu0 0.0
  %798 = vmatprep.subr.mxu0 0.0
  %799 = vmatpush1.msra.mxu0 %v749
  %800 = vmatprep.subr.mxu0 0.0
  %801 = vmatpush1.msra.mxu0 %v747
  %802 = vmatprep.subr.mxu0 0.0
  %803 = vmatpush1.msra.mxu0 %v745
  %804 = vmatprep.subr.mxu0 0.0
  %805 = vmatpush1.msra.mxu0 %v743
  %806 = vmatprep.subr.mxu0 0.0
  %807 = vmatpush1.msra.mxu0 %v741
  %808 = vmatprep.subr.mxu0 0.0
  %809 = vmatpush1.msra.mxu0 %v739
  %810 = vmatprep.subr.mxu0 0.0
  %811 = vmatpush1.msra.mxu0 %v737
  %812 = vmatprep.subr.mxu0 0.0
  %813 = vmatpush1.msra.mxu0 %v735
  %814 = vmatprep.subr.mxu0 0.0
  %815 = vmatpush2.msra.mxu0 0.0
  %816 = vmatprep.subr.mxu0 0.0
  %817 = vmatpush2.msra.mxu0 0.0
  %818 = vmatprep.subr.mxu0 0.0
  %819 = vmatpush2.msra.mxu0 0.0
  %820 = vmatprep.subr.mxu0 0.0
  %821 = vmatpush2.msra.mxu0 0.0
  %822 = vmatprep.subr.mxu0 0.0
  %823 = vmatpush2.msra.mxu0 0.0
  %824 = vmatprep.subr.mxu0 0.0
  %825 = vmatpush2.msra.mxu0 0.0
  %826 = vmatprep.subr.mxu0 0.0
  %827 = vmatpush2.msra.mxu0 0.0
  %828 = vmatprep.subr.mxu0 0.0
  %829 = vmatpush2.msra.mxu0 0.0
  %830 = vmatprep.subr.mxu0 0.0
  %831 = vmatpush2.msra.mxu0 0.0
  %832 = vmatprep.subr.mxu0 0.0
  %833 = vmatpush2.msra.mxu0 0.0
  %834 = vmatprep.subr.mxu0 0.0
  %835 = vmatpush2.msra.mxu0 0.0
  %836 = vmatprep.subr.mxu0 0.0
  %837 = vmatpush2.msra.mxu0 0.0
  %838 = vmatprep.subr.mxu0 0.0
  %839 = vmatpush2.msra.mxu0 0.0
  %840 = vmatprep.subr.mxu0 0.0
  %841 = vmatpush2.msra.mxu0 0.0
  %842 = vmatprep.subr.mxu0 0.0
  %843 = vmatpush2.msra.mxu0 0.0
  %844 = vmatprep.subr.mxu0 0.0
  %845 = vmatpush2.msra.mxu0 0.0
  %846 = vmatprep.mubr.f32.mxu0 0.0
  %847 = vmatmul.mubr.f32.gmra.mxu0 %v759
  %v848 = vpop.f32.mrf.mxu0
  %v849 = vadd.f32 0.0, %v848
  %v850 = vpop.f32.mrf.mxu0
  %851 = vmatprep.mubr.f32.mxu0 0.0
  %852 = vmatmul.mubr.f32.gmra.mxu0 %v762
  %v853 = vpop.f32.mrf.mxu0
  %v854 = vadd.f32 0.0, %v853
  %v855 = vpop.f32.mrf.mxu0
  %856 = vmatprep.mubr.f32.mxu0 0.0
  %857 = vmatmul.mubr.f32.gmra.mxu0 %v765
  %v858 = vpop.f32.mrf.mxu0
  %v859 = vadd.f32 0.0, %v858
  %v860 = vpop.f32.mrf.mxu0
  %861 = vmatprep.mubr.f32.mxu0 0.0
  %862 = vmatmul.mubr.f32.gmra.mxu0 %v768
  %v863 = vpop.f32.mrf.mxu0
  %v864 = vadd.f32 0.0, %v863
  %v865 = vpop.f32.mrf.mxu0
  %866 = vmatprep.mubr.f32.mxu0 0.0
  %867 = vmatmul.mubr.f32.gmra.mxu0 %v771
  %v868 = vpop.f32.mrf.mxu0
  %v869 = vadd.f32 0.0, %v868
  %v870 = vpop.f32.mrf.mxu0
  %871 = vmatprep.mubr.f32.mxu0 0.0
  %872 = vmatmul.mubr.f32.gmra.mxu0 %v774
  %v873 = vpop.f32.mrf.mxu0
  %v874 = vadd.f32 0.0, %v873
  %v875 = vpop.f32.mrf.mxu0
  %876 = vmatprep.mubr.f32.mxu0 0.0
  %877 = vmatmul.mubr.f32.gmra.mxu0 %v777
  %v878 = vpop.f32.mrf.mxu0
  %v879 = vadd.f32 0.0, %v878
  %v880 = vpop.f32.mrf.mxu0
  %881 = vmatprep.mubr.f32.mxu0 0.0
  %882 = vmatmul.mubr.f32.gmra.mxu0 %v780
  %v883 = vpop.f32.mrf.mxu0
  %v884 = vadd.f32 0.0, %v883
  %v885 = vpop.f32.mrf.mxu0
  %886 = vdwg.mxu0
  %887 = vrot.lane.b32.xlu0 %v380, 112
  %v888 = vpop.permute.xlu0 %887
  %889 = vrot.lane.b32.xlu0 %v385, 112
  %v890 = vpop.permute.xlu0 %889
  %891 = vrot.lane.b32.xlu0 %v390, 112
  %v892 = vpop.permute.xlu0 %891
  %893 = vrot.lane.b32.xlu0 %v395, 112
  %v894 = vpop.permute.xlu0 %893
  %895 = vrot.lane.b32.xlu0 %v400, 112
  %v896 = vpop.permute.xlu0 %895
  %897 = vrot.lane.b32.xlu0 %v405, 112
  %v898 = vpop.permute.xlu0 %897
  %899 = vrot.lane.b32.xlu0 %v410, 112
  %v900 = vpop.permute.xlu0 %899
  %901 = vrot.lane.b32.xlu0 %v415, 112
  %v902 = vpop.permute.xlu0 %901
  %903 = vrot.lane.b32.xlu0 %v380, 80
  %v904 = vpop.permute.xlu0 %903
  %905 = vrot.lane.b32.xlu0 %v385, 80
  %v906 = vpop.permute.xlu0 %905
  %907 = vrot.lane.b32.xlu0 %v390, 80
  %v908 = vpop.permute.xlu0 %907
  %909 = vrot.lane.b32.xlu0 %v395, 80
  %v910 = vpop.permute.xlu0 %909
  %911 = vrot.lane.b32.xlu0 %v400, 80
  %v912 = vpop.permute.xlu0 %911
  %913 = vrot.lane.b32.xlu0 %v405, 80
  %v914 = vpop.permute.xlu0 %913
  %915 = vrot.lane.b32.xlu0 %v410, 80
  %v916 = vpop.permute.xlu0 %915
  %917 = vrot.lane.b32.xlu0 %v415, 80
  %v918 = vpop.permute.xlu0 %917
  %v919 = vsel %vm442, %v888, 0
  %v921 = vsel %vm442, %v890, 0
  %v923 = vsel %vm442, %v892, 0
  %v925 = vsel %vm442, %v894, 0
  %v927 = vsel %vm442, %v896, 0
  %v929 = vsel %vm442, %v898, 0
  %v931 = vsel %vm442, %v900, 0
  %v933 = vsel %vm442, %v902, 0
  %v935 = vsel %vm442, %v904, 0
  %v937 = vsel %vm442, %v906, 0
  %v939 = vsel %vm442, %v908, 0
  %v941 = vsel %vm442, %v910, 0
  %v943 = vsel %vm442, %v912, 0
  %v945 = vsel %vm442, %v914, 0
  %v947 = vsel %vm442, %v916, 0
  %v949 = vsel %vm442, %v918, 0
  %951 = vmatprep.subr.mxu0 0.0
  %952 = vmatpush1.xpose.msra.mxu0 0.0
  %953 = vmatprep.subr.mxu0 0.0
  %954 = vmatpush1.xpose.msra.mxu0 0.0
  %955 = vmatprep.subr.mxu0 0.0
  %956 = vmatpush1.xpose.msra.mxu0 0.0
  %957 = vmatprep.subr.mxu0 0.0
  %958 = vmatpush1.xpose.msra.mxu0 0.0
  %959 = vmatprep.subr.mxu0 0.0
  %960 = vmatpush1.xpose.msra.mxu0 0.0
  %961 = vmatprep.subr.mxu0 0.0
  %962 = vmatpush1.xpose.msra.mxu0 0.0
  %963 = vmatprep.subr.mxu0 0.0
  %964 = vmatpush1.xpose.msra.mxu0 0.0
  %965 = vmatprep.subr.mxu0 0.0
  %966 = vmatpush1.xpose.msra.mxu0 0.0
  %967 = vmatprep.subr.mxu0 0.0
  %968 = vmatpush1.xpose.msra.mxu0 %v949
  %969 = vmatprep.subr.mxu0 0.0
  %970 = vmatpush1.xpose.msra.mxu0 %v947
  %971 = vmatprep.subr.mxu0 0.0
  %972 = vmatpush1.xpose.msra.mxu0 %v945
  %973 = vmatprep.subr.mxu0 0.0
  %974 = vmatpush1.xpose.msra.mxu0 %v943
  %975 = vmatprep.subr.mxu0 0.0
  %976 = vmatpush1.xpose.msra.mxu0 %v941
  %977 = vmatprep.subr.mxu0 0.0
  %978 = vmatpush1.xpose.msra.mxu0 %v939
  %979 = vmatprep.subr.mxu0 0.0
  %980 = vmatpush1.xpose.msra.mxu0 %v937
  %981 = vmatprep.subr.mxu0 0.0
  %982 = vmatpush1.xpose.msra.mxu0 %v935
  %983 = vmatprep.subr.mxu0 0.0
  %984 = vmatpush2.xpose.msra.mxu0 0.0
  %985 = vmatprep.subr.mxu0 0.0
  %986 = vmatpush2.xpose.msra.mxu0 0.0
  %987 = vmatprep.subr.mxu0 0.0
  %988 = vmatpush2.xpose.msra.mxu0 0.0
  %989 = vmatprep.subr.mxu0 0.0
  %990 = vmatpush2.xpose.msra.mxu0 0.0
  %991 = vmatprep.subr.mxu0 0.0
  %992 = vmatpush2.xpose.msra.mxu0 0.0
  %993 = vmatprep.subr.mxu0 0.0
  %994 = vmatpush2.xpose.msra.mxu0 0.0
  %995 = vmatprep.subr.mxu0 0.0
  %996 = vmatpush2.xpose.msra.mxu0 0.0
  %997 = vmatprep.subr.mxu0 0.0
  %998 = vmatpush2.xpose.msra.mxu0 0.0
  %999 = vmatprep.subr.mxu0 0.0
  %1000 = vmatpush2.xpose.msra.mxu0 0.0
  %1001 = vmatprep.subr.mxu0 0.0
  %1002 = vmatpush2.xpose.msra.mxu0 0.0
  %1003 = vmatprep.subr.mxu0 0.0
  %1004 = vmatpush2.xpose.msra.mxu0 0.0
  %1005 = vmatprep.subr.mxu0 0.0
  %1006 = vmatpush2.xpose.msra.mxu0 0.0
  %1007 = vmatprep.subr.mxu0 0.0
  %1008 = vmatpush2.xpose.msra.mxu0 0.0
  %1009 = vmatprep.subr.mxu0 0.0
  %1010 = vmatpush2.xpose.msra.mxu0 0.0
  %1011 = vmatprep.subr.mxu0 0.0
  %1012 = vmatpush2.xpose.msra.mxu0 0.0
  %1013 = vmatprep.subr.mxu0 0.0
  %1014 = vmatpush2.xpose.msra.mxu0 0.0
  %1015 = vmatprep.mubr.f32.mxu0 0.0
  %1016 = vmatmul.mubr.f32.gmra.mxu0 %v919
  %v1017 = vpop.f32.mrf.mxu0
  %v1018 = vadd.f32 0.0, %v1017
  %v1019 = vpop.f32.mrf.mxu0
  %1020 = vmatprep.mubr.f32.mxu0 0.0
  %1021 = vmatmul.mubr.f32.gmra.mxu0 %v921
  %v1022 = vpop.f32.mrf.mxu0
  %v1023 = vadd.f32 0.0, %v1022
  %v1024 = vpop.f32.mrf.mxu0
  %1025 = vmatprep.mubr.f32.mxu0 0.0
  %1026 = vmatmul.mubr.f32.gmra.mxu0 %v923
  %v1027 = vpop.f32.mrf.mxu0
  %v1028 = vadd.f32 0.0, %v1027
  %v1029 = vpop.f32.mrf.mxu0
  %1030 = vmatprep.mubr.f32.mxu0 0.0
  %1031 = vmatmul.mubr.f32.gmra.mxu0 %v925
  %v1032 = vpop.f32.mrf.mxu0
  %v1033 = vadd.f32 0.0, %v1032
  %v1034 = vpop.f32.mrf.mxu0
  %1035 = vmatprep.mubr.f32.mxu0 0.0
  %1036 = vmatmul.mubr.f32.gmra.mxu0 %v927
  %v1037 = vpop.f32.mrf.mxu0
  %v1038 = vadd.f32 0.0, %v1037
  %v1039 = vpop.f32.mrf.mxu0
  %1040 = vmatprep.mubr.f32.mxu0 0.0
  %1041 = vmatmul.mubr.f32.gmra.mxu0 %v929
  %v1042 = vpop.f32.mrf.mxu0
  %v1043 = vadd.f32 0.0, %v1042
  %v1044 = vpop.f32.mrf.mxu0
  %1045 = vmatprep.mubr.f32.mxu0 0.0
  %1046 = vmatmul.mubr.f32.gmra.mxu0 %v931
  %v1047 = vpop.f32.mrf.mxu0
  %v1048 = vadd.f32 0.0, %v1047
  %v1049 = vpop.f32.mrf.mxu0
  %1050 = vmatprep.mubr.f32.mxu0 0.0
  %1051 = vmatmul.mubr.f32.gmra.mxu0 %v933
  %v1052 = vpop.f32.mrf.mxu0
  %v1053 = vadd.f32 0.0, %v1052
  %v1054 = vpop.f32.mrf.mxu0
  %1055 = vdwg.mxu0
  %v1056 = vsel %vm630, %v1018, -1e+09
  %v1057 = vsel %vm631, %v1023, -1e+09
  %v1058 = vsel %vm632, %v1028, -1e+09
  %v1059 = vsel %vm633, %v1033, -1e+09
  %v1060 = vsel %vm634, %v1038, -1e+09
  %v1061 = vsel %vm635, %v1043, -1e+09
  %v1062 = vsel %vm636, %v1048, -1e+09
  %v1063 = vsel %vm637, %v1053, -1e+09
  %v1064 = vsel %vm125, %v1056, -inf
  %1065 = vmax.xlane.f32.xlu0 %v1064
  %v1066 = vpop.xlane.xlu0 %1065
  %v1067 = vsel %vm125, %v1057, -inf
  %1068 = vmax.xlane.f32.xlu0 %v1067
  %v1069 = vpop.xlane.xlu0 %1068
  %v1070 = vsel %vm125, %v1058, -inf
  %1071 = vmax.xlane.f32.xlu0 %v1070
  %v1072 = vpop.xlane.xlu0 %1071
  %v1073 = vsel %vm125, %v1059, -inf
  %1074 = vmax.xlane.f32.xlu0 %v1073
  %v1075 = vpop.xlane.xlu0 %1074
  %v1076 = vsel %vm125, %v1060, -inf
  %1077 = vmax.xlane.f32.xlu0 %v1076
  %v1078 = vpop.xlane.xlu0 %1077
  %v1079 = vsel %vm125, %v1061, -inf
  %1080 = vmax.xlane.f32.xlu0 %v1079
  %v1081 = vpop.xlane.xlu0 %1080
  %v1082 = vsel %vm125, %v1062, -inf
  %1083 = vmax.xlane.f32.xlu0 %v1082
  %v1084 = vpop.xlane.xlu0 %1083
  %v1085 = vsel %vm125, %v1063, -inf
  %1086 = vmax.xlane.f32.xlu0 %v1085
  %v1087 = vpop.xlane.xlu0 %1086
  %v1088 = vsub.f32 %v1056, %v1066
  %v1089 = vsub.f32 %v1057, %v1069
  %v1090 = vsub.f32 %v1058, %v1072
  %v1091 = vsub.f32 %v1059, %v1075
  %v1092 = vsub.f32 %v1060, %v1078
  %v1093 = vsub.f32 %v1061, %v1081
  %v1094 = vsub.f32 %v1062, %v1084
  %v1095 = vsub.f32 %v1063, %v1087
  %v1096 = vmul.f32 %v1088, 1.442695
  %v1097 = vpow.pop %v1096
  %v1098 = vmul.f32 %v1089, 1.442695
  %v1099 = vpow.pop %v1098
  %v1100 = vmul.f32 %v1090, 1.442695
  %v1101 = vpow.pop %v1100
  %v1102 = vmul.f32 %v1091, 1.442695
  %v1103 = vpow.pop %v1102
  %v1104 = vmul.f32 %v1092, 1.442695
  %v1105 = vpow.pop %v1104
  %v1106 = vmul.f32 %v1093, 1.442695
  %v1107 = vpow.pop %v1106
  %v1108 = vmul.f32 %v1094, 1.442695
  %v1109 = vpow.pop %v1108
  %v1110 = vmul.f32 %v1095, 1.442695
  %v1111 = vpow.pop %v1110
  %v1112 = vsel %vm125, %v1097, 0.0
  %1113 = vadd.xlane.f32.xlu0 %v1112
  %v1114 = vpop.xlane.xlu0 %1113
  %v1115 = vsel %vm125, %v1099, 0.0
  %1116 = vadd.xlane.f32.xlu0 %v1115
  %v1117 = vpop.xlane.xlu0 %1116
  %v1118 = vsel %vm125, %v1101, 0.0
  %1119 = vadd.xlane.f32.xlu0 %v1118
  %v1120 = vpop.xlane.xlu0 %1119
  %v1121 = vsel %vm125, %v1103, 0.0
  %1122 = vadd.xlane.f32.xlu0 %v1121
  %v1123 = vpop.xlane.xlu0 %1122
  %v1124 = vsel %vm125, %v1105, 0.0
  %1125 = vadd.xlane.f32.xlu0 %v1124
  %v1126 = vpop.xlane.xlu0 %1125
  %v1127 = vsel %vm125, %v1107, 0.0
  %1128 = vadd.xlane.f32.xlu0 %v1127
  %v1129 = vpop.xlane.xlu0 %1128
  %v1130 = vsel %vm125, %v1109, 0.0
  %1131 = vadd.xlane.f32.xlu0 %v1130
  %v1132 = vpop.xlane.xlu0 %1131
  %v1133 = vsel %vm125, %v1111, 0.0
  %1134 = vadd.xlane.f32.xlu0 %v1133
  %v1135 = vpop.xlane.xlu0 %1134
  %v1136 = vrcp.pop %v1114
  %v1137 = vrcp.pop %v1117
  %v1138 = vrcp.pop %v1120
  %v1139 = vrcp.pop %v1123
  %v1140 = vrcp.pop %v1126
  %v1141 = vrcp.pop %v1129
  %v1142 = vrcp.pop %v1132
  %v1143 = vrcp.pop %v1135
  %v1144 = vmul.f32 %v1097, %v1136
  %v1145 = vmul.f32 %v1099, %v1137
  %v1146 = vmul.f32 %v1101, %v1138
  %v1147 = vmul.f32 %v1103, %v1139
  %v1148 = vmul.f32 %v1105, %v1140
  %v1149 = vmul.f32 %v1107, %v1141
  %v1150 = vmul.f32 %v1109, %v1142
  %v1151 = vmul.f32 %v1111, %v1143
  %1152 = vrot.lane.b32.xlu0 %v380, 48
  %v1153 = vpop.permute.xlu0 %1152
  %1154 = vrot.lane.b32.xlu0 %v385, 48
  %v1155 = vpop.permute.xlu0 %1154
  %1156 = vrot.lane.b32.xlu0 %v390, 48
  %v1157 = vpop.permute.xlu0 %1156
  %1158 = vrot.lane.b32.xlu0 %v395, 48
  %v1159 = vpop.permute.xlu0 %1158
  %1160 = vrot.lane.b32.xlu0 %v400, 48
  %v1161 = vpop.permute.xlu0 %1160
  %1162 = vrot.lane.b32.xlu0 %v405, 48
  %v1163 = vpop.permute.xlu0 %1162
  %1164 = vrot.lane.b32.xlu0 %v410, 48
  %v1165 = vpop.permute.xlu0 %1164
  %1166 = vrot.lane.b32.xlu0 %v415, 48
  %v1167 = vpop.permute.xlu0 %1166
  %v1177 = vsel %vm125, %v1144, 0
  %v1180 = vsel %vm125, %v1145, 0
  %v1183 = vsel %vm125, %v1146, 0
  %v1186 = vsel %vm125, %v1147, 0
  %v1189 = vsel %vm125, %v1148, 0
  %v1192 = vsel %vm125, %v1149, 0
  %v1195 = vsel %vm125, %v1150, 0
  %v1198 = vsel %vm125, %v1151, 0
  %1200 = vmatprep.subr.mxu0 0.0
  %1201 = vmatpush1.msra.mxu0 0.0
  %1202 = vmatprep.subr.mxu0 0.0
  %1203 = vmatpush1.msra.mxu0 0.0
  %1204 = vmatprep.subr.mxu0 0.0
  %1205 = vmatpush1.msra.mxu0 0.0
  %1206 = vmatprep.subr.mxu0 0.0
  %1207 = vmatpush1.msra.mxu0 0.0
  %1208 = vmatprep.subr.mxu0 0.0
  %1209 = vmatpush1.msra.mxu0 0.0
  %1210 = vmatprep.subr.mxu0 0.0
  %1211 = vmatpush1.msra.mxu0 0.0
  %1212 = vmatprep.subr.mxu0 0.0
  %1213 = vmatpush1.msra.mxu0 0.0
  %1214 = vmatprep.subr.mxu0 0.0
  %1215 = vmatpush1.msra.mxu0 0.0
  %1216 = vmatprep.subr.mxu0 0.0
  %1217 = vmatpush1.msra.mxu0 %v1167
  %1218 = vmatprep.subr.mxu0 0.0
  %1219 = vmatpush1.msra.mxu0 %v1165
  %1220 = vmatprep.subr.mxu0 0.0
  %1221 = vmatpush1.msra.mxu0 %v1163
  %1222 = vmatprep.subr.mxu0 0.0
  %1223 = vmatpush1.msra.mxu0 %v1161
  %1224 = vmatprep.subr.mxu0 0.0
  %1225 = vmatpush1.msra.mxu0 %v1159
  %1226 = vmatprep.subr.mxu0 0.0
  %1227 = vmatpush1.msra.mxu0 %v1157
  %1228 = vmatprep.subr.mxu0 0.0
  %1229 = vmatpush1.msra.mxu0 %v1155
  %1230 = vmatprep.subr.mxu0 0.0
  %1231 = vmatpush1.msra.mxu0 %v1153
  %1232 = vmatprep.subr.mxu0 0.0
  %1233 = vmatpush2.msra.mxu0 0.0
  %1234 = vmatprep.subr.mxu0 0.0
  %1235 = vmatpush2.msra.mxu0 0.0
  %1236 = vmatprep.subr.mxu0 0.0
  %1237 = vmatpush2.msra.mxu0 0.0
  %1238 = vmatprep.subr.mxu0 0.0
  %1239 = vmatpush2.msra.mxu0 0.0
  %1240 = vmatprep.subr.mxu0 0.0
  %1241 = vmatpush2.msra.mxu0 0.0
  %1242 = vmatprep.subr.mxu0 0.0
  %1243 = vmatpush2.msra.mxu0 0.0
  %1244 = vmatprep.subr.mxu0 0.0
  %1245 = vmatpush2.msra.mxu0 0.0
  %1246 = vmatprep.subr.mxu0 0.0
  %1247 = vmatpush2.msra.mxu0 0.0
  %1248 = vmatprep.subr.mxu0 0.0
  %1249 = vmatpush2.msra.mxu0 0.0
  %1250 = vmatprep.subr.mxu0 0.0
  %1251 = vmatpush2.msra.mxu0 0.0
  %1252 = vmatprep.subr.mxu0 0.0
  %1253 = vmatpush2.msra.mxu0 0.0
  %1254 = vmatprep.subr.mxu0 0.0
  %1255 = vmatpush2.msra.mxu0 0.0
  %1256 = vmatprep.subr.mxu0 0.0
  %1257 = vmatpush2.msra.mxu0 0.0
  %1258 = vmatprep.subr.mxu0 0.0
  %1259 = vmatpush2.msra.mxu0 0.0
  %1260 = vmatprep.subr.mxu0 0.0
  %1261 = vmatpush2.msra.mxu0 0.0
  %1262 = vmatprep.subr.mxu0 0.0
  %1263 = vmatpush2.msra.mxu0 0.0
  %1264 = vmatprep.mubr.f32.mxu0 0.0
  %1265 = vmatmul.mubr.f32.gmra.mxu0 %v1177
  %v1266 = vpop.f32.mrf.mxu0
  %v1267 = vadd.f32 0.0, %v1266
  %v1268 = vpop.f32.mrf.mxu0
  %1269 = vmatprep.mubr.f32.mxu0 0.0
  %1270 = vmatmul.mubr.f32.gmra.mxu0 %v1180
  %v1271 = vpop.f32.mrf.mxu0
  %v1272 = vadd.f32 0.0, %v1271
  %v1273 = vpop.f32.mrf.mxu0
  %1274 = vmatprep.mubr.f32.mxu0 0.0
  %1275 = vmatmul.mubr.f32.gmra.mxu0 %v1183
  %v1276 = vpop.f32.mrf.mxu0
  %v1277 = vadd.f32 0.0, %v1276
  %v1278 = vpop.f32.mrf.mxu0
  %1279 = vmatprep.mubr.f32.mxu0 0.0
  %1280 = vmatmul.mubr.f32.gmra.mxu0 %v1186
  %v1281 = vpop.f32.mrf.mxu0
  %v1282 = vadd.f32 0.0, %v1281
  %v1283 = vpop.f32.mrf.mxu0
  %1284 = vmatprep.mubr.f32.mxu0 0.0
  %1285 = vmatmul.mubr.f32.gmra.mxu0 %v1189
  %v1286 = vpop.f32.mrf.mxu0
  %v1287 = vadd.f32 0.0, %v1286
  %v1288 = vpop.f32.mrf.mxu0
  %1289 = vmatprep.mubr.f32.mxu0 0.0
  %1290 = vmatmul.mubr.f32.gmra.mxu0 %v1192
  %v1291 = vpop.f32.mrf.mxu0
  %v1292 = vadd.f32 0.0, %v1291
  %v1293 = vpop.f32.mrf.mxu0
  %1294 = vmatprep.mubr.f32.mxu0 0.0
  %1295 = vmatmul.mubr.f32.gmra.mxu0 %v1195
  %v1296 = vpop.f32.mrf.mxu0
  %v1297 = vadd.f32 0.0, %v1296
  %v1298 = vpop.f32.mrf.mxu0
  %1299 = vmatprep.mubr.f32.mxu0 0.0
  %1300 = vmatmul.mubr.f32.gmra.mxu0 %v1198
  %v1301 = vpop.f32.mrf.mxu0
  %v1302 = vadd.f32 0.0, %v1301
  %v1303 = vpop.f32.mrf.mxu0
  %1304 = vdwg.mxu0
  %1307 = vrot.lane.b32.xlu0 %v278, 32
  %v1308 = vpop.permute.xlu0 %1307
  %1309 = vrot.lane.b32.xlu0 %v279, 32
  %v1310 = vpop.permute.xlu0 %1309
  %v1314 = vsel %vm442, %v1267, 0
  %v1317 = vsel %vm442, %v1272, 0
  %v1320 = vsel %vm442, %v1277, 0
  %v1323 = vsel %vm442, %v1282, 0
  %v1326 = vsel %vm442, %v1287, 0
  %v1329 = vsel %vm442, %v1292, 0
  %v1332 = vsel %vm442, %v1297, 0
  %v1335 = vsel %vm442, %v1302, 0
  %1337 = vmatprep.subr.mxu0 0.0
  %1338 = vmatpush1.msra.mxu0 0.0
  %1339 = vmatprep.subr.mxu0 0.0
  %1340 = vmatpush1.msra.mxu0 0.0
  %1341 = vmatprep.subr.mxu0 0.0
  %1342 = vmatpush1.msra.mxu0 0.0
  %1343 = vmatprep.subr.mxu0 0.0
  %1344 = vmatpush1.msra.mxu0 0.0
  %1345 = vmatprep.subr.mxu0 0.0
  %1346 = vmatpush1.msra.mxu0 0.0
  %1347 = vmatprep.subr.mxu0 0.0
  %1348 = vmatpush1.msra.mxu0 0.0
  %1349 = vmatprep.subr.mxu0 0.0
  %1350 = vmatpush1.msra.mxu0 0.0
  %1351 = vmatprep.subr.mxu0 0.0
  %1352 = vmatpush1.msra.mxu0 0.0
  %1353 = vmatprep.subr.mxu0 0.0
  %1354 = vmatpush1.msra.mxu0 0.0
  %1355 = vmatprep.subr.mxu0 0.0
  %1356 = vmatpush1.msra.mxu0 0.0
  %1357 = vmatprep.subr.mxu0 0.0
  %1358 = vmatpush1.msra.mxu0 0.0
  %1359 = vmatprep.subr.mxu0 0.0
  %1360 = vmatpush1.msra.mxu0 0.0
  %1361 = vmatprep.subr.mxu0 0.0
  %1362 = vmatpush1.msra.mxu0 0.0
  %1363 = vmatprep.subr.mxu0 0.0
  %1364 = vmatpush1.msra.mxu0 0.0
  %1365 = vmatprep.subr.mxu0 0.0
  %1366 = vmatpush1.msra.mxu0 %v1310
  %1367 = vmatprep.subr.mxu0 0.0
  %1368 = vmatpush1.msra.mxu0 %v1308
  %1369 = vmatprep.subr.mxu0 0.0
  %1370 = vmatpush2.msra.mxu0 0.0
  %1371 = vmatprep.subr.mxu0 0.0
  %1372 = vmatpush2.msra.mxu0 0.0
  %1373 = vmatprep.subr.mxu0 0.0
  %1374 = vmatpush2.msra.mxu0 0.0
  %1375 = vmatprep.subr.mxu0 0.0
  %1376 = vmatpush2.msra.mxu0 0.0
  %1377 = vmatprep.subr.mxu0 0.0
  %1378 = vmatpush2.msra.mxu0 0.0
  %1379 = vmatprep.subr.mxu0 0.0
  %1380 = vmatpush2.msra.mxu0 0.0
  %1381 = vmatprep.subr.mxu0 0.0
  %1382 = vmatpush2.msra.mxu0 0.0
  %1383 = vmatprep.subr.mxu0 0.0
  %1384 = vmatpush2.msra.mxu0 0.0
  %1385 = vmatprep.subr.mxu0 0.0
  %1386 = vmatpush2.msra.mxu0 0.0
  %1387 = vmatprep.subr.mxu0 0.0
  %1388 = vmatpush2.msra.mxu0 0.0
  %1389 = vmatprep.subr.mxu0 0.0
  %1390 = vmatpush2.msra.mxu0 0.0
  %1391 = vmatprep.subr.mxu0 0.0
  %1392 = vmatpush2.msra.mxu0 0.0
  %1393 = vmatprep.subr.mxu0 0.0
  %1394 = vmatpush2.msra.mxu0 0.0
  %1395 = vmatprep.subr.mxu0 0.0
  %1396 = vmatpush2.msra.mxu0 0.0
  %1397 = vmatprep.subr.mxu0 0.0
  %1398 = vmatpush2.msra.mxu0 0.0
  %1399 = vmatprep.subr.mxu0 0.0
  %1400 = vmatpush2.msra.mxu0 0.0
  %1401 = vmatprep.mubr.f32.mxu0 0.0
  %1402 = vmatmul.mubr.f32.gmra.mxu0 %v1314
  %v1403 = vpop.f32.mrf.mxu0
  %v1404 = vadd.f32 0.0, %v1403
  %v1405 = vpop.f32.mrf.mxu0
  %1406 = vmatprep.mubr.f32.mxu0 0.0
  %1407 = vmatmul.mubr.f32.gmra.mxu0 %v1317
  %v1408 = vpop.f32.mrf.mxu0
  %v1409 = vadd.f32 0.0, %v1408
  %v1410 = vpop.f32.mrf.mxu0
  %1411 = vmatprep.mubr.f32.mxu0 0.0
  %1412 = vmatmul.mubr.f32.gmra.mxu0 %v1320
  %v1413 = vpop.f32.mrf.mxu0
  %v1414 = vadd.f32 0.0, %v1413
  %v1415 = vpop.f32.mrf.mxu0
  %1416 = vmatprep.mubr.f32.mxu0 0.0
  %1417 = vmatmul.mubr.f32.gmra.mxu0 %v1323
  %v1418 = vpop.f32.mrf.mxu0
  %v1419 = vadd.f32 0.0, %v1418
  %v1420 = vpop.f32.mrf.mxu0
  %1421 = vmatprep.mubr.f32.mxu0 0.0
  %1422 = vmatmul.mubr.f32.gmra.mxu0 %v1326
  %v1423 = vpop.f32.mrf.mxu0
  %v1424 = vadd.f32 0.0, %v1423
  %v1425 = vpop.f32.mrf.mxu0
  %1426 = vmatprep.mubr.f32.mxu0 0.0
  %1427 = vmatmul.mubr.f32.gmra.mxu0 %v1329
  %v1428 = vpop.f32.mrf.mxu0
  %v1429 = vadd.f32 0.0, %v1428
  %v1430 = vpop.f32.mrf.mxu0
  %1431 = vmatprep.mubr.f32.mxu0 0.0
  %1432 = vmatmul.mubr.f32.gmra.mxu0 %v1332
  %v1433 = vpop.f32.mrf.mxu0
  %v1434 = vadd.f32 0.0, %v1433
  %v1435 = vpop.f32.mrf.mxu0
  %1436 = vmatprep.mubr.f32.mxu0 0.0
  %1437 = vmatmul.mubr.f32.gmra.mxu0 %v1335
  %v1438 = vpop.f32.mrf.mxu0
  %v1439 = vadd.f32 0.0, %v1438
  %v1440 = vpop.f32.mrf.mxu0
  %1441 = vdwg.mxu0
  %1444 = vrot.lane.b32.xlu0 %v276, 32
  %v1445 = vpop.permute.xlu0 %1444
  %1446 = vrot.lane.b32.xlu0 %v277, 32
  %v1447 = vpop.permute.xlu0 %1446
  %v1451 = vsel %vm442, %v849, 0
  %v1454 = vsel %vm442, %v854, 0
  %v1457 = vsel %vm442, %v859, 0
  %v1460 = vsel %vm442, %v864, 0
  %v1463 = vsel %vm442, %v869, 0
  %v1466 = vsel %vm442, %v874, 0
  %v1469 = vsel %vm442, %v879, 0
  %v1472 = vsel %vm442, %v884, 0
  %1474 = vmatprep.subr.mxu0 0.0
  %1475 = vmatpush1.msra.mxu0 0.0
  %1476 = vmatprep.subr.mxu0 0.0
  %1477 = vmatpush1.msra.mxu0 0.0
  %1478 = vmatprep.subr.mxu0 0.0
  %1479 = vmatpush1.msra.mxu0 0.0
  %1480 = vmatprep.subr.mxu0 0.0
  %1481 = vmatpush1.msra.mxu0 0.0
  %1482 = vmatprep.subr.mxu0 0.0
  %1483 = vmatpush1.msra.mxu0 0.0
  %1484 = vmatprep.subr.mxu0 0.0
  %1485 = vmatpush1.msra.mxu0 0.0
  %1486 = vmatprep.subr.mxu0 0.0
  %1487 = vmatpush1.msra.mxu0 0.0
  %1488 = vmatprep.subr.mxu0 0.0
  %1489 = vmatpush1.msra.mxu0 0.0
  %1490 = vmatprep.subr.mxu0 0.0
  %1491 = vmatpush1.msra.mxu0 0.0
  %1492 = vmatprep.subr.mxu0 0.0
  %1493 = vmatpush1.msra.mxu0 0.0
  %1494 = vmatprep.subr.mxu0 0.0
  %1495 = vmatpush1.msra.mxu0 0.0
  %1496 = vmatprep.subr.mxu0 0.0
  %1497 = vmatpush1.msra.mxu0 0.0
  %1498 = vmatprep.subr.mxu0 0.0
  %1499 = vmatpush1.msra.mxu0 0.0
  %1500 = vmatprep.subr.mxu0 0.0
  %1501 = vmatpush1.msra.mxu0 0.0
  %1502 = vmatprep.subr.mxu0 0.0
  %1503 = vmatpush1.msra.mxu0 %v1447
  %1504 = vmatprep.subr.mxu0 0.0
  %1505 = vmatpush1.msra.mxu0 %v1445
  %1506 = vmatprep.subr.mxu0 0.0
  %1507 = vmatpush2.msra.mxu0 0.0
  %1508 = vmatprep.subr.mxu0 0.0
  %1509 = vmatpush2.msra.mxu0 0.0
  %1510 = vmatprep.subr.mxu0 0.0
  %1511 = vmatpush2.msra.mxu0 0.0
  %1512 = vmatprep.subr.mxu0 0.0
  %1513 = vmatpush2.msra.mxu0 0.0
  %1514 = vmatprep.subr.mxu0 0.0
  %1515 = vmatpush2.msra.mxu0 0.0
  %1516 = vmatprep.subr.mxu0 0.0
  %1517 = vmatpush2.msra.mxu0 0.0
  %1518 = vmatprep.subr.mxu0 0.0
  %1519 = vmatpush2.msra.mxu0 0.0
  %1520 = vmatprep.subr.mxu0 0.0
  %1521 = vmatpush2.msra.mxu0 0.0
  %1522 = vmatprep.subr.mxu0 0.0
  %1523 = vmatpush2.msra.mxu0 0.0
  %1524 = vmatprep.subr.mxu0 0.0
  %1525 = vmatpush2.msra.mxu0 0.0
  %1526 = vmatprep.subr.mxu0 0.0
  %1527 = vmatpush2.msra.mxu0 0.0
  %1528 = vmatprep.subr.mxu0 0.0
  %1529 = vmatpush2.msra.mxu0 0.0
  %1530 = vmatprep.subr.mxu0 0.0
  %1531 = vmatpush2.msra.mxu0 0.0
  %1532 = vmatprep.subr.mxu0 0.0
  %1533 = vmatpush2.msra.mxu0 0.0
  %1534 = vmatprep.subr.mxu0 0.0
  %1535 = vmatpush2.msra.mxu0 0.0
  %1536 = vmatprep.subr.mxu0 0.0
  %1537 = vmatpush2.msra.mxu0 0.0
  %1538 = vmatprep.mubr.f32.mxu0 0.0
  %1539 = vmatmul.mubr.f32.gmra.mxu0 %v1451
  %v1540 = vpop.f32.mrf.mxu0
  %v1541 = vadd.f32 %v1404, %v1540
  %v1542 = vpop.f32.mrf.mxu0
  %1543 = vmatprep.mubr.f32.mxu0 0.0
  %1544 = vmatmul.mubr.f32.gmra.mxu0 %v1454
  %v1545 = vpop.f32.mrf.mxu0
  %v1546 = vadd.f32 %v1409, %v1545
  %v1547 = vpop.f32.mrf.mxu0
  %1548 = vmatprep.mubr.f32.mxu0 0.0
  %1549 = vmatmul.mubr.f32.gmra.mxu0 %v1457
  %v1550 = vpop.f32.mrf.mxu0
  %v1551 = vadd.f32 %v1414, %v1550
  %v1552 = vpop.f32.mrf.mxu0
  %1553 = vmatprep.mubr.f32.mxu0 0.0
  %1554 = vmatmul.mubr.f32.gmra.mxu0 %v1460
  %v1555 = vpop.f32.mrf.mxu0
  %v1556 = vadd.f32 %v1419, %v1555
  %v1557 = vpop.f32.mrf.mxu0
  %1558 = vmatprep.mubr.f32.mxu0 0.0
  %1559 = vmatmul.mubr.f32.gmra.mxu0 %v1463
  %v1560 = vpop.f32.mrf.mxu0
  %v1561 = vadd.f32 %v1424, %v1560
  %v1562 = vpop.f32.mrf.mxu0
  %1563 = vmatprep.mubr.f32.mxu0 0.0
  %1564 = vmatmul.mubr.f32.gmra.mxu0 %v1466
  %v1565 = vpop.f32.mrf.mxu0
  %v1566 = vadd.f32 %v1429, %v1565
  %v1567 = vpop.f32.mrf.mxu0
  %1568 = vmatprep.mubr.f32.mxu0 0.0
  %1569 = vmatmul.mubr.f32.gmra.mxu0 %v1469
  %v1570 = vpop.f32.mrf.mxu0
  %v1571 = vadd.f32 %v1434, %v1570
  %v1572 = vpop.f32.mrf.mxu0
  %1573 = vmatprep.mubr.f32.mxu0 0.0
  %1574 = vmatmul.mubr.f32.gmra.mxu0 %v1472
  %v1575 = vpop.f32.mrf.mxu0
  %v1576 = vadd.f32 %v1439, %v1575
  %v1577 = vpop.f32.mrf.mxu0
  %1578 = vdwg.mxu0
  %1579 = vrot.lane.b32.xlu0 %v286, 32
  %v1580 = vpop.permute.xlu0 %1579
  %v1582 = vadd.f32 %v1541, %v1580
  %v1583 = vadd.f32 %v1546, %v1580
  %v1584 = vadd.f32 %v1551, %v1580
  %v1585 = vadd.f32 %v1556, %v1580
  %v1586 = vadd.f32 %v1561, %v1580
  %v1587 = vadd.f32 %v1566, %v1580
  %v1588 = vadd.f32 %v1571, %v1580
  %v1589 = vadd.f32 %v1576, %v1580
  %v1590 = vadd.f32 %v217, %v1582
  %v1591 = vadd.f32 %v222, %v1583
  %v1592 = vadd.f32 %v227, %v1584
  %v1593 = vadd.f32 %v232, %v1585
  %v1594 = vadd.f32 %v237, %v1586
  %v1595 = vadd.f32 %v242, %v1587
  %v1596 = vadd.f32 %v247, %v1588
  %v1597 = vadd.f32 %v252, %v1589
  %v1598 = vsel %vm288, %v1590, 0.0
  %1599 = vadd.xlane.f32.xlu0 %v1598
  %v1600 = vpop.xlane.xlu0 %1599
  %v1601 = vsel %vm288, %v1591, 0.0
  %1602 = vadd.xlane.f32.xlu0 %v1601
  %v1603 = vpop.xlane.xlu0 %1602
  %v1604 = vsel %vm288, %v1592, 0.0
  %1605 = vadd.xlane.f32.xlu0 %v1604
  %v1606 = vpop.xlane.xlu0 %1605
  %v1607 = vsel %vm288, %v1593, 0.0
  %1608 = vadd.xlane.f32.xlu0 %v1607
  %v1609 = vpop.xlane.xlu0 %1608
  %v1610 = vsel %vm288, %v1594, 0.0
  %1611 = vadd.xlane.f32.xlu0 %v1610
  %v1612 = vpop.xlane.xlu0 %1611
  %v1613 = vsel %vm288, %v1595, 0.0
  %1614 = vadd.xlane.f32.xlu0 %v1613
  %v1615 = vpop.xlane.xlu0 %1614
  %v1616 = vsel %vm288, %v1596, 0.0
  %1617 = vadd.xlane.f32.xlu0 %v1616
  %v1618 = vpop.xlane.xlu0 %1617
  %v1619 = vsel %vm288, %v1597, 0.0
  %1620 = vadd.xlane.f32.xlu0 %v1619
  %v1621 = vpop.xlane.xlu0 %1620
  %v1622 = vrcp.pop 32.0
  %v1623 = vmul.f32 %v1600, %v1622
  %v1624 = vmul.f32 %v1603, %v1622
  %v1625 = vmul.f32 %v1606, %v1622
  %v1626 = vmul.f32 %v1609, %v1622
  %v1627 = vmul.f32 %v1612, %v1622
  %v1628 = vmul.f32 %v1615, %v1622
  %v1629 = vmul.f32 %v1618, %v1622
  %v1630 = vmul.f32 %v1621, %v1622
  %v1631 = vsub.f32 %v1590, %v1623
  %v1632 = vsub.f32 %v1591, %v1624
  %v1633 = vsub.f32 %v1592, %v1625
  %v1634 = vsub.f32 %v1593, %v1626
  %v1635 = vsub.f32 %v1594, %v1627
  %v1636 = vsub.f32 %v1595, %v1628
  %v1637 = vsub.f32 %v1596, %v1629
  %v1638 = vsub.f32 %v1597, %v1630
  %v1639 = vmul.f32 %v1631, %v1631
  %v1640 = vmul.f32 %v1632, %v1632
  %v1641 = vmul.f32 %v1633, %v1633
  %v1642 = vmul.f32 %v1634, %v1634
  %v1643 = vmul.f32 %v1635, %v1635
  %v1644 = vmul.f32 %v1636, %v1636
  %v1645 = vmul.f32 %v1637, %v1637
  %v1646 = vmul.f32 %v1638, %v1638
  %v1647 = vsel %vm288, %v1639, 0.0
  %1648 = vadd.xlane.f32.xlu0 %v1647
  %v1649 = vpop.xlane.xlu0 %1648
  %v1650 = vsel %vm288, %v1640, 0.0
  %1651 = vadd.xlane.f32.xlu0 %v1650
  %v1652 = vpop.xlane.xlu0 %1651
  %v1653 = vsel %vm288, %v1641, 0.0
  %1654 = vadd.xlane.f32.xlu0 %v1653
  %v1655 = vpop.xlane.xlu0 %1654
  %v1656 = vsel %vm288, %v1642, 0.0
  %1657 = vadd.xlane.f32.xlu0 %v1656
  %v1658 = vpop.xlane.xlu0 %1657
  %v1659 = vsel %vm288, %v1643, 0.0
  %1660 = vadd.xlane.f32.xlu0 %v1659
  %v1661 = vpop.xlane.xlu0 %1660
  %v1662 = vsel %vm288, %v1644, 0.0
  %1663 = vadd.xlane.f32.xlu0 %v1662
  %v1664 = vpop.xlane.xlu0 %1663
  %v1665 = vsel %vm288, %v1645, 0.0
  %1666 = vadd.xlane.f32.xlu0 %v1665
  %v1667 = vpop.xlane.xlu0 %1666
  %v1668 = vsel %vm288, %v1646, 0.0
  %1669 = vadd.xlane.f32.xlu0 %v1668
  %v1670 = vpop.xlane.xlu0 %1669
  %v1671 = vmul.f32 %v1649, %v1622
  %v1672 = vmul.f32 %v1652, %v1622
  %v1673 = vmul.f32 %v1655, %v1622
  %v1674 = vmul.f32 %v1658, %v1622
  %v1675 = vmul.f32 %v1661, %v1622
  %v1676 = vmul.f32 %v1664, %v1622
  %v1677 = vmul.f32 %v1667, %v1622
  %v1678 = vmul.f32 %v1670, %v1622
  %v1679 = vadd.f32 %v1671, 1e-05
  %v1680 = vadd.f32 %v1672, 1e-05
  %v1681 = vadd.f32 %v1673, 1e-05
  %v1682 = vadd.f32 %v1674, 1e-05
  %v1683 = vadd.f32 %v1675, 1e-05
  %v1684 = vadd.f32 %v1676, 1e-05
  %v1685 = vadd.f32 %v1677, 1e-05
  %v1686 = vadd.f32 %v1678, 1e-05
  %v1687 = vrsqrt.pop %v1679
  %v1688 = vrsqrt.pop %v1680
  %v1689 = vrsqrt.pop %v1681
  %v1690 = vrsqrt.pop %v1682
  %v1691 = vrsqrt.pop %v1683
  %v1692 = vrsqrt.pop %v1684
  %v1693 = vrsqrt.pop %v1685
  %v1694 = vrsqrt.pop %v1686
  %v1695 = vmul.f32 %v1631, %v1687
  %v1696 = vmul.f32 %v1632, %v1688
  %v1697 = vmul.f32 %v1633, %v1689
  %v1698 = vmul.f32 %v1634, %v1690
  %v1699 = vmul.f32 %v1635, %v1691
  %v1700 = vmul.f32 %v1636, %v1692
  %v1701 = vmul.f32 %v1637, %v1693
  %v1702 = vmul.f32 %v1638, %v1694
  %v1704 = vlaneseq
  %v1705 = vshrl.u32 %v1704, 7
  %v1706 = vsub.s32 0, %v1705
  %v1707 = vrot.slane %v281, %v1706
  %v1709 = vmul.f32 %v1695, %v1707
  %v1710 = vmul.f32 %v1696, %v1707
  %v1711 = vmul.f32 %v1697, %v1707
  %v1712 = vmul.f32 %v1698, %v1707
  %v1713 = vmul.f32 %v1699, %v1707
  %v1714 = vmul.f32 %v1700, %v1707
  %v1715 = vmul.f32 %v1701, %v1707
  %v1716 = vmul.f32 %v1702, %v1707
  %1717 = vrot.lane.b32.xlu0 %v1707, 96
  %v1718 = vpop.permute.xlu0 %1717
  %v1720 = vadd.f32 %v1709, %v1718
  %v1721 = vadd.f32 %v1710, %v1718
  %v1722 = vadd.f32 %v1711, %v1718
  %v1723 = vadd.f32 %v1712, %v1718
  %v1724 = vadd.f32 %v1713, %v1718
  %v1725 = vadd.f32 %v1714, %v1718
  %v1726 = vadd.f32 %v1715, %v1718
  %v1727 = vadd.f32 %v1716, %v1718
  %v1728 = vld [vmem:[%s9] sm:$0xff]
  %v1729 = vld [vmem:[%s9 + $0x8] sm:$0xff]
  %v1730 = vld [vmem:[%s9 + $0x10] sm:$0xff]
  %v1731 = vld [vmem:[%s9 + $0x18] sm:$0xff]
  %v1732 = vld [vmem:[%s11] sm:$0x1]
  %v1734 = vlaneseq
  %v1735 = vshrl.u32 %v1734, 7
  %v1736 = vsub.s32 0, %v1735
  %v1737 = vrot.slane %v1732, %v1736
  %v1740 = vsel %vm288, %v1720, 0
  %v1743 = vsel %vm288, %v1721, 0
  %v1746 = vsel %vm288, %v1722, 0
  %v1749 = vsel %vm288, %v1723, 0
  %v1752 = vsel %vm288, %v1724, 0
  %v1755 = vsel %vm288, %v1725, 0
  %v1758 = vsel %vm288, %v1726, 0
  %v1761 = vsel %vm288, %v1727, 0
  %1763 = vmatprep.subr.mxu0 0.0
  %1764 = vmatpush1.msra.mxu0 0.0
  %1765 = vmatprep.subr.mxu0 0.0
  %1766 = vmatpush1.msra.mxu0 0.0
  %1767 = vmatprep.subr.mxu0 0.0
  %1768 = vmatpush1.msra.mxu0 0.0
  %1769 = vmatprep.subr.mxu0 0.0
  %1770 = vmatpush1.msra.mxu0 0.0
  %1771 = vmatprep.subr.mxu0 0.0
  %1772 = vmatpush1.msra.mxu0 0.0
  %1773 = vmatprep.subr.mxu0 0.0
  %1774 = vmatpush1.msra.mxu0 0.0
  %1775 = vmatprep.subr.mxu0 0.0
  %1776 = vmatpush1.msra.mxu0 0.0
  %1777 = vmatprep.subr.mxu0 0.0
  %1778 = vmatpush1.msra.mxu0 0.0
  %1779 = vmatprep.subr.mxu0 0.0
  %1780 = vmatpush1.msra.mxu0 0.0
  %1781 = vmatprep.subr.mxu0 0.0
  %1782 = vmatpush1.msra.mxu0 0.0
  %1783 = vmatprep.subr.mxu0 0.0
  %1784 = vmatpush1.msra.mxu0 0.0
  %1785 = vmatprep.subr.mxu0 0.0
  %1786 = vmatpush1.msra.mxu0 0.0
  %1787 = vmatprep.subr.mxu0 0.0
  %1788 = vmatpush1.msra.mxu0 %v1731
  %1789 = vmatprep.subr.mxu0 0.0
  %1790 = vmatpush1.msra.mxu0 %v1730
  %1791 = vmatprep.subr.mxu0 0.0
  %1792 = vmatpush1.msra.mxu0 %v1729
  %1793 = vmatprep.subr.mxu0 0.0
  %1794 = vmatpush1.msra.mxu0 %v1728
  %1795 = vmatprep.subr.mxu0 0.0
  %1796 = vmatpush2.msra.mxu0 0.0
  %1797 = vmatprep.subr.mxu0 0.0
  %1798 = vmatpush2.msra.mxu0 0.0
  %1799 = vmatprep.subr.mxu0 0.0
  %1800 = vmatpush2.msra.mxu0 0.0
  %1801 = vmatprep.subr.mxu0 0.0
  %1802 = vmatpush2.msra.mxu0 0.0
  %1803 = vmatprep.subr.mxu0 0.0
  %1804 = vmatpush2.msra.mxu0 0.0
  %1805 = vmatprep.subr.mxu0 0.0
  %1806 = vmatpush2.msra.mxu0 0.0
  %1807 = vmatprep.subr.mxu0 0.0
  %1808 = vmatpush2.msra.mxu0 0.0
  %1809 = vmatprep.subr.mxu0 0.0
  %1810 = vmatpush2.msra.mxu0 0.0
  %1811 = vmatprep.subr.mxu0 0.0
  %1812 = vmatpush2.msra.mxu0 0.0
  %1813 = vmatprep.subr.mxu0 0.0
  %1814 = vmatpush2.msra.mxu0 0.0
  %1815 = vmatprep.subr.mxu0 0.0
  %1816 = vmatpush2.msra.mxu0 0.0
  %1817 = vmatprep.subr.mxu0 0.0
  %1818 = vmatpush2.msra.mxu0 0.0
  %1819 = vmatprep.subr.mxu0 0.0
  %1820 = vmatpush2.msra.mxu0 0.0
  %1821 = vmatprep.subr.mxu0 0.0
  %1822 = vmatpush2.msra.mxu0 0.0
  %1823 = vmatprep.subr.mxu0 0.0
  %1824 = vmatpush2.msra.mxu0 0.0
  %1825 = vmatprep.subr.mxu0 0.0
  %1826 = vmatpush2.msra.mxu0 0.0
  %1827 = vmatprep.mubr.f32.mxu0 0.0
  %1828 = vmatmul.mubr.f32.gmra.mxu0 %v1740
  %v1829 = vpop.f32.mrf.mxu0
  %v1830 = vadd.f32 %v1737, %v1829
  %v1831 = vpop.f32.mrf.mxu0
  %1832 = vmatprep.mubr.f32.mxu0 0.0
  %1833 = vmatmul.mubr.f32.gmra.mxu0 %v1743
  %v1834 = vpop.f32.mrf.mxu0
  %v1835 = vadd.f32 %v1737, %v1834
  %v1836 = vpop.f32.mrf.mxu0
  %1837 = vmatprep.mubr.f32.mxu0 0.0
  %1838 = vmatmul.mubr.f32.gmra.mxu0 %v1746
  %v1839 = vpop.f32.mrf.mxu0
  %v1840 = vadd.f32 %v1737, %v1839
  %v1841 = vpop.f32.mrf.mxu0
  %1842 = vmatprep.mubr.f32.mxu0 0.0
  %1843 = vmatmul.mubr.f32.gmra.mxu0 %v1749
  %v1844 = vpop.f32.mrf.mxu0
  %v1845 = vadd.f32 %v1737, %v1844
  %v1846 = vpop.f32.mrf.mxu0
  %1847 = vmatprep.mubr.f32.mxu0 0.0
  %1848 = vmatmul.mubr.f32.gmra.mxu0 %v1752
  %v1849 = vpop.f32.mrf.mxu0
  %v1850 = vadd.f32 %v1737, %v1849
  %v1851 = vpop.f32.mrf.mxu0
  %1852 = vmatprep.mubr.f32.mxu0 0.0
  %1853 = vmatmul.mubr.f32.gmra.mxu0 %v1755
  %v1854 = vpop.f32.mrf.mxu0
  %v1855 = vadd.f32 %v1737, %v1854
  %v1856 = vpop.f32.mrf.mxu0
  %1857 = vmatprep.mubr.f32.mxu0 0.0
  %1858 = vmatmul.mubr.f32.gmra.mxu0 %v1758
  %v1859 = vpop.f32.mrf.mxu0
  %v1860 = vadd.f32 %v1737, %v1859
  %v1861 = vpop.f32.mrf.mxu0
  %1862 = vmatprep.mubr.f32.mxu0 0.0
  %1863 = vmatmul.mubr.f32.gmra.mxu0 %v1761
  %v1864 = vpop.f32.mrf.mxu0
  %v1865 = vadd.f32 %v1737, %v1864
  %v1866 = vpop.f32.mrf.mxu0
  %1867 = vdwg.mxu0
  %v1868 = vmax.f32 %v1830, 0.0
  %v1869 = vmax.f32 %v1835, 0.0
  %v1870 = vmax.f32 %v1840, 0.0
  %v1871 = vmax.f32 %v1845, 0.0
  %v1872 = vmax.f32 %v1850, 0.0
  %v1873 = vmax.f32 %v1855, 0.0
  %v1874 = vmax.f32 %v1860, 0.0
  %v1875 = vmax.f32 %v1865, 0.0
  %v1876 = vld [vmem:[%s10] sm:$0xff]
  %v1877 = vld [vmem:[%s10 + $0x8] sm:$0xff]
  %v1878 = vld [vmem:[%s10 + $0x10] sm:$0xff]
  %v1879 = vld [vmem:[%s10 + $0x18] sm:$0xff]
  %v1880 = vld [vmem:[%s10 + $0x20] sm:$0xff]
  %v1881 = vld [vmem:[%s10 + $0x28] sm:$0xff]
  %v1882 = vld [vmem:[%s10 + $0x30] sm:$0xff]
  %v1883 = vld [vmem:[%s10 + $0x38] sm:$0xff]
  %1884 = vrot.lane.b32.xlu0 %v1737, 64
  %v1885 = vpop.permute.xlu0 %1884
  %v1888 = vsel %vm125, %v1868, 0
  %v1891 = vsel %vm125, %v1869, 0
  %v1894 = vsel %vm125, %v1870, 0
  %v1897 = vsel %vm125, %v1871, 0
  %v1900 = vsel %vm125, %v1872, 0
  %v1903 = vsel %vm125, %v1873, 0
  %v1906 = vsel %vm125, %v1874, 0
  %v1909 = vsel %vm125, %v1875, 0
  %1911 = vmatprep.subr.mxu0 0.0
  %1912 = vmatpush1.msra.mxu0 0.0
  %1913 = vmatprep.subr.mxu0 0.0
  %1914 = vmatpush1.msra.mxu0 0.0
  %1915 = vmatprep.subr.mxu0 0.0
  %1916 = vmatpush1.msra.mxu0 0.0
  %1917 = vmatprep.subr.mxu0 0.0
  %1918 = vmatpush1.msra.mxu0 0.0
  %1919 = vmatprep.subr.mxu0 0.0
  %1920 = vmatpush1.msra.mxu0 0.0
  %1921 = vmatprep.subr.mxu0 0.0
  %1922 = vmatpush1.msra.mxu0 0.0
  %1923 = vmatprep.subr.mxu0 0.0
  %1924 = vmatpush1.msra.mxu0 0.0
  %1925 = vmatprep.subr.mxu0 0.0
  %1926 = vmatpush1.msra.mxu0 0.0
  %1927 = vmatprep.subr.mxu0 0.0
  %1928 = vmatpush1.msra.mxu0 %v1883
  %1929 = vmatprep.subr.mxu0 0.0
  %1930 = vmatpush1.msra.mxu0 %v1882
  %1931 = vmatprep.subr.mxu0 0.0
  %1932 = vmatpush1.msra.mxu0 %v1881
  %1933 = vmatprep.subr.mxu0 0.0
  %1934 = vmatpush1.msra.mxu0 %v1880
  %1935 = vmatprep.subr.mxu0 0.0
  %1936 = vmatpush1.msra.mxu0 %v1879
  %1937 = vmatprep.subr.mxu0 0.0
  %1938 = vmatpush1.msra.mxu0 %v1878
  %1939 = vmatprep.subr.mxu0 0.0
  %1940 = vmatpush1.msra.mxu0 %v1877
  %1941 = vmatprep.subr.mxu0 0.0
  %1942 = vmatpush1.msra.mxu0 %v1876
  %1943 = vmatprep.subr.mxu0 0.0
  %1944 = vmatpush2.msra.mxu0 0.0
  %1945 = vmatprep.subr.mxu0 0.0
  %1946 = vmatpush2.msra.mxu0 0.0
  %1947 = vmatprep.subr.mxu0 0.0
  %1948 = vmatpush2.msra.mxu0 0.0
  %1949 = vmatprep.subr.mxu0 0.0
  %1950 = vmatpush2.msra.mxu0 0.0
  %1951 = vmatprep.subr.mxu0 0.0
  %1952 = vmatpush2.msra.mxu0 0.0
  %1953 = vmatprep.subr.mxu0 0.0
  %1954 = vmatpush2.msra.mxu0 0.0
  %1955 = vmatprep.subr.mxu0 0.0
  %1956 = vmatpush2.msra.mxu0 0.0
  %1957 = vmatprep.subr.mxu0 0.0
  %1958 = vmatpush2.msra.mxu0 0.0
  %1959 = vmatprep.subr.mxu0 0.0
  %1960 = vmatpush2.msra.mxu0 0.0
  %1961 = vmatprep.subr.mxu0 0.0
  %1962 = vmatpush2.msra.mxu0 0.0
  %1963 = vmatprep.subr.mxu0 0.0
  %1964 = vmatpush2.msra.mxu0 0.0
  %1965 = vmatprep.subr.mxu0 0.0
  %1966 = vmatpush2.msra.mxu0 0.0
  %1967 = vmatprep.subr.mxu0 0.0
  %1968 = vmatpush2.msra.mxu0 0.0
  %1969 = vmatprep.subr.mxu0 0.0
  %1970 = vmatpush2.msra.mxu0 0.0
  %1971 = vmatprep.subr.mxu0 0.0
  %1972 = vmatpush2.msra.mxu0 0.0
  %1973 = vmatprep.subr.mxu0 0.0
  %1974 = vmatpush2.msra.mxu0 0.0
  %1975 = vmatprep.mubr.f32.mxu0 0.0
  %1976 = vmatmul.mubr.f32.gmra.mxu0 %v1888
  %v1977 = vpop.f32.mrf.mxu0
  %v1978 = vadd.f32 %v1885, %v1977
  %v1979 = vpop.f32.mrf.mxu0
  %1980 = vmatprep.mubr.f32.mxu0 0.0
  %1981 = vmatmul.mubr.f32.gmra.mxu0 %v1891
  %v1982 = vpop.f32.mrf.mxu0
  %v1983 = vadd.f32 %v1885, %v1982
  %v1984 = vpop.f32.mrf.mxu0
  %1985 = vmatprep.mubr.f32.mxu0 0.0
  %1986 = vmatmul.mubr.f32.gmra.mxu0 %v1894
  %v1987 = vpop.f32.mrf.mxu0
  %v1988 = vadd.f32 %v1885, %v1987
  %v1989 = vpop.f32.mrf.mxu0
  %1990 = vmatprep.mubr.f32.mxu0 0.0
  %1991 = vmatmul.mubr.f32.gmra.mxu0 %v1897
  %v1992 = vpop.f32.mrf.mxu0
  %v1993 = vadd.f32 %v1885, %v1992
  %v1994 = vpop.f32.mrf.mxu0
  %1995 = vmatprep.mubr.f32.mxu0 0.0
  %1996 = vmatmul.mubr.f32.gmra.mxu0 %v1900
  %v1997 = vpop.f32.mrf.mxu0
  %v1998 = vadd.f32 %v1885, %v1997
  %v1999 = vpop.f32.mrf.mxu0
  %2000 = vmatprep.mubr.f32.mxu0 0.0
  %2001 = vmatmul.mubr.f32.gmra.mxu0 %v1903
  %v2002 = vpop.f32.mrf.mxu0
  %v2003 = vadd.f32 %v1885, %v2002
  %v2004 = vpop.f32.mrf.mxu0
  %2005 = vmatprep.mubr.f32.mxu0 0.0
  %2006 = vmatmul.mubr.f32.gmra.mxu0 %v1906
  %v2007 = vpop.f32.mrf.mxu0
  %v2008 = vadd.f32 %v1885, %v2007
  %v2009 = vpop.f32.mrf.mxu0
  %2010 = vmatprep.mubr.f32.mxu0 0.0
  %2011 = vmatmul.mubr.f32.gmra.mxu0 %v1909
  %v2012 = vpop.f32.mrf.mxu0
  %v2013 = vadd.f32 %v1885, %v2012
  %v2014 = vpop.f32.mrf.mxu0
  %2015 = vdwg.mxu0
  %v2016 = vadd.f32 %v1720, %v1978
  %v2017 = vadd.f32 %v1721, %v1983
  %v2018 = vadd.f32 %v1722, %v1988
  %v2019 = vadd.f32 %v1723, %v1993
  %v2020 = vadd.f32 %v1724, %v1998
  %v2021 = vadd.f32 %v1725, %v2003
  %v2022 = vadd.f32 %v1726, %v2008
  %v2023 = vadd.f32 %v1727, %v2013
  %v2024 = vsel %vm288, %v2016, 0.0
  %2025 = vadd.xlane.f32.xlu0 %v2024
  %v2026 = vpop.xlane.xlu0 %2025
  %v2027 = vsel %vm288, %v2017, 0.0
  %2028 = vadd.xlane.f32.xlu0 %v2027
  %v2029 = vpop.xlane.xlu0 %2028
  %v2030 = vsel %vm288, %v2018, 0.0
  %2031 = vadd.xlane.f32.xlu0 %v2030
  %v2032 = vpop.xlane.xlu0 %2031
  %v2033 = vsel %vm288, %v2019, 0.0
  %2034 = vadd.xlane.f32.xlu0 %v2033
  %v2035 = vpop.xlane.xlu0 %2034
  %v2036 = vsel %vm288, %v2020, 0.0
  %2037 = vadd.xlane.f32.xlu0 %v2036
  %v2038 = vpop.xlane.xlu0 %2037
  %v2039 = vsel %vm288, %v2021, 0.0
  %2040 = vadd.xlane.f32.xlu0 %v2039
  %v2041 = vpop.xlane.xlu0 %2040
  %v2042 = vsel %vm288, %v2022, 0.0
  %2043 = vadd.xlane.f32.xlu0 %v2042
  %v2044 = vpop.xlane.xlu0 %2043
  %v2045 = vsel %vm288, %v2023, 0.0
  %2046 = vadd.xlane.f32.xlu0 %v2045
  %v2047 = vpop.xlane.xlu0 %2046
  %v2048 = vmul.f32 %v2026, %v1622
  %v2049 = vmul.f32 %v2029, %v1622
  %v2050 = vmul.f32 %v2032, %v1622
  %v2051 = vmul.f32 %v2035, %v1622
  %v2052 = vmul.f32 %v2038, %v1622
  %v2053 = vmul.f32 %v2041, %v1622
  %v2054 = vmul.f32 %v2044, %v1622
  %v2055 = vmul.f32 %v2047, %v1622
  %v2056 = vsub.f32 %v2016, %v2048
  %v2057 = vsub.f32 %v2017, %v2049
  %v2058 = vsub.f32 %v2018, %v2050
  %v2059 = vsub.f32 %v2019, %v2051
  %v2060 = vsub.f32 %v2020, %v2052
  %v2061 = vsub.f32 %v2021, %v2053
  %v2062 = vsub.f32 %v2022, %v2054
  %v2063 = vsub.f32 %v2023, %v2055
  %v2064 = vmul.f32 %v2056, %v2056
  %v2065 = vmul.f32 %v2057, %v2057
  %v2066 = vmul.f32 %v2058, %v2058
  %v2067 = vmul.f32 %v2059, %v2059
  %v2068 = vmul.f32 %v2060, %v2060
  %v2069 = vmul.f32 %v2061, %v2061
  %v2070 = vmul.f32 %v2062, %v2062
  %v2071 = vmul.f32 %v2063, %v2063
  %v2072 = vsel %vm288, %v2064, 0.0
  %2073 = vadd.xlane.f32.xlu0 %v2072
  %v2074 = vpop.xlane.xlu0 %2073
  %v2075 = vsel %vm288, %v2065, 0.0
  %2076 = vadd.xlane.f32.xlu0 %v2075
  %v2077 = vpop.xlane.xlu0 %2076
  %v2078 = vsel %vm288, %v2066, 0.0
  %2079 = vadd.xlane.f32.xlu0 %v2078
  %v2080 = vpop.xlane.xlu0 %2079
  %v2081 = vsel %vm288, %v2067, 0.0
  %2082 = vadd.xlane.f32.xlu0 %v2081
  %v2083 = vpop.xlane.xlu0 %2082
  %v2084 = vsel %vm288, %v2068, 0.0
  %2085 = vadd.xlane.f32.xlu0 %v2084
  %v2086 = vpop.xlane.xlu0 %2085
  %v2087 = vsel %vm288, %v2069, 0.0
  %2088 = vadd.xlane.f32.xlu0 %v2087
  %v2089 = vpop.xlane.xlu0 %2088
  %v2090 = vsel %vm288, %v2070, 0.0
  %2091 = vadd.xlane.f32.xlu0 %v2090
  %v2092 = vpop.xlane.xlu0 %2091
  %v2093 = vsel %vm288, %v2071, 0.0
  %2094 = vadd.xlane.f32.xlu0 %v2093
  %v2095 = vpop.xlane.xlu0 %2094
  %v2096 = vmul.f32 %v2074, %v1622
  %v2097 = vmul.f32 %v2077, %v1622
  %v2098 = vmul.f32 %v2080, %v1622
  %v2099 = vmul.f32 %v2083, %v1622
  %v2100 = vmul.f32 %v2086, %v1622
  %v2101 = vmul.f32 %v2089, %v1622
  %v2102 = vmul.f32 %v2092, %v1622
  %v2103 = vmul.f32 %v2095, %v1622
  %v2104 = vadd.f32 %v2096, 1e-05
  %v2105 = vadd.f32 %v2097, 1e-05
  %v2106 = vadd.f32 %v2098, 1e-05
  %v2107 = vadd.f32 %v2099, 1e-05
  %v2108 = vadd.f32 %v2100, 1e-05
  %v2109 = vadd.f32 %v2101, 1e-05
  %v2110 = vadd.f32 %v2102, 1e-05
  %v2111 = vadd.f32 %v2103, 1e-05
  %v2112 = vrsqrt.pop %v2104
  %v2113 = vrsqrt.pop %v2105
  %v2114 = vrsqrt.pop %v2106
  %v2115 = vrsqrt.pop %v2107
  %v2116 = vrsqrt.pop %v2108
  %v2117 = vrsqrt.pop %v2109
  %v2118 = vrsqrt.pop %v2110
  %v2119 = vrsqrt.pop %v2111
  %v2120 = vmul.f32 %v2056, %v2112
  %v2121 = vmul.f32 %v2057, %v2113
  %v2122 = vmul.f32 %v2058, %v2114
  %v2123 = vmul.f32 %v2059, %v2115
  %v2124 = vmul.f32 %v2060, %v2116
  %v2125 = vmul.f32 %v2061, %v2117
  %v2126 = vmul.f32 %v2062, %v2118
  %v2127 = vmul.f32 %v2063, %v2119
  %2128 = vrot.lane.b32.xlu0 %v1707, 64
  %v2129 = vpop.permute.xlu0 %2128
  %v2131 = vmul.f32 %v2120, %v2129
  %v2132 = vmul.f32 %v2121, %v2129
  %v2133 = vmul.f32 %v2122, %v2129
  %v2134 = vmul.f32 %v2123, %v2129
  %v2135 = vmul.f32 %v2124, %v2129
  %v2136 = vmul.f32 %v2125, %v2129
  %v2137 = vmul.f32 %v2126, %v2129
  %v2138 = vmul.f32 %v2127, %v2129
  %2139 = vrot.lane.b32.xlu0 %v1707, 32
  %v2140 = vpop.permute.xlu0 %2139
  %v2142 = vadd.f32 %v2131, %v2140
  %v2143 = vadd.f32 %v2132, %v2140
  %v2144 = vadd.f32 %v2133, %v2140
  %v2145 = vadd.f32 %v2134, %v2140
  %v2146 = vadd.f32 %v2135, %v2140
  %v2147 = vadd.f32 %v2136, %v2140
  %v2148 = vadd.f32 %v2137, %v2140
  %v2149 = vadd.f32 %v2138, %v2140
  %s2150 = scalar_lea.vmem %s6, 32
  %v2151 = vld [vmem:[%s2150] sm:$0xff]
  %v2152 = vld [vmem:[%s2150 + $0x8] sm:$0xff]
  %v2153 = vld [vmem:[%s2150 + $0x10] sm:$0xff]
  %v2154 = vld [vmem:[%s2150 + $0x18] sm:$0xff]
  %s2155 = scalar_lea.vmem %s7, 1
  %v2156 = vld [vmem:[%s2155] sm:$0x1]
  %s2157 = scalar_lea.vmem %s8, 1
  %v2158 = vld [vmem:[%s2157] sm:$0x1]
  %v2160 = vlaneseq
  %v2161 = vshrl.u32 %v2160, 7
  %v2162 = vsub.s32 0, %v2161
  %v2163 = vrot.slane %v2156, %v2162
  %v2166 = vsel %vm288, %v2142, 0
  %v2169 = vsel %vm288, %v2143, 0
  %v2172 = vsel %vm288, %v2144, 0
  %v2175 = vsel %vm288, %v2145, 0
  %v2178 = vsel %vm288, %v2146, 0
  %v2181 = vsel %vm288, %v2147, 0
  %v2184 = vsel %vm288, %v2148, 0
  %v2187 = vsel %vm288, %v2149, 0
  %2189 = vmatprep.subr.mxu0 0.0
  %2190 = vmatpush1.msra.mxu0 0.0
  %2191 = vmatprep.subr.mxu0 0.0
  %2192 = vmatpush1.msra.mxu0 0.0
  %2193 = vmatprep.subr.mxu0 0.0
  %2194 = vmatpush1.msra.mxu0 0.0
  %2195 = vmatprep.subr.mxu0 0.0
  %2196 = vmatpush1.msra.mxu0 0.0
  %2197 = vmatprep.subr.mxu0 0.0
  %2198 = vmatpush1.msra.mxu0 0.0
  %2199 = vmatprep.subr.mxu0 0.0
  %2200 = vmatpush1.msra.mxu0 0.0
  %2201 = vmatprep.subr.mxu0 0.0
  %2202 = vmatpush1.msra.mxu0 0.0
  %2203 = vmatprep.subr.mxu0 0.0
  %2204 = vmatpush1.msra.mxu0 0.0
  %2205 = vmatprep.subr.mxu0 0.0
  %2206 = vmatpush1.msra.mxu0 0.0
  %2207 = vmatprep.subr.mxu0 0.0
  %2208 = vmatpush1.msra.mxu0 0.0
  %2209 = vmatprep.subr.mxu0 0.0
  %2210 = vmatpush1.msra.mxu0 0.0
  %2211 = vmatprep.subr.mxu0 0.0
  %2212 = vmatpush1.msra.mxu0 0.0
  %2213 = vmatprep.subr.mxu0 0.0
  %2214 = vmatpush1.msra.mxu0 %v2154
  %2215 = vmatprep.subr.mxu0 0.0
  %2216 = vmatpush1.msra.mxu0 %v2153
  %2217 = vmatprep.subr.mxu0 0.0
  %2218 = vmatpush1.msra.mxu0 %v2152
  %2219 = vmatprep.subr.mxu0 0.0
  %2220 = vmatpush1.msra.mxu0 %v2151
  %2221 = vmatprep.subr.mxu0 0.0
  %2222 = vmatpush2.msra.mxu0 0.0
  %2223 = vmatprep.subr.mxu0 0.0
  %2224 = vmatpush2.msra.mxu0 0.0
  %2225 = vmatprep.subr.mxu0 0.0
  %2226 = vmatpush2.msra.mxu0 0.0
  %2227 = vmatprep.subr.mxu0 0.0
  %2228 = vmatpush2.msra.mxu0 0.0
  %2229 = vmatprep.subr.mxu0 0.0
  %2230 = vmatpush2.msra.mxu0 0.0
  %2231 = vmatprep.subr.mxu0 0.0
  %2232 = vmatpush2.msra.mxu0 0.0
  %2233 = vmatprep.subr.mxu0 0.0
  %2234 = vmatpush2.msra.mxu0 0.0
  %2235 = vmatprep.subr.mxu0 0.0
  %2236 = vmatpush2.msra.mxu0 0.0
  %2237 = vmatprep.subr.mxu0 0.0
  %2238 = vmatpush2.msra.mxu0 0.0
  %2239 = vmatprep.subr.mxu0 0.0
  %2240 = vmatpush2.msra.mxu0 0.0
  %2241 = vmatprep.subr.mxu0 0.0
  %2242 = vmatpush2.msra.mxu0 0.0
  %2243 = vmatprep.subr.mxu0 0.0
  %2244 = vmatpush2.msra.mxu0 0.0
  %2245 = vmatprep.subr.mxu0 0.0
  %2246 = vmatpush2.msra.mxu0 0.0
  %2247 = vmatprep.subr.mxu0 0.0
  %2248 = vmatpush2.msra.mxu0 0.0
  %2249 = vmatprep.subr.mxu0 0.0
  %2250 = vmatpush2.msra.mxu0 0.0
  %2251 = vmatprep.subr.mxu0 0.0
  %2252 = vmatpush2.msra.mxu0 0.0
  %2253 = vmatprep.mubr.f32.mxu0 0.0
  %2254 = vmatmul.mubr.f32.gmra.mxu0 %v2166
  %v2255 = vpop.f32.mrf.mxu0
  %v2256 = vadd.f32 %v2163, %v2255
  %v2257 = vpop.f32.mrf.mxu0
  %2258 = vmatprep.mubr.f32.mxu0 0.0
  %2259 = vmatmul.mubr.f32.gmra.mxu0 %v2169
  %v2260 = vpop.f32.mrf.mxu0
  %v2261 = vadd.f32 %v2163, %v2260
  %v2262 = vpop.f32.mrf.mxu0
  %2263 = vmatprep.mubr.f32.mxu0 0.0
  %2264 = vmatmul.mubr.f32.gmra.mxu0 %v2172
  %v2265 = vpop.f32.mrf.mxu0
  %v2266 = vadd.f32 %v2163, %v2265
  %v2267 = vpop.f32.mrf.mxu0
  %2268 = vmatprep.mubr.f32.mxu0 0.0
  %2269 = vmatmul.mubr.f32.gmra.mxu0 %v2175
  %v2270 = vpop.f32.mrf.mxu0
  %v2271 = vadd.f32 %v2163, %v2270
  %v2272 = vpop.f32.mrf.mxu0
  %2273 = vmatprep.mubr.f32.mxu0 0.0
  %2274 = vmatmul.mubr.f32.gmra.mxu0 %v2178
  %v2275 = vpop.f32.mrf.mxu0
  %v2276 = vadd.f32 %v2163, %v2275
  %v2277 = vpop.f32.mrf.mxu0
  %2278 = vmatprep.mubr.f32.mxu0 0.0
  %2279 = vmatmul.mubr.f32.gmra.mxu0 %v2181
  %v2280 = vpop.f32.mrf.mxu0
  %v2281 = vadd.f32 %v2163, %v2280
  %v2282 = vpop.f32.mrf.mxu0
  %2283 = vmatprep.mubr.f32.mxu0 0.0
  %2284 = vmatmul.mubr.f32.gmra.mxu0 %v2184
  %v2285 = vpop.f32.mrf.mxu0
  %v2286 = vadd.f32 %v2163, %v2285
  %v2287 = vpop.f32.mrf.mxu0
  %2288 = vmatprep.mubr.f32.mxu0 0.0
  %2289 = vmatmul.mubr.f32.gmra.mxu0 %v2187
  %v2290 = vpop.f32.mrf.mxu0
  %v2291 = vadd.f32 %v2163, %v2290
  %v2292 = vpop.f32.mrf.mxu0
  %2293 = vdwg.mxu0
  %2302 = vrot.lane.b32.xlu0 %v2256, 96
  %v2303 = vpop.permute.xlu0 %2302
  %2304 = vrot.lane.b32.xlu0 %v2261, 96
  %v2305 = vpop.permute.xlu0 %2304
  %2306 = vrot.lane.b32.xlu0 %v2266, 96
  %v2307 = vpop.permute.xlu0 %2306
  %2308 = vrot.lane.b32.xlu0 %v2271, 96
  %v2309 = vpop.permute.xlu0 %2308
  %2310 = vrot.lane.b32.xlu0 %v2276, 96
  %v2311 = vpop.permute.xlu0 %2310
  %2312 = vrot.lane.b32.xlu0 %v2281, 96
  %v2313 = vpop.permute.xlu0 %2312
  %2314 = vrot.lane.b32.xlu0 %v2286, 96
  %v2315 = vpop.permute.xlu0 %2314
  %2316 = vrot.lane.b32.xlu0 %v2291, 96
  %v2317 = vpop.permute.xlu0 %2316
  %v2318 = vsel %vm442, %v2256, 0
  %v2320 = vsel %vm442, %v2261, 0
  %v2322 = vsel %vm442, %v2266, 0
  %v2324 = vsel %vm442, %v2271, 0
  %v2326 = vsel %vm442, %v2276, 0
  %v2328 = vsel %vm442, %v2281, 0
  %v2330 = vsel %vm442, %v2286, 0
  %v2332 = vsel %vm442, %v2291, 0
  %v2334 = vsel %vm442, %v2303, 0
  %v2336 = vsel %vm442, %v2305, 0
  %v2338 = vsel %vm442, %v2307, 0
  %v2340 = vsel %vm442, %v2309, 0
  %v2342 = vsel %vm442, %v2311, 0
  %v2344 = vsel %vm442, %v2313, 0
  %v2346 = vsel %vm442, %v2315, 0
  %v2348 = vsel %vm442, %v2317, 0
  %2350 = vmatprep.subr.mxu0 0.0
  %2351 = vmatpush1.xpose.msra.mxu0 0.0
  %2352 = vmatprep.subr.mxu0 0.0
  %2353 = vmatpush1.xpose.msra.mxu0 0.0
  %2354 = vmatprep.subr.mxu0 0.0
  %2355 = vmatpush1.xpose.msra.mxu0 0.0
  %2356 = vmatprep.subr.mxu0 0.0
  %2357 = vmatpush1.xpose.msra.mxu0 0.0
  %2358 = vmatprep.subr.mxu0 0.0
  %2359 = vmatpush1.xpose.msra.mxu0 0.0
  %2360 = vmatprep.subr.mxu0 0.0
  %2361 = vmatpush1.xpose.msra.mxu0 0.0
  %2362 = vmatprep.subr.mxu0 0.0
  %2363 = vmatpush1.xpose.msra.mxu0 0.0
  %2364 = vmatprep.subr.mxu0 0.0
  %2365 = vmatpush1.xpose.msra.mxu0 0.0
  %2366 = vmatprep.subr.mxu0 0.0
  %2367 = vmatpush1.xpose.msra.mxu0 %v2348
  %2368 = vmatprep.subr.mxu0 0.0
  %2369 = vmatpush1.xpose.msra.mxu0 %v2346
  %2370 = vmatprep.subr.mxu0 0.0
  %2371 = vmatpush1.xpose.msra.mxu0 %v2344
  %2372 = vmatprep.subr.mxu0 0.0
  %2373 = vmatpush1.xpose.msra.mxu0 %v2342
  %2374 = vmatprep.subr.mxu0 0.0
  %2375 = vmatpush1.xpose.msra.mxu0 %v2340
  %2376 = vmatprep.subr.mxu0 0.0
  %2377 = vmatpush1.xpose.msra.mxu0 %v2338
  %2378 = vmatprep.subr.mxu0 0.0
  %2379 = vmatpush1.xpose.msra.mxu0 %v2336
  %2380 = vmatprep.subr.mxu0 0.0
  %2381 = vmatpush1.xpose.msra.mxu0 %v2334
  %2382 = vmatprep.subr.mxu0 0.0
  %2383 = vmatpush2.xpose.msra.mxu0 0.0
  %2384 = vmatprep.subr.mxu0 0.0
  %2385 = vmatpush2.xpose.msra.mxu0 0.0
  %2386 = vmatprep.subr.mxu0 0.0
  %2387 = vmatpush2.xpose.msra.mxu0 0.0
  %2388 = vmatprep.subr.mxu0 0.0
  %2389 = vmatpush2.xpose.msra.mxu0 0.0
  %2390 = vmatprep.subr.mxu0 0.0
  %2391 = vmatpush2.xpose.msra.mxu0 0.0
  %2392 = vmatprep.subr.mxu0 0.0
  %2393 = vmatpush2.xpose.msra.mxu0 0.0
  %2394 = vmatprep.subr.mxu0 0.0
  %2395 = vmatpush2.xpose.msra.mxu0 0.0
  %2396 = vmatprep.subr.mxu0 0.0
  %2397 = vmatpush2.xpose.msra.mxu0 0.0
  %2398 = vmatprep.subr.mxu0 0.0
  %2399 = vmatpush2.xpose.msra.mxu0 0.0
  %2400 = vmatprep.subr.mxu0 0.0
  %2401 = vmatpush2.xpose.msra.mxu0 0.0
  %2402 = vmatprep.subr.mxu0 0.0
  %2403 = vmatpush2.xpose.msra.mxu0 0.0
  %2404 = vmatprep.subr.mxu0 0.0
  %2405 = vmatpush2.xpose.msra.mxu0 0.0
  %2406 = vmatprep.subr.mxu0 0.0
  %2407 = vmatpush2.xpose.msra.mxu0 0.0
  %2408 = vmatprep.subr.mxu0 0.0
  %2409 = vmatpush2.xpose.msra.mxu0 0.0
  %2410 = vmatprep.subr.mxu0 0.0
  %2411 = vmatpush2.xpose.msra.mxu0 0.0
  %2412 = vmatprep.subr.mxu0 0.0
  %2413 = vmatpush2.xpose.msra.mxu0 0.0
  %2414 = vmatprep.mubr.f32.mxu0 0.0
  %2415 = vmatmul.mubr.f32.gmra.mxu0 %v2318
  %v2416 = vpop.f32.mrf.mxu0
  %v2417 = vadd.f32 0.0, %v2416
  %v2418 = vpop.f32.mrf.mxu0
  %2419 = vmatprep.mubr.f32.mxu0 0.0
  %2420 = vmatmul.mubr.f32.gmra.mxu0 %v2320
  %v2421 = vpop.f32.mrf.mxu0
  %v2422 = vadd.f32 0.0, %v2421
  %v2423 = vpop.f32.mrf.mxu0
  %2424 = vmatprep.mubr.f32.mxu0 0.0
  %2425 = vmatmul.mubr.f32.gmra.mxu0 %v2322
  %v2426 = vpop.f32.mrf.mxu0
  %v2427 = vadd.f32 0.0, %v2426
  %v2428 = vpop.f32.mrf.mxu0
  %2429 = vmatprep.mubr.f32.mxu0 0.0
  %2430 = vmatmul.mubr.f32.gmra.mxu0 %v2324
  %v2431 = vpop.f32.mrf.mxu0
  %v2432 = vadd.f32 0.0, %v2431
  %v2433 = vpop.f32.mrf.mxu0
  %2434 = vmatprep.mubr.f32.mxu0 0.0
  %2435 = vmatmul.mubr.f32.gmra.mxu0 %v2326
  %v2436 = vpop.f32.mrf.mxu0
  %v2437 = vadd.f32 0.0, %v2436
  %v2438 = vpop.f32.mrf.mxu0
  %2439 = vmatprep.mubr.f32.mxu0 0.0
  %2440 = vmatmul.mubr.f32.gmra.mxu0 %v2328
  %v2441 = vpop.f32.mrf.mxu0
  %v2442 = vadd.f32 0.0, %v2441
  %v2443 = vpop.f32.mrf.mxu0
  %2444 = vmatprep.mubr.f32.mxu0 0.0
  %2445 = vmatmul.mubr.f32.gmra.mxu0 %v2330
  %v2446 = vpop.f32.mrf.mxu0
  %v2447 = vadd.f32 0.0, %v2446
  %v2448 = vpop.f32.mrf.mxu0
  %2449 = vmatprep.mubr.f32.mxu0 0.0
  %2450 = vmatmul.mubr.f32.gmra.mxu0 %v2332
  %v2451 = vpop.f32.mrf.mxu0
  %v2452 = vadd.f32 0.0, %v2451
  %v2453 = vpop.f32.mrf.mxu0
  %2454 = vdwg.mxu0
  %v2455 = vsel %vm630, %v2417, -1e+09
  %v2456 = vsel %vm631, %v2422, -1e+09
  %v2457 = vsel %vm632, %v2427, -1e+09
  %v2458 = vsel %vm633, %v2432, -1e+09
  %v2459 = vsel %vm634, %v2437, -1e+09
  %v2460 = vsel %vm635, %v2442, -1e+09
  %v2461 = vsel %vm636, %v2447, -1e+09
  %v2462 = vsel %vm637, %v2452, -1e+09
  %v2463 = vsel %vm125, %v2455, -inf
  %2464 = vmax.xlane.f32.xlu0 %v2463
  %v2465 = vpop.xlane.xlu0 %2464
  %v2466 = vsel %vm125, %v2456, -inf
  %2467 = vmax.xlane.f32.xlu0 %v2466
  %v2468 = vpop.xlane.xlu0 %2467
  %v2469 = vsel %vm125, %v2457, -inf
  %2470 = vmax.xlane.f32.xlu0 %v2469
  %v2471 = vpop.xlane.xlu0 %2470
  %v2472 = vsel %vm125, %v2458, -inf
  %2473 = vmax.xlane.f32.xlu0 %v2472
  %v2474 = vpop.xlane.xlu0 %2473
  %v2475 = vsel %vm125, %v2459, -inf
  %2476 = vmax.xlane.f32.xlu0 %v2475
  %v2477 = vpop.xlane.xlu0 %2476
  %v2478 = vsel %vm125, %v2460, -inf
  %2479 = vmax.xlane.f32.xlu0 %v2478
  %v2480 = vpop.xlane.xlu0 %2479
  %v2481 = vsel %vm125, %v2461, -inf
  %2482 = vmax.xlane.f32.xlu0 %v2481
  %v2483 = vpop.xlane.xlu0 %2482
  %v2484 = vsel %vm125, %v2462, -inf
  %2485 = vmax.xlane.f32.xlu0 %v2484
  %v2486 = vpop.xlane.xlu0 %2485
  %v2487 = vsub.f32 %v2455, %v2465
  %v2488 = vsub.f32 %v2456, %v2468
  %v2489 = vsub.f32 %v2457, %v2471
  %v2490 = vsub.f32 %v2458, %v2474
  %v2491 = vsub.f32 %v2459, %v2477
  %v2492 = vsub.f32 %v2460, %v2480
  %v2493 = vsub.f32 %v2461, %v2483
  %v2494 = vsub.f32 %v2462, %v2486
  %v2495 = vmul.f32 %v2487, 1.442695
  %v2496 = vpow.pop %v2495
  %v2497 = vmul.f32 %v2488, 1.442695
  %v2498 = vpow.pop %v2497
  %v2499 = vmul.f32 %v2489, 1.442695
  %v2500 = vpow.pop %v2499
  %v2501 = vmul.f32 %v2490, 1.442695
  %v2502 = vpow.pop %v2501
  %v2503 = vmul.f32 %v2491, 1.442695
  %v2504 = vpow.pop %v2503
  %v2505 = vmul.f32 %v2492, 1.442695
  %v2506 = vpow.pop %v2505
  %v2507 = vmul.f32 %v2493, 1.442695
  %v2508 = vpow.pop %v2507
  %v2509 = vmul.f32 %v2494, 1.442695
  %v2510 = vpow.pop %v2509
  %v2511 = vsel %vm125, %v2496, 0.0
  %2512 = vadd.xlane.f32.xlu0 %v2511
  %v2513 = vpop.xlane.xlu0 %2512
  %v2514 = vsel %vm125, %v2498, 0.0
  %2515 = vadd.xlane.f32.xlu0 %v2514
  %v2516 = vpop.xlane.xlu0 %2515
  %v2517 = vsel %vm125, %v2500, 0.0
  %2518 = vadd.xlane.f32.xlu0 %v2517
  %v2519 = vpop.xlane.xlu0 %2518
  %v2520 = vsel %vm125, %v2502, 0.0
  %2521 = vadd.xlane.f32.xlu0 %v2520
  %v2522 = vpop.xlane.xlu0 %2521
  %v2523 = vsel %vm125, %v2504, 0.0
  %2524 = vadd.xlane.f32.xlu0 %v2523
  %v2525 = vpop.xlane.xlu0 %2524
  %v2526 = vsel %vm125, %v2506, 0.0
  %2527 = vadd.xlane.f32.xlu0 %v2526
  %v2528 = vpop.xlane.xlu0 %2527
  %v2529 = vsel %vm125, %v2508, 0.0
  %2530 = vadd.xlane.f32.xlu0 %v2529
  %v2531 = vpop.xlane.xlu0 %2530
  %v2532 = vsel %vm125, %v2510, 0.0
  %2533 = vadd.xlane.f32.xlu0 %v2532
  %v2534 = vpop.xlane.xlu0 %2533
  %v2535 = vrcp.pop %v2513
  %v2536 = vrcp.pop %v2516
  %v2537 = vrcp.pop %v2519
  %v2538 = vrcp.pop %v2522
  %v2539 = vrcp.pop %v2525
  %v2540 = vrcp.pop %v2528
  %v2541 = vrcp.pop %v2531
  %v2542 = vrcp.pop %v2534
  %v2543 = vmul.f32 %v2496, %v2535
  %v2544 = vmul.f32 %v2498, %v2536
  %v2545 = vmul.f32 %v2500, %v2537
  %v2546 = vmul.f32 %v2502, %v2538
  %v2547 = vmul.f32 %v2504, %v2539
  %v2548 = vmul.f32 %v2506, %v2540
  %v2549 = vmul.f32 %v2508, %v2541
  %v2550 = vmul.f32 %v2510, %v2542
  %2551 = vrot.lane.b32.xlu0 %v2256, 64
  %v2552 = vpop.permute.xlu0 %2551
  %2553 = vrot.lane.b32.xlu0 %v2261, 64
  %v2554 = vpop.permute.xlu0 %2553
  %2555 = vrot.lane.b32.xlu0 %v2266, 64
  %v2556 = vpop.permute.xlu0 %2555
  %2557 = vrot.lane.b32.xlu0 %v2271, 64
  %v2558 = vpop.permute.xlu0 %2557
  %2559 = vrot.lane.b32.xlu0 %v2276, 64
  %v2560 = vpop.permute.xlu0 %2559
  %2561 = vrot.lane.b32.xlu0 %v2281, 64
  %v2562 = vpop.permute.xlu0 %2561
  %2563 = vrot.lane.b32.xlu0 %v2286, 64
  %v2564 = vpop.permute.xlu0 %2563
  %2565 = vrot.lane.b32.xlu0 %v2291, 64
  %v2566 = vpop.permute.xlu0 %2565
  %v2576 = vsel %vm125, %v2543, 0
  %v2579 = vsel %vm125, %v2544, 0
  %v2582 = vsel %vm125, %v2545, 0
  %v2585 = vsel %vm125, %v2546, 0
  %v2588 = vsel %vm125, %v2547, 0
  %v2591 = vsel %vm125, %v2548, 0
  %v2594 = vsel %vm125, %v2549, 0
  %v2597 = vsel %vm125, %v2550, 0
  %2599 = vmatprep.subr.mxu0 0.0
  %2600 = vmatpush1.msra.mxu0 0.0
  %2601 = vmatprep.subr.mxu0 0.0
  %2602 = vmatpush1.msra.mxu0 0.0
  %2603 = vmatprep.subr.mxu0 0.0
  %2604 = vmatpush1.msra.mxu0 0.0
  %2605 = vmatprep.subr.mxu0 0.0
  %2606 = vmatpush1.msra.mxu0 0.0
  %2607 = vmatprep.subr.mxu0 0.0
  %2608 = vmatpush1.msra.mxu0 0.0
  %2609 = vmatprep.subr.mxu0 0.0
  %2610 = vmatpush1.msra.mxu0 0.0
  %2611 = vmatprep.subr.mxu0 0.0
  %2612 = vmatpush1.msra.mxu0 0.0
  %2613 = vmatprep.subr.mxu0 0.0
  %2614 = vmatpush1.msra.mxu0 0.0
  %2615 = vmatprep.subr.mxu0 0.0
  %2616 = vmatpush1.msra.mxu0 %v2566
  %2617 = vmatprep.subr.mxu0 0.0
  %2618 = vmatpush1.msra.mxu0 %v2564
  %2619 = vmatprep.subr.mxu0 0.0
  %2620 = vmatpush1.msra.mxu0 %v2562
  %2621 = vmatprep.subr.mxu0 0.0
  %2622 = vmatpush1.msra.mxu0 %v2560
  %2623 = vmatprep.subr.mxu0 0.0
  %2624 = vmatpush1.msra.mxu0 %v2558
  %2625 = vmatprep.subr.mxu0 0.0
  %2626 = vmatpush1.msra.mxu0 %v2556
  %2627 = vmatprep.subr.mxu0 0.0
  %2628 = vmatpush1.msra.mxu0 %v2554
  %2629 = vmatprep.subr.mxu0 0.0
  %2630 = vmatpush1.msra.mxu0 %v2552
  %2631 = vmatprep.subr.mxu0 0.0
  %2632 = vmatpush2.msra.mxu0 0.0
  %2633 = vmatprep.subr.mxu0 0.0
  %2634 = vmatpush2.msra.mxu0 0.0
  %2635 = vmatprep.subr.mxu0 0.0
  %2636 = vmatpush2.msra.mxu0 0.0
  %2637 = vmatprep.subr.mxu0 0.0
  %2638 = vmatpush2.msra.mxu0 0.0
  %2639 = vmatprep.subr.mxu0 0.0
  %2640 = vmatpush2.msra.mxu0 0.0
  %2641 = vmatprep.subr.mxu0 0.0
  %2642 = vmatpush2.msra.mxu0 0.0
  %2643 = vmatprep.subr.mxu0 0.0
  %2644 = vmatpush2.msra.mxu0 0.0
  %2645 = vmatprep.subr.mxu0 0.0
  %2646 = vmatpush2.msra.mxu0 0.0
  %2647 = vmatprep.subr.mxu0 0.0
  %2648 = vmatpush2.msra.mxu0 0.0
  %2649 = vmatprep.subr.mxu0 0.0
  %2650 = vmatpush2.msra.mxu0 0.0
  %2651 = vmatprep.subr.mxu0 0.0
  %2652 = vmatpush2.msra.mxu0 0.0
  %2653 = vmatprep.subr.mxu0 0.0
  %2654 = vmatpush2.msra.mxu0 0.0
  %2655 = vmatprep.subr.mxu0 0.0
  %2656 = vmatpush2.msra.mxu0 0.0
  %2657 = vmatprep.subr.mxu0 0.0
  %2658 = vmatpush2.msra.mxu0 0.0
  %2659 = vmatprep.subr.mxu0 0.0
  %2660 = vmatpush2.msra.mxu0 0.0
  %2661 = vmatprep.subr.mxu0 0.0
  %2662 = vmatpush2.msra.mxu0 0.0
  %2663 = vmatprep.mubr.f32.mxu0 0.0
  %2664 = vmatmul.mubr.f32.gmra.mxu0 %v2576
  %v2665 = vpop.f32.mrf.mxu0
  %v2666 = vadd.f32 0.0, %v2665
  %v2667 = vpop.f32.mrf.mxu0
  %2668 = vmatprep.mubr.f32.mxu0 0.0
  %2669 = vmatmul.mubr.f32.gmra.mxu0 %v2579
  %v2670 = vpop.f32.mrf.mxu0
  %v2671 = vadd.f32 0.0, %v2670
  %v2672 = vpop.f32.mrf.mxu0
  %2673 = vmatprep.mubr.f32.mxu0 0.0
  %2674 = vmatmul.mubr.f32.gmra.mxu0 %v2582
  %v2675 = vpop.f32.mrf.mxu0
  %v2676 = vadd.f32 0.0, %v2675
  %v2677 = vpop.f32.mrf.mxu0
  %2678 = vmatprep.mubr.f32.mxu0 0.0
  %2679 = vmatmul.mubr.f32.gmra.mxu0 %v2585
  %v2680 = vpop.f32.mrf.mxu0
  %v2681 = vadd.f32 0.0, %v2680
  %v2682 = vpop.f32.mrf.mxu0
  %2683 = vmatprep.mubr.f32.mxu0 0.0
  %2684 = vmatmul.mubr.f32.gmra.mxu0 %v2588
  %v2685 = vpop.f32.mrf.mxu0
  %v2686 = vadd.f32 0.0, %v2685
  %v2687 = vpop.f32.mrf.mxu0
  %2688 = vmatprep.mubr.f32.mxu0 0.0
  %2689 = vmatmul.mubr.f32.gmra.mxu0 %v2591
  %v2690 = vpop.f32.mrf.mxu0
  %v2691 = vadd.f32 0.0, %v2690
  %v2692 = vpop.f32.mrf.mxu0
  %2693 = vmatprep.mubr.f32.mxu0 0.0
  %2694 = vmatmul.mubr.f32.gmra.mxu0 %v2594
  %v2695 = vpop.f32.mrf.mxu0
  %v2696 = vadd.f32 0.0, %v2695
  %v2697 = vpop.f32.mrf.mxu0
  %2698 = vmatprep.mubr.f32.mxu0 0.0
  %2699 = vmatmul.mubr.f32.gmra.mxu0 %v2597
  %v2700 = vpop.f32.mrf.mxu0
  %v2701 = vadd.f32 0.0, %v2700
  %v2702 = vpop.f32.mrf.mxu0
  %2703 = vdwg.mxu0
  %2704 = vrot.lane.b32.xlu0 %v2256, 112
  %v2705 = vpop.permute.xlu0 %2704
  %2706 = vrot.lane.b32.xlu0 %v2261, 112
  %v2707 = vpop.permute.xlu0 %2706
  %2708 = vrot.lane.b32.xlu0 %v2266, 112
  %v2709 = vpop.permute.xlu0 %2708
  %2710 = vrot.lane.b32.xlu0 %v2271, 112
  %v2711 = vpop.permute.xlu0 %2710
  %2712 = vrot.lane.b32.xlu0 %v2276, 112
  %v2713 = vpop.permute.xlu0 %2712
  %2714 = vrot.lane.b32.xlu0 %v2281, 112
  %v2715 = vpop.permute.xlu0 %2714
  %2716 = vrot.lane.b32.xlu0 %v2286, 112
  %v2717 = vpop.permute.xlu0 %2716
  %2718 = vrot.lane.b32.xlu0 %v2291, 112
  %v2719 = vpop.permute.xlu0 %2718
  %2720 = vrot.lane.b32.xlu0 %v2256, 80
  %v2721 = vpop.permute.xlu0 %2720
  %2722 = vrot.lane.b32.xlu0 %v2261, 80
  %v2723 = vpop.permute.xlu0 %2722
  %2724 = vrot.lane.b32.xlu0 %v2266, 80
  %v2725 = vpop.permute.xlu0 %2724
  %2726 = vrot.lane.b32.xlu0 %v2271, 80
  %v2727 = vpop.permute.xlu0 %2726
  %2728 = vrot.lane.b32.xlu0 %v2276, 80
  %v2729 = vpop.permute.xlu0 %2728
  %2730 = vrot.lane.b32.xlu0 %v2281, 80
  %v2731 = vpop.permute.xlu0 %2730
  %2732 = vrot.lane.b32.xlu0 %v2286, 80
  %v2733 = vpop.permute.xlu0 %2732
  %2734 = vrot.lane.b32.xlu0 %v2291, 80
  %v2735 = vpop.permute.xlu0 %2734
  %v2736 = vsel %vm442, %v2705, 0
  %v2738 = vsel %vm442, %v2707, 0
  %v2740 = vsel %vm442, %v2709, 0
  %v2742 = vsel %vm442, %v2711, 0
  %v2744 = vsel %vm442, %v2713, 0
  %v2746 = vsel %vm442, %v2715, 0
  %v2748 = vsel %vm442, %v2717, 0
  %v2750 = vsel %vm442, %v2719, 0
  %v2752 = vsel %vm442, %v2721, 0
  %v2754 = vsel %vm442, %v2723, 0
  %v2756 = vsel %vm442, %v2725, 0
  %v2758 = vsel %vm442, %v2727, 0
  %v2760 = vsel %vm442, %v2729, 0
  %v2762 = vsel %vm442, %v2731, 0
  %v2764 = vsel %vm442, %v2733, 0
  %v2766 = vsel %vm442, %v2735, 0
  %2768 = vmatprep.subr.mxu0 0.0
  %2769 = vmatpush1.xpose.msra.mxu0 0.0
  %2770 = vmatprep.subr.mxu0 0.0
  %2771 = vmatpush1.xpose.msra.mxu0 0.0
  %2772 = vmatprep.subr.mxu0 0.0
  %2773 = vmatpush1.xpose.msra.mxu0 0.0
  %2774 = vmatprep.subr.mxu0 0.0
  %2775 = vmatpush1.xpose.msra.mxu0 0.0
  %2776 = vmatprep.subr.mxu0 0.0
  %2777 = vmatpush1.xpose.msra.mxu0 0.0
  %2778 = vmatprep.subr.mxu0 0.0
  %2779 = vmatpush1.xpose.msra.mxu0 0.0
  %2780 = vmatprep.subr.mxu0 0.0
  %2781 = vmatpush1.xpose.msra.mxu0 0.0
  %2782 = vmatprep.subr.mxu0 0.0
  %2783 = vmatpush1.xpose.msra.mxu0 0.0
  %2784 = vmatprep.subr.mxu0 0.0
  %2785 = vmatpush1.xpose.msra.mxu0 %v2766
  %2786 = vmatprep.subr.mxu0 0.0
  %2787 = vmatpush1.xpose.msra.mxu0 %v2764
  %2788 = vmatprep.subr.mxu0 0.0
  %2789 = vmatpush1.xpose.msra.mxu0 %v2762
  %2790 = vmatprep.subr.mxu0 0.0
  %2791 = vmatpush1.xpose.msra.mxu0 %v2760
  %2792 = vmatprep.subr.mxu0 0.0
  %2793 = vmatpush1.xpose.msra.mxu0 %v2758
  %2794 = vmatprep.subr.mxu0 0.0
  %2795 = vmatpush1.xpose.msra.mxu0 %v2756
  %2796 = vmatprep.subr.mxu0 0.0
  %2797 = vmatpush1.xpose.msra.mxu0 %v2754
  %2798 = vmatprep.subr.mxu0 0.0
  %2799 = vmatpush1.xpose.msra.mxu0 %v2752
  %2800 = vmatprep.subr.mxu0 0.0
  %2801 = vmatpush2.xpose.msra.mxu0 0.0
  %2802 = vmatprep.subr.mxu0 0.0
  %2803 = vmatpush2.xpose.msra.mxu0 0.0
  %2804 = vmatprep.subr.mxu0 0.0
  %2805 = vmatpush2.xpose.msra.mxu0 0.0
  %2806 = vmatprep.subr.mxu0 0.0
  %2807 = vmatpush2.xpose.msra.mxu0 0.0
  %2808 = vmatprep.subr.mxu0 0.0
  %2809 = vmatpush2.xpose.msra.mxu0 0.0
  %2810 = vmatprep.subr.mxu0 0.0
  %2811 = vmatpush2.xpose.msra.mxu0 0.0
  %2812 = vmatprep.subr.mxu0 0.0
  %2813 = vmatpush2.xpose.msra.mxu0 0.0
  %2814 = vmatprep.subr.mxu0 0.0
  %2815 = vmatpush2.xpose.msra.mxu0 0.0
  %2816 = vmatprep.subr.mxu0 0.0
  %2817 = vmatpush2.xpose.msra.mxu0 0.0
  %2818 = vmatprep.subr.mxu0 0.0
  %2819 = vmatpush2.xpose.msra.mxu0 0.0
  %2820 = vmatprep.subr.mxu0 0.0
  %2821 = vmatpush2.xpose.msra.mxu0 0.0
  %2822 = vmatprep.subr.mxu0 0.0
  %2823 = vmatpush2.xpose.msra.mxu0 0.0
  %2824 = vmatprep.subr.mxu0 0.0
  %2825 = vmatpush2.xpose.msra.mxu0 0.0
  %2826 = vmatprep.subr.mxu0 0.0
  %2827 = vmatpush2.xpose.msra.mxu0 0.0
  %2828 = vmatprep.subr.mxu0 0.0
  %2829 = vmatpush2.xpose.msra.mxu0 0.0
  %2830 = vmatprep.subr.mxu0 0.0
  %2831 = vmatpush2.xpose.msra.mxu0 0.0
  %2832 = vmatprep.mubr.f32.mxu0 0.0
  %2833 = vmatmul.mubr.f32.gmra.mxu0 %v2736
  %v2834 = vpop.f32.mrf.mxu0
  %v2835 = vadd.f32 0.0, %v2834
  %v2836 = vpop.f32.mrf.mxu0
  %2837 = vmatprep.mubr.f32.mxu0 0.0
  %2838 = vmatmul.mubr.f32.gmra.mxu0 %v2738
  %v2839 = vpop.f32.mrf.mxu0
  %v2840 = vadd.f32 0.0, %v2839
  %v2841 = vpop.f32.mrf.mxu0
  %2842 = vmatprep.mubr.f32.mxu0 0.0
  %2843 = vmatmul.mubr.f32.gmra.mxu0 %v2740
  %v2844 = vpop.f32.mrf.mxu0
  %v2845 = vadd.f32 0.0, %v2844
  %v2846 = vpop.f32.mrf.mxu0
  %2847 = vmatprep.mubr.f32.mxu0 0.0
  %2848 = vmatmul.mubr.f32.gmra.mxu0 %v2742
  %v2849 = vpop.f32.mrf.mxu0
  %v2850 = vadd.f32 0.0, %v2849
  %v2851 = vpop.f32.mrf.mxu0
  %2852 = vmatprep.mubr.f32.mxu0 0.0
  %2853 = vmatmul.mubr.f32.gmra.mxu0 %v2744
  %v2854 = vpop.f32.mrf.mxu0
  %v2855 = vadd.f32 0.0, %v2854
  %v2856 = vpop.f32.mrf.mxu0
  %2857 = vmatprep.mubr.f32.mxu0 0.0
  %2858 = vmatmul.mubr.f32.gmra.mxu0 %v2746
  %v2859 = vpop.f32.mrf.mxu0
  %v2860 = vadd.f32 0.0, %v2859
  %v2861 = vpop.f32.mrf.mxu0
  %2862 = vmatprep.mubr.f32.mxu0 0.0
  %2863 = vmatmul.mubr.f32.gmra.mxu0 %v2748
  %v2864 = vpop.f32.mrf.mxu0
  %v2865 = vadd.f32 0.0, %v2864
  %v2866 = vpop.f32.mrf.mxu0
  %2867 = vmatprep.mubr.f32.mxu0 0.0
  %2868 = vmatmul.mubr.f32.gmra.mxu0 %v2750
  %v2869 = vpop.f32.mrf.mxu0
  %v2870 = vadd.f32 0.0, %v2869
  %v2871 = vpop.f32.mrf.mxu0
  %2872 = vdwg.mxu0
  %v2873 = vsel %vm630, %v2835, -1e+09
  %v2874 = vsel %vm631, %v2840, -1e+09
  %v2875 = vsel %vm632, %v2845, -1e+09
  %v2876 = vsel %vm633, %v2850, -1e+09
  %v2877 = vsel %vm634, %v2855, -1e+09
  %v2878 = vsel %vm635, %v2860, -1e+09
  %v2879 = vsel %vm636, %v2865, -1e+09
  %v2880 = vsel %vm637, %v2870, -1e+09
  %v2881 = vsel %vm125, %v2873, -inf
  %2882 = vmax.xlane.f32.xlu0 %v2881
  %v2883 = vpop.xlane.xlu0 %2882
  %v2884 = vsel %vm125, %v2874, -inf
  %2885 = vmax.xlane.f32.xlu0 %v2884
  %v2886 = vpop.xlane.xlu0 %2885
  %v2887 = vsel %vm125, %v2875, -inf
  %2888 = vmax.xlane.f32.xlu0 %v2887
  %v2889 = vpop.xlane.xlu0 %2888
  %v2890 = vsel %vm125, %v2876, -inf
  %2891 = vmax.xlane.f32.xlu0 %v2890
  %v2892 = vpop.xlane.xlu0 %2891
  %v2893 = vsel %vm125, %v2877, -inf
  %2894 = vmax.xlane.f32.xlu0 %v2893
  %v2895 = vpop.xlane.xlu0 %2894
  %v2896 = vsel %vm125, %v2878, -inf
  %2897 = vmax.xlane.f32.xlu0 %v2896
  %v2898 = vpop.xlane.xlu0 %2897
  %v2899 = vsel %vm125, %v2879, -inf
  %2900 = vmax.xlane.f32.xlu0 %v2899
  %v2901 = vpop.xlane.xlu0 %2900
  %v2902 = vsel %vm125, %v2880, -inf
  %2903 = vmax.xlane.f32.xlu0 %v2902
  %v2904 = vpop.xlane.xlu0 %2903
  %v2905 = vsub.f32 %v2873, %v2883
  %v2906 = vsub.f32 %v2874, %v2886
  %v2907 = vsub.f32 %v2875, %v2889
  %v2908 = vsub.f32 %v2876, %v2892
  %v2909 = vsub.f32 %v2877, %v2895
  %v2910 = vsub.f32 %v2878, %v2898
  %v2911 = vsub.f32 %v2879, %v2901
  %v2912 = vsub.f32 %v2880, %v2904
  %v2913 = vmul.f32 %v2905, 1.442695
  %v2914 = vpow.pop %v2913
  %v2915 = vmul.f32 %v2906, 1.442695
  %v2916 = vpow.pop %v2915
  %v2917 = vmul.f32 %v2907, 1.442695
  %v2918 = vpow.pop %v2917
  %v2919 = vmul.f32 %v2908, 1.442695
  %v2920 = vpow.pop %v2919
  %v2921 = vmul.f32 %v2909, 1.442695
  %v2922 = vpow.pop %v2921
  %v2923 = vmul.f32 %v2910, 1.442695
  %v2924 = vpow.pop %v2923
  %v2925 = vmul.f32 %v2911, 1.442695
  %v2926 = vpow.pop %v2925
  %v2927 = vmul.f32 %v2912, 1.442695
  %v2928 = vpow.pop %v2927
  %v2929 = vsel %vm125, %v2914, 0.0
  %2930 = vadd.xlane.f32.xlu0 %v2929
  %v2931 = vpop.xlane.xlu0 %2930
  %v2932 = vsel %vm125, %v2916, 0.0
  %2933 = vadd.xlane.f32.xlu0 %v2932
  %v2934 = vpop.xlane.xlu0 %2933
  %v2935 = vsel %vm125, %v2918, 0.0
  %2936 = vadd.xlane.f32.xlu0 %v2935
  %v2937 = vpop.xlane.xlu0 %2936
  %v2938 = vsel %vm125, %v2920, 0.0
  %2939 = vadd.xlane.f32.xlu0 %v2938
  %v2940 = vpop.xlane.xlu0 %2939
  %v2941 = vsel %vm125, %v2922, 0.0
  %2942 = vadd.xlane.f32.xlu0 %v2941
  %v2943 = vpop.xlane.xlu0 %2942
  %v2944 = vsel %vm125, %v2924, 0.0
  %2945 = vadd.xlane.f32.xlu0 %v2944
  %v2946 = vpop.xlane.xlu0 %2945
  %v2947 = vsel %vm125, %v2926, 0.0
  %2948 = vadd.xlane.f32.xlu0 %v2947
  %v2949 = vpop.xlane.xlu0 %2948
  %v2950 = vsel %vm125, %v2928, 0.0
  %2951 = vadd.xlane.f32.xlu0 %v2950
  %v2952 = vpop.xlane.xlu0 %2951
  %v2953 = vrcp.pop %v2931
  %v2954 = vrcp.pop %v2934
  %v2955 = vrcp.pop %v2937
  %v2956 = vrcp.pop %v2940
  %v2957 = vrcp.pop %v2943
  %v2958 = vrcp.pop %v2946
  %v2959 = vrcp.pop %v2949
  %v2960 = vrcp.pop %v2952
  %v2961 = vmul.f32 %v2914, %v2953
  %v2962 = vmul.f32 %v2916, %v2954
  %v2963 = vmul.f32 %v2918, %v2955
  %v2964 = vmul.f32 %v2920, %v2956
  %v2965 = vmul.f32 %v2922, %v2957
  %v2966 = vmul.f32 %v2924, %v2958
  %v2967 = vmul.f32 %v2926, %v2959
  %v2968 = vmul.f32 %v2928, %v2960
  %2969 = vrot.lane.b32.xlu0 %v2256, 48
  %v2970 = vpop.permute.xlu0 %2969
  %2971 = vrot.lane.b32.xlu0 %v2261, 48
  %v2972 = vpop.permute.xlu0 %2971
  %2973 = vrot.lane.b32.xlu0 %v2266, 48
  %v2974 = vpop.permute.xlu0 %2973
  %2975 = vrot.lane.b32.xlu0 %v2271, 48
  %v2976 = vpop.permute.xlu0 %2975
  %2977 = vrot.lane.b32.xlu0 %v2276, 48
  %v2978 = vpop.permute.xlu0 %2977
  %2979 = vrot.lane.b32.xlu0 %v2281, 48
  %v2980 = vpop.permute.xlu0 %2979
  %2981 = vrot.lane.b32.xlu0 %v2286, 48
  %v2982 = vpop.permute.xlu0 %2981
  %2983 = vrot.lane.b32.xlu0 %v2291, 48
  %v2984 = vpop.permute.xlu0 %2983
  %v2994 = vsel %vm125, %v2961, 0
  %v2997 = vsel %vm125, %v2962, 0
  %v3000 = vsel %vm125, %v2963, 0
  %v3003 = vsel %vm125, %v2964, 0
  %v3006 = vsel %vm125, %v2965, 0
  %v3009 = vsel %vm125, %v2966, 0
  %v3012 = vsel %vm125, %v2967, 0
  %v3015 = vsel %vm125, %v2968, 0
  %3017 = vmatprep.subr.mxu0 0.0
  %3018 = vmatpush1.msra.mxu0 0.0
  %3019 = vmatprep.subr.mxu0 0.0
  %3020 = vmatpush1.msra.mxu0 0.0
  %3021 = vmatprep.subr.mxu0 0.0
  %3022 = vmatpush1.msra.mxu0 0.0
  %3023 = vmatprep.subr.mxu0 0.0
  %3024 = vmatpush1.msra.mxu0 0.0
  %3025 = vmatprep.subr.mxu0 0.0
  %3026 = vmatpush1.msra.mxu0 0.0
  %3027 = vmatprep.subr.mxu0 0.0
  %3028 = vmatpush1.msra.mxu0 0.0
  %3029 = vmatprep.subr.mxu0 0.0
  %3030 = vmatpush1.msra.mxu0 0.0
  %3031 = vmatprep.subr.mxu0 0.0
  %3032 = vmatpush1.msra.mxu0 0.0
  %3033 = vmatprep.subr.mxu0 0.0
  %3034 = vmatpush1.msra.mxu0 %v2984
  %3035 = vmatprep.subr.mxu0 0.0
  %3036 = vmatpush1.msra.mxu0 %v2982
  %3037 = vmatprep.subr.mxu0 0.0
  %3038 = vmatpush1.msra.mxu0 %v2980
  %3039 = vmatprep.subr.mxu0 0.0
  %3040 = vmatpush1.msra.mxu0 %v2978
  %3041 = vmatprep.subr.mxu0 0.0
  %3042 = vmatpush1.msra.mxu0 %v2976
  %3043 = vmatprep.subr.mxu0 0.0
  %3044 = vmatpush1.msra.mxu0 %v2974
  %3045 = vmatprep.subr.mxu0 0.0
  %3046 = vmatpush1.msra.mxu0 %v2972
  %3047 = vmatprep.subr.mxu0 0.0
  %3048 = vmatpush1.msra.mxu0 %v2970
  %3049 = vmatprep.subr.mxu0 0.0
  %3050 = vmatpush2.msra.mxu0 0.0
  %3051 = vmatprep.subr.mxu0 0.0
  %3052 = vmatpush2.msra.mxu0 0.0
  %3053 = vmatprep.subr.mxu0 0.0
  %3054 = vmatpush2.msra.mxu0 0.0
  %3055 = vmatprep.subr.mxu0 0.0
  %3056 = vmatpush2.msra.mxu0 0.0
  %3057 = vmatprep.subr.mxu0 0.0
  %3058 = vmatpush2.msra.mxu0 0.0
  %3059 = vmatprep.subr.mxu0 0.0
  %3060 = vmatpush2.msra.mxu0 0.0
  %3061 = vmatprep.subr.mxu0 0.0
  %3062 = vmatpush2.msra.mxu0 0.0
  %3063 = vmatprep.subr.mxu0 0.0
  %3064 = vmatpush2.msra.mxu0 0.0
  %3065 = vmatprep.subr.mxu0 0.0
  %3066 = vmatpush2.msra.mxu0 0.0
  %3067 = vmatprep.subr.mxu0 0.0
  %3068 = vmatpush2.msra.mxu0 0.0
  %3069 = vmatprep.subr.mxu0 0.0
  %3070 = vmatpush2.msra.mxu0 0.0
  %3071 = vmatprep.subr.mxu0 0.0
  %3072 = vmatpush2.msra.mxu0 0.0
  %3073 = vmatprep.subr.mxu0 0.0
  %3074 = vmatpush2.msra.mxu0 0.0
  %3075 = vmatprep.subr.mxu0 0.0
  %3076 = vmatpush2.msra.mxu0 0.0
  %3077 = vmatprep.subr.mxu0 0.0
  %3078 = vmatpush2.msra.mxu0 0.0
  %3079 = vmatprep.subr.mxu0 0.0
  %3080 = vmatpush2.msra.mxu0 0.0
  %3081 = vmatprep.mubr.f32.mxu0 0.0
  %3082 = vmatmul.mubr.f32.gmra.mxu0 %v2994
  %v3083 = vpop.f32.mrf.mxu0
  %v3084 = vadd.f32 0.0, %v3083
  %v3085 = vpop.f32.mrf.mxu0
  %3086 = vmatprep.mubr.f32.mxu0 0.0
  %3087 = vmatmul.mubr.f32.gmra.mxu0 %v2997
  %v3088 = vpop.f32.mrf.mxu0
  %v3089 = vadd.f32 0.0, %v3088
  %v3090 = vpop.f32.mrf.mxu0
  %3091 = vmatprep.mubr.f32.mxu0 0.0
  %3092 = vmatmul.mubr.f32.gmra.mxu0 %v3000
  %v3093 = vpop.f32.mrf.mxu0
  %v3094 = vadd.f32 0.0, %v3093
  %v3095 = vpop.f32.mrf.mxu0
  %3096 = vmatprep.mubr.f32.mxu0 0.0
  %3097 = vmatmul.mubr.f32.gmra.mxu0 %v3003
  %v3098 = vpop.f32.mrf.mxu0
  %v3099 = vadd.f32 0.0, %v3098
  %v3100 = vpop.f32.mrf.mxu0
  %3101 = vmatprep.mubr.f32.mxu0 0.0
  %3102 = vmatmul.mubr.f32.gmra.mxu0 %v3006
  %v3103 = vpop.f32.mrf.mxu0
  %v3104 = vadd.f32 0.0, %v3103
  %v3105 = vpop.f32.mrf.mxu0
  %3106 = vmatprep.mubr.f32.mxu0 0.0
  %3107 = vmatmul.mubr.f32.gmra.mxu0 %v3009
  %v3108 = vpop.f32.mrf.mxu0
  %v3109 = vadd.f32 0.0, %v3108
  %v3110 = vpop.f32.mrf.mxu0
  %3111 = vmatprep.mubr.f32.mxu0 0.0
  %3112 = vmatmul.mubr.f32.gmra.mxu0 %v3012
  %v3113 = vpop.f32.mrf.mxu0
  %v3114 = vadd.f32 0.0, %v3113
  %v3115 = vpop.f32.mrf.mxu0
  %3116 = vmatprep.mubr.f32.mxu0 0.0
  %3117 = vmatmul.mubr.f32.gmra.mxu0 %v3015
  %v3118 = vpop.f32.mrf.mxu0
  %v3119 = vadd.f32 0.0, %v3118
  %v3120 = vpop.f32.mrf.mxu0
  %3121 = vdwg.mxu0
  %3124 = vrot.lane.b32.xlu0 %v2153, 32
  %v3125 = vpop.permute.xlu0 %3124
  %3126 = vrot.lane.b32.xlu0 %v2154, 32
  %v3127 = vpop.permute.xlu0 %3126
  %v3131 = vsel %vm442, %v3084, 0
  %v3134 = vsel %vm442, %v3089, 0
  %v3137 = vsel %vm442, %v3094, 0
  %v3140 = vsel %vm442, %v3099, 0
  %v3143 = vsel %vm442, %v3104, 0
  %v3146 = vsel %vm442, %v3109, 0
  %v3149 = vsel %vm442, %v3114, 0
  %v3152 = vsel %vm442, %v3119, 0
  %3154 = vmatprep.subr.mxu0 0.0
  %3155 = vmatpush1.msra.mxu0 0.0
  %3156 = vmatprep.subr.mxu0 0.0
  %3157 = vmatpush1.msra.mxu0 0.0
  %3158 = vmatprep.subr.mxu0 0.0
  %3159 = vmatpush1.msra.mxu0 0.0
  %3160 = vmatprep.subr.mxu0 0.0
  %3161 = vmatpush1.msra.mxu0 0.0
  %3162 = vmatprep.subr.mxu0 0.0
  %3163 = vmatpush1.msra.mxu0 0.0
  %3164 = vmatprep.subr.mxu0 0.0
  %3165 = vmatpush1.msra.mxu0 0.0
  %3166 = vmatprep.subr.mxu0 0.0
  %3167 = vmatpush1.msra.mxu0 0.0
  %3168 = vmatprep.subr.mxu0 0.0
  %3169 = vmatpush1.msra.mxu0 0.0
  %3170 = vmatprep.subr.mxu0 0.0
  %3171 = vmatpush1.msra.mxu0 0.0
  %3172 = vmatprep.subr.mxu0 0.0
  %3173 = vmatpush1.msra.mxu0 0.0
  %3174 = vmatprep.subr.mxu0 0.0
  %3175 = vmatpush1.msra.mxu0 0.0
  %3176 = vmatprep.subr.mxu0 0.0
  %3177 = vmatpush1.msra.mxu0 0.0
  %3178 = vmatprep.subr.mxu0 0.0
  %3179 = vmatpush1.msra.mxu0 0.0
  %3180 = vmatprep.subr.mxu0 0.0
  %3181 = vmatpush1.msra.mxu0 0.0
  %3182 = vmatprep.subr.mxu0 0.0
  %3183 = vmatpush1.msra.mxu0 %v3127
  %3184 = vmatprep.subr.mxu0 0.0
  %3185 = vmatpush1.msra.mxu0 %v3125
  %3186 = vmatprep.subr.mxu0 0.0
  %3187 = vmatpush2.msra.mxu0 0.0
  %3188 = vmatprep.subr.mxu0 0.0
  %3189 = vmatpush2.msra.mxu0 0.0
  %3190 = vmatprep.subr.mxu0 0.0
  %3191 = vmatpush2.msra.mxu0 0.0
  %3192 = vmatprep.subr.mxu0 0.0
  %3193 = vmatpush2.msra.mxu0 0.0
  %3194 = vmatprep.subr.mxu0 0.0
  %3195 = vmatpush2.msra.mxu0 0.0
  %3196 = vmatprep.subr.mxu0 0.0
  %3197 = vmatpush2.msra.mxu0 0.0
  %3198 = vmatprep.subr.mxu0 0.0
  %3199 = vmatpush2.msra.mxu0 0.0
  %3200 = vmatprep.subr.mxu0 0.0
  %3201 = vmatpush2.msra.mxu0 0.0
  %3202 = vmatprep.subr.mxu0 0.0
  %3203 = vmatpush2.msra.mxu0 0.0
  %3204 = vmatprep.subr.mxu0 0.0
  %3205 = vmatpush2.msra.mxu0 0.0
  %3206 = vmatprep.subr.mxu0 0.0
  %3207 = vmatpush2.msra.mxu0 0.0
  %3208 = vmatprep.subr.mxu0 0.0
  %3209 = vmatpush2.msra.mxu0 0.0
  %3210 = vmatprep.subr.mxu0 0.0
  %3211 = vmatpush2.msra.mxu0 0.0
  %3212 = vmatprep.subr.mxu0 0.0
  %3213 = vmatpush2.msra.mxu0 0.0
  %3214 = vmatprep.subr.mxu0 0.0
  %3215 = vmatpush2.msra.mxu0 0.0
  %3216 = vmatprep.subr.mxu0 0.0
  %3217 = vmatpush2.msra.mxu0 0.0
  %3218 = vmatprep.mubr.f32.mxu0 0.0
  %3219 = vmatmul.mubr.f32.gmra.mxu0 %v3131
  %v3220 = vpop.f32.mrf.mxu0
  %v3221 = vadd.f32 0.0, %v3220
  %v3222 = vpop.f32.mrf.mxu0
  %3223 = vmatprep.mubr.f32.mxu0 0.0
  %3224 = vmatmul.mubr.f32.gmra.mxu0 %v3134
  %v3225 = vpop.f32.mrf.mxu0
  %v3226 = vadd.f32 0.0, %v3225
  %v3227 = vpop.f32.mrf.mxu0
  %3228 = vmatprep.mubr.f32.mxu0 0.0
  %3229 = vmatmul.mubr.f32.gmra.mxu0 %v3137
  %v3230 = vpop.f32.mrf.mxu0
  %v3231 = vadd.f32 0.0, %v3230
  %v3232 = vpop.f32.mrf.mxu0
  %3233 = vmatprep.mubr.f32.mxu0 0.0
  %3234 = vmatmul.mubr.f32.gmra.mxu0 %v3140
  %v3235 = vpop.f32.mrf.mxu0
  %v3236 = vadd.f32 0.0, %v3235
  %v3237 = vpop.f32.mrf.mxu0
  %3238 = vmatprep.mubr.f32.mxu0 0.0
  %3239 = vmatmul.mubr.f32.gmra.mxu0 %v3143
  %v3240 = vpop.f32.mrf.mxu0
  %v3241 = vadd.f32 0.0, %v3240
  %v3242 = vpop.f32.mrf.mxu0
  %3243 = vmatprep.mubr.f32.mxu0 0.0
  %3244 = vmatmul.mubr.f32.gmra.mxu0 %v3146
  %v3245 = vpop.f32.mrf.mxu0
  %v3246 = vadd.f32 0.0, %v3245
  %v3247 = vpop.f32.mrf.mxu0
  %3248 = vmatprep.mubr.f32.mxu0 0.0
  %3249 = vmatmul.mubr.f32.gmra.mxu0 %v3149
  %v3250 = vpop.f32.mrf.mxu0
  %v3251 = vadd.f32 0.0, %v3250
  %v3252 = vpop.f32.mrf.mxu0
  %3253 = vmatprep.mubr.f32.mxu0 0.0
  %3254 = vmatmul.mubr.f32.gmra.mxu0 %v3152
  %v3255 = vpop.f32.mrf.mxu0
  %v3256 = vadd.f32 0.0, %v3255
  %v3257 = vpop.f32.mrf.mxu0
  %3258 = vdwg.mxu0
  %3261 = vrot.lane.b32.xlu0 %v2151, 32
  %v3262 = vpop.permute.xlu0 %3261
  %3263 = vrot.lane.b32.xlu0 %v2152, 32
  %v3264 = vpop.permute.xlu0 %3263
  %v3268 = vsel %vm442, %v2666, 0
  %v3271 = vsel %vm442, %v2671, 0
  %v3274 = vsel %vm442, %v2676, 0
  %v3277 = vsel %vm442, %v2681, 0
  %v3280 = vsel %vm442, %v2686, 0
  %v3283 = vsel %vm442, %v2691, 0
  %v3286 = vsel %vm442, %v2696, 0
  %v3289 = vsel %vm442, %v2701, 0
  %3291 = vmatprep.subr.mxu0 0.0
  %3292 = vmatpush1.msra.mxu0 0.0
  %3293 = vmatprep.subr.mxu0 0.0
  %3294 = vmatpush1.msra.mxu0 0.0
  %3295 = vmatprep.subr.mxu0 0.0
  %3296 = vmatpush1.msra.mxu0 0.0
  %3297 = vmatprep.subr.mxu0 0.0
  %3298 = vmatpush1.msra.mxu0 0.0
  %3299 = vmatprep.subr.mxu0 0.0
  %3300 = vmatpush1.msra.mxu0 0.0
  %3301 = vmatprep.subr.mxu0 0.0
  %3302 = vmatpush1.msra.mxu0 0.0
  %3303 = vmatprep.subr.mxu0 0.0
  %3304 = vmatpush1.msra.mxu0 0.0
  %3305 = vmatprep.subr.mxu0 0.0
  %3306 = vmatpush1.msra.mxu0 0.0
  %3307 = vmatprep.subr.mxu0 0.0
  %3308 = vmatpush1.msra.mxu0 0.0
  %3309 = vmatprep.subr.mxu0 0.0
  %3310 = vmatpush1.msra.mxu0 0.0
  %3311 = vmatprep.subr.mxu0 0.0
  %3312 = vmatpush1.msra.mxu0 0.0
  %3313 = vmatprep.subr.mxu0 0.0
  %3314 = vmatpush1.msra.mxu0 0.0
  %3315 = vmatprep.subr.mxu0 0.0
  %3316 = vmatpush1.msra.mxu0 0.0
  %3317 = vmatprep.subr.mxu0 0.0
  %3318 = vmatpush1.msra.mxu0 0.0
  %3319 = vmatprep.subr.mxu0 0.0
  %3320 = vmatpush1.msra.mxu0 %v3264
  %3321 = vmatprep.subr.mxu0 0.0
  %3322 = vmatpush1.msra.mxu0 %v3262
  %3323 = vmatprep.subr.mxu0 0.0
  %3324 = vmatpush2.msra.mxu0 0.0
  %3325 = vmatprep.subr.mxu0 0.0
  %3326 = vmatpush2.msra.mxu0 0.0
  %3327 = vmatprep.subr.mxu0 0.0
  %3328 = vmatpush2.msra.mxu0 0.0
  %3329 = vmatprep.subr.mxu0 0.0
  %3330 = vmatpush2.msra.mxu0 0.0
  %3331 = vmatprep.subr.mxu0 0.0
  %3332 = vmatpush2.msra.mxu0 0.0
  %3333 = vmatprep.subr.mxu0 0.0
  %3334 = vmatpush2.msra.mxu0 0.0
  %3335 = vmatprep.subr.mxu0 0.0
  %3336 = vmatpush2.msra.mxu0 0.0
  %3337 = vmatprep.subr.mxu0 0.0
  %3338 = vmatpush2.msra.mxu0 0.0
  %3339 = vmatprep.subr.mxu0 0.0
  %3340 = vmatpush2.msra.mxu0 0.0
  %3341 = vmatprep.subr.mxu0 0.0
  %3342 = vmatpush2.msra.mxu0 0.0
  %3343 = vmatprep.subr.mxu0 0.0
  %3344 = vmatpush2.msra.mxu0 0.0
  %3345 = vmatprep.subr.mxu0 0.0
  %3346 = vmatpush2.msra.mxu0 0.0
  %3347 = vmatprep.subr.mxu0 0.0
  %3348 = vmatpush2.msra.mxu0 0.0
  %3349 = vmatprep.subr.mxu0 0.0
  %3350 = vmatpush2.msra.mxu0 0.0
  %3351 = vmatprep.subr.mxu0 0.0
  %3352 = vmatpush2.msra.mxu0 0.0
  %3353 = vmatprep.subr.mxu0 0.0
  %3354 = vmatpush2.msra.mxu0 0.0
  %3355 = vmatprep.mubr.f32.mxu0 0.0
  %3356 = vmatmul.mubr.f32.gmra.mxu0 %v3268
  %v3357 = vpop.f32.mrf.mxu0
  %v3358 = vadd.f32 %v3221, %v3357
  %v3359 = vpop.f32.mrf.mxu0
  %3360 = vmatprep.mubr.f32.mxu0 0.0
  %3361 = vmatmul.mubr.f32.gmra.mxu0 %v3271
  %v3362 = vpop.f32.mrf.mxu0
  %v3363 = vadd.f32 %v3226, %v3362
  %v3364 = vpop.f32.mrf.mxu0
  %3365 = vmatprep.mubr.f32.mxu0 0.0
  %3366 = vmatmul.mubr.f32.gmra.mxu0 %v3274
  %v3367 = vpop.f32.mrf.mxu0
  %v3368 = vadd.f32 %v3231, %v3367
  %v3369 = vpop.f32.mrf.mxu0
  %3370 = vmatprep.mubr.f32.mxu0 0.0
  %3371 = vmatmul.mubr.f32.gmra.mxu0 %v3277
  %v3372 = vpop.f32.mrf.mxu0
  %v3373 = vadd.f32 %v3236, %v3372
  %v3374 = vpop.f32.mrf.mxu0
  %3375 = vmatprep.mubr.f32.mxu0 0.0
  %3376 = vmatmul.mubr.f32.gmra.mxu0 %v3280
  %v3377 = vpop.f32.mrf.mxu0
  %v3378 = vadd.f32 %v3241, %v3377
  %v3379 = vpop.f32.mrf.mxu0
  %3380 = vmatprep.mubr.f32.mxu0 0.0
  %3381 = vmatmul.mubr.f32.gmra.mxu0 %v3283
  %v3382 = vpop.f32.mrf.mxu0
  %v3383 = vadd.f32 %v3246, %v3382
  %v3384 = vpop.f32.mrf.mxu0
  %3385 = vmatprep.mubr.f32.mxu0 0.0
  %3386 = vmatmul.mubr.f32.gmra.mxu0 %v3286
  %v3387 = vpop.f32.mrf.mxu0
  %v3388 = vadd.f32 %v3251, %v3387
  %v3389 = vpop.f32.mrf.mxu0
  %3390 = vmatprep.mubr.f32.mxu0 0.0
  %3391 = vmatmul.mubr.f32.gmra.mxu0 %v3289
  %v3392 = vpop.f32.mrf.mxu0
  %v3393 = vadd.f32 %v3256, %v3392
  %v3394 = vpop.f32.mrf.mxu0
  %3395 = vdwg.mxu0
  %3396 = vrot.lane.b32.xlu0 %v2163, 32
  %v3397 = vpop.permute.xlu0 %3396
  %v3399 = vadd.f32 %v3358, %v3397
  %v3400 = vadd.f32 %v3363, %v3397
  %v3401 = vadd.f32 %v3368, %v3397
  %v3402 = vadd.f32 %v3373, %v3397
  %v3403 = vadd.f32 %v3378, %v3397
  %v3404 = vadd.f32 %v3383, %v3397
  %v3405 = vadd.f32 %v3388, %v3397
  %v3406 = vadd.f32 %v3393, %v3397
  %v3407 = vadd.f32 %v2142, %v3399
  %v3408 = vadd.f32 %v2143, %v3400
  %v3409 = vadd.f32 %v2144, %v3401
  %v3410 = vadd.f32 %v2145, %v3402
  %v3411 = vadd.f32 %v2146, %v3403
  %v3412 = vadd.f32 %v2147, %v3404
  %v3413 = vadd.f32 %v2148, %v3405
  %v3414 = vadd.f32 %v2149, %v3406
  %v3415 = vsel %vm288, %v3407, 0.0
  %3416 = vadd.xlane.f32.xlu0 %v3415
  %v3417 = vpop.xlane.xlu0 %3416
  %v3418 = vsel %vm288, %v3408, 0.0
  %3419 = vadd.xlane.f32.xlu0 %v3418
  %v3420 = vpop.xlane.xlu0 %3419
  %v3421 = vsel %vm288, %v3409, 0.0
  %3422 = vadd.xlane.f32.xlu0 %v3421
  %v3423 = vpop.xlane.xlu0 %3422
  %v3424 = vsel %vm288, %v3410, 0.0
  %3425 = vadd.xlane.f32.xlu0 %v3424
  %v3426 = vpop.xlane.xlu0 %3425
  %v3427 = vsel %vm288, %v3411, 0.0
  %3428 = vadd.xlane.f32.xlu0 %v3427
  %v3429 = vpop.xlane.xlu0 %3428
  %v3430 = vsel %vm288, %v3412, 0.0
  %3431 = vadd.xlane.f32.xlu0 %v3430
  %v3432 = vpop.xlane.xlu0 %3431
  %v3433 = vsel %vm288, %v3413, 0.0
  %3434 = vadd.xlane.f32.xlu0 %v3433
  %v3435 = vpop.xlane.xlu0 %3434
  %v3436 = vsel %vm288, %v3414, 0.0
  %3437 = vadd.xlane.f32.xlu0 %v3436
  %v3438 = vpop.xlane.xlu0 %3437
  %v3439 = vmul.f32 %v3417, %v1622
  %v3440 = vmul.f32 %v3420, %v1622
  %v3441 = vmul.f32 %v3423, %v1622
  %v3442 = vmul.f32 %v3426, %v1622
  %v3443 = vmul.f32 %v3429, %v1622
  %v3444 = vmul.f32 %v3432, %v1622
  %v3445 = vmul.f32 %v3435, %v1622
  %v3446 = vmul.f32 %v3438, %v1622
  %v3447 = vsub.f32 %v3407, %v3439
  %v3448 = vsub.f32 %v3408, %v3440
  %v3449 = vsub.f32 %v3409, %v3441
  %v3450 = vsub.f32 %v3410, %v3442
  %v3451 = vsub.f32 %v3411, %v3443
  %v3452 = vsub.f32 %v3412, %v3444
  %v3453 = vsub.f32 %v3413, %v3445
  %v3454 = vsub.f32 %v3414, %v3446
  %v3455 = vmul.f32 %v3447, %v3447
  %v3456 = vmul.f32 %v3448, %v3448
  %v3457 = vmul.f32 %v3449, %v3449
  %v3458 = vmul.f32 %v3450, %v3450
  %v3459 = vmul.f32 %v3451, %v3451
  %v3460 = vmul.f32 %v3452, %v3452
  %v3461 = vmul.f32 %v3453, %v3453
  %v3462 = vmul.f32 %v3454, %v3454
  %v3463 = vsel %vm288, %v3455, 0.0
  %3464 = vadd.xlane.f32.xlu0 %v3463
  %v3465 = vpop.xlane.xlu0 %3464
  %v3466 = vsel %vm288, %v3456, 0.0
  %3467 = vadd.xlane.f32.xlu0 %v3466
  %v3468 = vpop.xlane.xlu0 %3467
  %v3469 = vsel %vm288, %v3457, 0.0
  %3470 = vadd.xlane.f32.xlu0 %v3469
  %v3471 = vpop.xlane.xlu0 %3470
  %v3472 = vsel %vm288, %v3458, 0.0
  %3473 = vadd.xlane.f32.xlu0 %v3472
  %v3474 = vpop.xlane.xlu0 %3473
  %v3475 = vsel %vm288, %v3459, 0.0
  %3476 = vadd.xlane.f32.xlu0 %v3475
  %v3477 = vpop.xlane.xlu0 %3476
  %v3478 = vsel %vm288, %v3460, 0.0
  %3479 = vadd.xlane.f32.xlu0 %v3478
  %v3480 = vpop.xlane.xlu0 %3479
  %v3481 = vsel %vm288, %v3461, 0.0
  %3482 = vadd.xlane.f32.xlu0 %v3481
  %v3483 = vpop.xlane.xlu0 %3482
  %v3484 = vsel %vm288, %v3462, 0.0
  %3485 = vadd.xlane.f32.xlu0 %v3484
  %v3486 = vpop.xlane.xlu0 %3485
  %v3487 = vmul.f32 %v3465, %v1622
  %v3488 = vmul.f32 %v3468, %v1622
  %v3489 = vmul.f32 %v3471, %v1622
  %v3490 = vmul.f32 %v3474, %v1622
  %v3491 = vmul.f32 %v3477, %v1622
  %v3492 = vmul.f32 %v3480, %v1622
  %v3493 = vmul.f32 %v3483, %v1622
  %v3494 = vmul.f32 %v3486, %v1622
  %v3495 = vadd.f32 %v3487, 1e-05
  %v3496 = vadd.f32 %v3488, 1e-05
  %v3497 = vadd.f32 %v3489, 1e-05
  %v3498 = vadd.f32 %v3490, 1e-05
  %v3499 = vadd.f32 %v3491, 1e-05
  %v3500 = vadd.f32 %v3492, 1e-05
  %v3501 = vadd.f32 %v3493, 1e-05
  %v3502 = vadd.f32 %v3494, 1e-05
  %v3503 = vrsqrt.pop %v3495
  %v3504 = vrsqrt.pop %v3496
  %v3505 = vrsqrt.pop %v3497
  %v3506 = vrsqrt.pop %v3498
  %v3507 = vrsqrt.pop %v3499
  %v3508 = vrsqrt.pop %v3500
  %v3509 = vrsqrt.pop %v3501
  %v3510 = vrsqrt.pop %v3502
  %v3511 = vmul.f32 %v3447, %v3503
  %v3512 = vmul.f32 %v3448, %v3504
  %v3513 = vmul.f32 %v3449, %v3505
  %v3514 = vmul.f32 %v3450, %v3506
  %v3515 = vmul.f32 %v3451, %v3507
  %v3516 = vmul.f32 %v3452, %v3508
  %v3517 = vmul.f32 %v3453, %v3509
  %v3518 = vmul.f32 %v3454, %v3510
  %v3520 = vlaneseq
  %v3521 = vshrl.u32 %v3520, 7
  %v3522 = vsub.s32 0, %v3521
  %v3523 = vrot.slane %v2158, %v3522
  %v3525 = vmul.f32 %v3511, %v3523
  %v3526 = vmul.f32 %v3512, %v3523
  %v3527 = vmul.f32 %v3513, %v3523
  %v3528 = vmul.f32 %v3514, %v3523
  %v3529 = vmul.f32 %v3515, %v3523
  %v3530 = vmul.f32 %v3516, %v3523
  %v3531 = vmul.f32 %v3517, %v3523
  %v3532 = vmul.f32 %v3518, %v3523
  %3533 = vrot.lane.b32.xlu0 %v3523, 96
  %v3534 = vpop.permute.xlu0 %3533
  %v3536 = vadd.f32 %v3525, %v3534
  %v3537 = vadd.f32 %v3526, %v3534
  %v3538 = vadd.f32 %v3527, %v3534
  %v3539 = vadd.f32 %v3528, %v3534
  %v3540 = vadd.f32 %v3529, %v3534
  %v3541 = vadd.f32 %v3530, %v3534
  %v3542 = vadd.f32 %v3531, %v3534
  %v3543 = vadd.f32 %v3532, %v3534
  %s3544 = scalar_lea.vmem %s9, 32
  %v3545 = vld [vmem:[%s3544] sm:$0xff]
  %v3546 = vld [vmem:[%s3544 + $0x8] sm:$0xff]
  %v3547 = vld [vmem:[%s3544 + $0x10] sm:$0xff]
  %v3548 = vld [vmem:[%s3544 + $0x18] sm:$0xff]
  %s3549 = scalar_lea.vmem %s11, 1
  %v3550 = vld [vmem:[%s3549] sm:$0x1]
  %v3552 = vlaneseq
  %v3553 = vshrl.u32 %v3552, 7
  %v3554 = vsub.s32 0, %v3553
  %v3555 = vrot.slane %v3550, %v3554
  %v3558 = vsel %vm288, %v3536, 0
  %v3561 = vsel %vm288, %v3537, 0
  %v3564 = vsel %vm288, %v3538, 0
  %v3567 = vsel %vm288, %v3539, 0
  %v3570 = vsel %vm288, %v3540, 0
  %v3573 = vsel %vm288, %v3541, 0
  %v3576 = vsel %vm288, %v3542, 0
  %v3579 = vsel %vm288, %v3543, 0
  %3581 = vmatprep.subr.mxu0 0.0
  %3582 = vmatpush1.msra.mxu0 0.0
  %3583 = vmatprep.subr.mxu0 0.0
  %3584 = vmatpush1.msra.mxu0 0.0
  %3585 = vmatprep.subr.mxu0 0.0
  %3586 = vmatpush1.msra.mxu0 0.0
  %3587 = vmatprep.subr.mxu0 0.0
  %3588 = vmatpush1.msra.mxu0 0.0
  %3589 = vmatprep.subr.mxu0 0.0
  %3590 = vmatpush1.msra.mxu0 0.0
  %3591 = vmatprep.subr.mxu0 0.0
  %3592 = vmatpush1.msra.mxu0 0.0
  %3593 = vmatprep.subr.mxu0 0.0
  %3594 = vmatpush1.msra.mxu0 0.0
  %3595 = vmatprep.subr.mxu0 0.0
  %3596 = vmatpush1.msra.mxu0 0.0
  %3597 = vmatprep.subr.mxu0 0.0
  %3598 = vmatpush1.msra.mxu0 0.0
  %3599 = vmatprep.subr.mxu0 0.0
  %3600 = vmatpush1.msra.mxu0 0.0
  %3601 = vmatprep.subr.mxu0 0.0
  %3602 = vmatpush1.msra.mxu0 0.0
  %3603 = vmatprep.subr.mxu0 0.0
  %3604 = vmatpush1.msra.mxu0 0.0
  %3605 = vmatprep.subr.mxu0 0.0
  %3606 = vmatpush1.msra.mxu0 %v3548
  %3607 = vmatprep.subr.mxu0 0.0
  %3608 = vmatpush1.msra.mxu0 %v3547
  %3609 = vmatprep.subr.mxu0 0.0
  %3610 = vmatpush1.msra.mxu0 %v3546
  %3611 = vmatprep.subr.mxu0 0.0
  %3612 = vmatpush1.msra.mxu0 %v3545
  %3613 = vmatprep.subr.mxu0 0.0
  %3614 = vmatpush2.msra.mxu0 0.0
  %3615 = vmatprep.subr.mxu0 0.0
  %3616 = vmatpush2.msra.mxu0 0.0
  %3617 = vmatprep.subr.mxu0 0.0
  %3618 = vmatpush2.msra.mxu0 0.0
  %3619 = vmatprep.subr.mxu0 0.0
  %3620 = vmatpush2.msra.mxu0 0.0
  %3621 = vmatprep.subr.mxu0 0.0
  %3622 = vmatpush2.msra.mxu0 0.0
  %3623 = vmatprep.subr.mxu0 0.0
  %3624 = vmatpush2.msra.mxu0 0.0
  %3625 = vmatprep.subr.mxu0 0.0
  %3626 = vmatpush2.msra.mxu0 0.0
  %3627 = vmatprep.subr.mxu0 0.0
  %3628 = vmatpush2.msra.mxu0 0.0
  %3629 = vmatprep.subr.mxu0 0.0
  %3630 = vmatpush2.msra.mxu0 0.0
  %3631 = vmatprep.subr.mxu0 0.0
  %3632 = vmatpush2.msra.mxu0 0.0
  %3633 = vmatprep.subr.mxu0 0.0
  %3634 = vmatpush2.msra.mxu0 0.0
  %3635 = vmatprep.subr.mxu0 0.0
  %3636 = vmatpush2.msra.mxu0 0.0
  %3637 = vmatprep.subr.mxu0 0.0
  %3638 = vmatpush2.msra.mxu0 0.0
  %3639 = vmatprep.subr.mxu0 0.0
  %3640 = vmatpush2.msra.mxu0 0.0
  %3641 = vmatprep.subr.mxu0 0.0
  %3642 = vmatpush2.msra.mxu0 0.0
  %3643 = vmatprep.subr.mxu0 0.0
  %3644 = vmatpush2.msra.mxu0 0.0
  %3645 = vmatprep.mubr.f32.mxu0 0.0
  %3646 = vmatmul.mubr.f32.gmra.mxu0 %v3558
  %v3647 = vpop.f32.mrf.mxu0
  %v3648 = vadd.f32 %v3555, %v3647
  %v3649 = vpop.f32.mrf.mxu0
  %3650 = vmatprep.mubr.f32.mxu0 0.0
  %3651 = vmatmul.mubr.f32.gmra.mxu0 %v3561
  %v3652 = vpop.f32.mrf.mxu0
  %v3653 = vadd.f32 %v3555, %v3652
  %v3654 = vpop.f32.mrf.mxu0
  %3655 = vmatprep.mubr.f32.mxu0 0.0
  %3656 = vmatmul.mubr.f32.gmra.mxu0 %v3564
  %v3657 = vpop.f32.mrf.mxu0
  %v3658 = vadd.f32 %v3555, %v3657
  %v3659 = vpop.f32.mrf.mxu0
  %3660 = vmatprep.mubr.f32.mxu0 0.0
  %3661 = vmatmul.mubr.f32.gmra.mxu0 %v3567
  %v3662 = vpop.f32.mrf.mxu0
  %v3663 = vadd.f32 %v3555, %v3662
  %v3664 = vpop.f32.mrf.mxu0
  %3665 = vmatprep.mubr.f32.mxu0 0.0
  %3666 = vmatmul.mubr.f32.gmra.mxu0 %v3570
  %v3667 = vpop.f32.mrf.mxu0
  %v3668 = vadd.f32 %v3555, %v3667
  %v3669 = vpop.f32.mrf.mxu0
  %3670 = vmatprep.mubr.f32.mxu0 0.0
  %3671 = vmatmul.mubr.f32.gmra.mxu0 %v3573
  %v3672 = vpop.f32.mrf.mxu0
  %v3673 = vadd.f32 %v3555, %v3672
  %v3674 = vpop.f32.mrf.mxu0
  %3675 = vmatprep.mubr.f32.mxu0 0.0
  %3676 = vmatmul.mubr.f32.gmra.mxu0 %v3576
  %v3677 = vpop.f32.mrf.mxu0
  %v3678 = vadd.f32 %v3555, %v3677
  %v3679 = vpop.f32.mrf.mxu0
  %3680 = vmatprep.mubr.f32.mxu0 0.0
  %3681 = vmatmul.mubr.f32.gmra.mxu0 %v3579
  %v3682 = vpop.f32.mrf.mxu0
  %v3683 = vadd.f32 %v3555, %v3682
  %v3684 = vpop.f32.mrf.mxu0
  %3685 = vdwg.mxu0
  %v3686 = vmax.f32 %v3648, 0.0
  %v3687 = vmax.f32 %v3653, 0.0
  %v3688 = vmax.f32 %v3658, 0.0
  %v3689 = vmax.f32 %v3663, 0.0
  %v3690 = vmax.f32 %v3668, 0.0
  %v3691 = vmax.f32 %v3673, 0.0
  %v3692 = vmax.f32 %v3678, 0.0
  %v3693 = vmax.f32 %v3683, 0.0
  %s3694 = scalar_lea.vmem %s10, 64
  %v3695 = vld [vmem:[%s3694] sm:$0xff]
  %v3696 = vld [vmem:[%s3694 + $0x8] sm:$0xff]
  %v3697 = vld [vmem:[%s3694 + $0x10] sm:$0xff]
  %v3698 = vld [vmem:[%s3694 + $0x18] sm:$0xff]
  %v3699 = vld [vmem:[%s3694 + $0x20] sm:$0xff]
  %v3700 = vld [vmem:[%s3694 + $0x28] sm:$0xff]
  %v3701 = vld [vmem:[%s3694 + $0x30] sm:$0xff]
  %v3702 = vld [vmem:[%s3694 + $0x38] sm:$0xff]
  %3703 = vrot.lane.b32.xlu0 %v3555, 64
  %v3704 = vpop.permute.xlu0 %3703
  %v3707 = vsel %vm125, %v3686, 0
  %v3710 = vsel %vm125, %v3687, 0
  %v3713 = vsel %vm125, %v3688, 0
  %v3716 = vsel %vm125, %v3689, 0
  %v3719 = vsel %vm125, %v3690, 0
  %v3722 = vsel %vm125, %v3691, 0
  %v3725 = vsel %vm125, %v3692, 0
  %v3728 = vsel %vm125, %v3693, 0
  %3730 = vmatprep.subr.mxu0 0.0
  %3731 = vmatpush1.msra.mxu0 0.0
  %3732 = vmatprep.subr.mxu0 0.0
  %3733 = vmatpush1.msra.mxu0 0.0
  %3734 = vmatprep.subr.mxu0 0.0
  %3735 = vmatpush1.msra.mxu0 0.0
  %3736 = vmatprep.subr.mxu0 0.0
  %3737 = vmatpush1.msra.mxu0 0.0
  %3738 = vmatprep.subr.mxu0 0.0
  %3739 = vmatpush1.msra.mxu0 0.0
  %3740 = vmatprep.subr.mxu0 0.0
  %3741 = vmatpush1.msra.mxu0 0.0
  %3742 = vmatprep.subr.mxu0 0.0
  %3743 = vmatpush1.msra.mxu0 0.0
  %3744 = vmatprep.subr.mxu0 0.0
  %3745 = vmatpush1.msra.mxu0 0.0
  %3746 = vmatprep.subr.mxu0 0.0
  %3747 = vmatpush1.msra.mxu0 %v3702
  %3748 = vmatprep.subr.mxu0 0.0
  %3749 = vmatpush1.msra.mxu0 %v3701
  %3750 = vmatprep.subr.mxu0 0.0
  %3751 = vmatpush1.msra.mxu0 %v3700
  %3752 = vmatprep.subr.mxu0 0.0
  %3753 = vmatpush1.msra.mxu0 %v3699
  %3754 = vmatprep.subr.mxu0 0.0
  %3755 = vmatpush1.msra.mxu0 %v3698
  %3756 = vmatprep.subr.mxu0 0.0
  %3757 = vmatpush1.msra.mxu0 %v3697
  %3758 = vmatprep.subr.mxu0 0.0
  %3759 = vmatpush1.msra.mxu0 %v3696
  %3760 = vmatprep.subr.mxu0 0.0
  %3761 = vmatpush1.msra.mxu0 %v3695
  %3762 = vmatprep.subr.mxu0 0.0
  %3763 = vmatpush2.msra.mxu0 0.0
  %3764 = vmatprep.subr.mxu0 0.0
  %3765 = vmatpush2.msra.mxu0 0.0
  %3766 = vmatprep.subr.mxu0 0.0
  %3767 = vmatpush2.msra.mxu0 0.0
  %3768 = vmatprep.subr.mxu0 0.0
  %3769 = vmatpush2.msra.mxu0 0.0
  %3770 = vmatprep.subr.mxu0 0.0
  %3771 = vmatpush2.msra.mxu0 0.0
  %3772 = vmatprep.subr.mxu0 0.0
  %3773 = vmatpush2.msra.mxu0 0.0
  %3774 = vmatprep.subr.mxu0 0.0
  %3775 = vmatpush2.msra.mxu0 0.0
  %3776 = vmatprep.subr.mxu0 0.0
  %3777 = vmatpush2.msra.mxu0 0.0
  %3778 = vmatprep.subr.mxu0 0.0
  %3779 = vmatpush2.msra.mxu0 0.0
  %3780 = vmatprep.subr.mxu0 0.0
  %3781 = vmatpush2.msra.mxu0 0.0
  %3782 = vmatprep.subr.mxu0 0.0
  %3783 = vmatpush2.msra.mxu0 0.0
  %3784 = vmatprep.subr.mxu0 0.0
  %3785 = vmatpush2.msra.mxu0 0.0
  %3786 = vmatprep.subr.mxu0 0.0
  %3787 = vmatpush2.msra.mxu0 0.0
  %3788 = vmatprep.subr.mxu0 0.0
  %3789 = vmatpush2.msra.mxu0 0.0
  %3790 = vmatprep.subr.mxu0 0.0
  %3791 = vmatpush2.msra.mxu0 0.0
  %3792 = vmatprep.subr.mxu0 0.0
  %3793 = vmatpush2.msra.mxu0 0.0
  %3794 = vmatprep.mubr.f32.mxu0 0.0
  %3795 = vmatmul.mubr.f32.gmra.mxu0 %v3707
  %v3796 = vpop.f32.mrf.mxu0
  %v3797 = vadd.f32 %v3704, %v3796
  %v3798 = vpop.f32.mrf.mxu0
  %3799 = vmatprep.mubr.f32.mxu0 0.0
  %3800 = vmatmul.mubr.f32.gmra.mxu0 %v3710
  %v3801 = vpop.f32.mrf.mxu0
  %v3802 = vadd.f32 %v3704, %v3801
  %v3803 = vpop.f32.mrf.mxu0
  %3804 = vmatprep.mubr.f32.mxu0 0.0
  %3805 = vmatmul.mubr.f32.gmra.mxu0 %v3713
  %v3806 = vpop.f32.mrf.mxu0
  %v3807 = vadd.f32 %v3704, %v3806
  %v3808 = vpop.f32.mrf.mxu0
  %3809 = vmatprep.mubr.f32.mxu0 0.0
  %3810 = vmatmul.mubr.f32.gmra.mxu0 %v3716
  %v3811 = vpop.f32.mrf.mxu0
  %v3812 = vadd.f32 %v3704, %v3811
  %v3813 = vpop.f32.mrf.mxu0
  %3814 = vmatprep.mubr.f32.mxu0 0.0
  %3815 = vmatmul.mubr.f32.gmra.mxu0 %v3719
  %v3816 = vpop.f32.mrf.mxu0
  %v3817 = vadd.f32 %v3704, %v3816
  %v3818 = vpop.f32.mrf.mxu0
  %3819 = vmatprep.mubr.f32.mxu0 0.0
  %3820 = vmatmul.mubr.f32.gmra.mxu0 %v3722
  %v3821 = vpop.f32.mrf.mxu0
  %v3822 = vadd.f32 %v3704, %v3821
  %v3823 = vpop.f32.mrf.mxu0
  %3824 = vmatprep.mubr.f32.mxu0 0.0
  %3825 = vmatmul.mubr.f32.gmra.mxu0 %v3725
  %v3826 = vpop.f32.mrf.mxu0
  %v3827 = vadd.f32 %v3704, %v3826
  %v3828 = vpop.f32.mrf.mxu0
  %3829 = vmatprep.mubr.f32.mxu0 0.0
  %3830 = vmatmul.mubr.f32.gmra.mxu0 %v3728
  %v3831 = vpop.f32.mrf.mxu0
  %v3832 = vadd.f32 %v3704, %v3831
  %v3833 = vpop.f32.mrf.mxu0
  %3834 = vdwg.mxu0
  %v3835 = vadd.f32 %v3536, %v3797
  %v3836 = vadd.f32 %v3537, %v3802
  %v3837 = vadd.f32 %v3538, %v3807
  %v3838 = vadd.f32 %v3539, %v3812
  %v3839 = vadd.f32 %v3540, %v3817
  %v3840 = vadd.f32 %v3541, %v3822
  %v3841 = vadd.f32 %v3542, %v3827
  %v3842 = vadd.f32 %v3543, %v3832
  %v3843 = vsel %vm288, %v3835, 0.0
  %3844 = vadd.xlane.f32.xlu0 %v3843
  %v3845 = vpop.xlane.xlu0 %3844
  %v3846 = vsel %vm288, %v3836, 0.0
  %3847 = vadd.xlane.f32.xlu0 %v3846
  %v3848 = vpop.xlane.xlu0 %3847
  %v3849 = vsel %vm288, %v3837, 0.0
  %3850 = vadd.xlane.f32.xlu0 %v3849
  %v3851 = vpop.xlane.xlu0 %3850
  %v3852 = vsel %vm288, %v3838, 0.0
  %3853 = vadd.xlane.f32.xlu0 %v3852
  %v3854 = vpop.xlane.xlu0 %3853
  %v3855 = vsel %vm288, %v3839, 0.0
  %3856 = vadd.xlane.f32.xlu0 %v3855
  %v3857 = vpop.xlane.xlu0 %3856
  %v3858 = vsel %vm288, %v3840, 0.0
  %3859 = vadd.xlane.f32.xlu0 %v3858
  %v3860 = vpop.xlane.xlu0 %3859
  %v3861 = vsel %vm288, %v3841, 0.0
  %3862 = vadd.xlane.f32.xlu0 %v3861
  %v3863 = vpop.xlane.xlu0 %3862
  %v3864 = vsel %vm288, %v3842, 0.0
  %3865 = vadd.xlane.f32.xlu0 %v3864
  %v3866 = vpop.xlane.xlu0 %3865
  %v3867 = vmul.f32 %v3845, %v1622
  %v3868 = vmul.f32 %v3848, %v1622
  %v3869 = vmul.f32 %v3851, %v1622
  %v3870 = vmul.f32 %v3854, %v1622
  %v3871 = vmul.f32 %v3857, %v1622
  %v3872 = vmul.f32 %v3860, %v1622
  %v3873 = vmul.f32 %v3863, %v1622
  %v3874 = vmul.f32 %v3866, %v1622
  %v3875 = vsub.f32 %v3835, %v3867
  %v3876 = vsub.f32 %v3836, %v3868
  %v3877 = vsub.f32 %v3837, %v3869
  %v3878 = vsub.f32 %v3838, %v3870
  %v3879 = vsub.f32 %v3839, %v3871
  %v3880 = vsub.f32 %v3840, %v3872
  %v3881 = vsub.f32 %v3841, %v3873
  %v3882 = vsub.f32 %v3842, %v3874
  %v3883 = vmul.f32 %v3875, %v3875
  %v3884 = vmul.f32 %v3876, %v3876
  %v3885 = vmul.f32 %v3877, %v3877
  %v3886 = vmul.f32 %v3878, %v3878
  %v3887 = vmul.f32 %v3879, %v3879
  %v3888 = vmul.f32 %v3880, %v3880
  %v3889 = vmul.f32 %v3881, %v3881
  %v3890 = vmul.f32 %v3882, %v3882
  %v3891 = vsel %vm288, %v3883, 0.0
  %3892 = vadd.xlane.f32.xlu0 %v3891
  %v3893 = vpop.xlane.xlu0 %3892
  %v3894 = vsel %vm288, %v3884, 0.0
  %3895 = vadd.xlane.f32.xlu0 %v3894
  %v3896 = vpop.xlane.xlu0 %3895
  %v3897 = vsel %vm288, %v3885, 0.0
  %3898 = vadd.xlane.f32.xlu0 %v3897
  %v3899 = vpop.xlane.xlu0 %3898
  %v3900 = vsel %vm288, %v3886, 0.0
  %3901 = vadd.xlane.f32.xlu0 %v3900
  %v3902 = vpop.xlane.xlu0 %3901
  %v3903 = vsel %vm288, %v3887, 0.0
  %3904 = vadd.xlane.f32.xlu0 %v3903
  %v3905 = vpop.xlane.xlu0 %3904
  %v3906 = vsel %vm288, %v3888, 0.0
  %3907 = vadd.xlane.f32.xlu0 %v3906
  %v3908 = vpop.xlane.xlu0 %3907
  %v3909 = vsel %vm288, %v3889, 0.0
  %3910 = vadd.xlane.f32.xlu0 %v3909
  %v3911 = vpop.xlane.xlu0 %3910
  %v3912 = vsel %vm288, %v3890, 0.0
  %3913 = vadd.xlane.f32.xlu0 %v3912
  %v3914 = vpop.xlane.xlu0 %3913
  %v3915 = vmul.f32 %v3893, %v1622
  %v3916 = vmul.f32 %v3896, %v1622
  %v3917 = vmul.f32 %v3899, %v1622
  %v3918 = vmul.f32 %v3902, %v1622
  %v3919 = vmul.f32 %v3905, %v1622
  %v3920 = vmul.f32 %v3908, %v1622
  %v3921 = vmul.f32 %v3911, %v1622
  %v3922 = vmul.f32 %v3914, %v1622
  %v3923 = vadd.f32 %v3915, 1e-05
  %v3924 = vadd.f32 %v3916, 1e-05
  %v3925 = vadd.f32 %v3917, 1e-05
  %v3926 = vadd.f32 %v3918, 1e-05
  %v3927 = vadd.f32 %v3919, 1e-05
  %v3928 = vadd.f32 %v3920, 1e-05
  %v3929 = vadd.f32 %v3921, 1e-05
  %v3930 = vadd.f32 %v3922, 1e-05
  %v3931 = vrsqrt.pop %v3923
  %v3932 = vrsqrt.pop %v3924
  %v3933 = vrsqrt.pop %v3925
  %v3934 = vrsqrt.pop %v3926
  %v3935 = vrsqrt.pop %v3927
  %v3936 = vrsqrt.pop %v3928
  %v3937 = vrsqrt.pop %v3929
  %v3938 = vrsqrt.pop %v3930
  %v3939 = vmul.f32 %v3875, %v3931
  %v3940 = vmul.f32 %v3876, %v3932
  %v3941 = vmul.f32 %v3877, %v3933
  %v3942 = vmul.f32 %v3878, %v3934
  %v3943 = vmul.f32 %v3879, %v3935
  %v3944 = vmul.f32 %v3880, %v3936
  %v3945 = vmul.f32 %v3881, %v3937
  %v3946 = vmul.f32 %v3882, %v3938
  %3947 = vrot.lane.b32.xlu0 %v3523, 64
  %v3948 = vpop.permute.xlu0 %3947
  %v3950 = vmul.f32 %v3939, %v3948
  %v3951 = vmul.f32 %v3940, %v3948
  %v3952 = vmul.f32 %v3941, %v3948
  %v3953 = vmul.f32 %v3942, %v3948
  %v3954 = vmul.f32 %v3943, %v3948
  %v3955 = vmul.f32 %v3944, %v3948
  %v3956 = vmul.f32 %v3945, %v3948
  %v3957 = vmul.f32 %v3946, %v3948
  %3958 = vrot.lane.b32.xlu0 %v3523, 32
  %v3959 = vpop.permute.xlu0 %3958
  %v3961 = vadd.f32 %v3950, %v3959
  %v3962 = vadd.f32 %v3951, %v3959
  %v3963 = vadd.f32 %v3952, %v3959
  %v3964 = vadd.f32 %v3953, %v3959
  %v3965 = vadd.f32 %v3954, %v3959
  %v3966 = vadd.f32 %v3955, %v3959
  %v3967 = vadd.f32 %v3956, %v3959
  %v3968 = vadd.f32 %v3957, %v3959
  %v3969 = vlaneseq
  %v3970 = vshrl.u32 %v3969, 7
  %v3971 = vmul.u32 %v3970, 8
  %3972 = vset.pattern.permute.xlu0 0
  %3973 = vperm.xlu0 %3972, %v58
  %v3974 = vpop.permute.xlu0 %3973
  %v3975 = vadd.s32 %v3971, %v3974
  %v3976 = vsub.s32 %v3975, 1
  %vm3977 = vcmp.eq.s32.totalorder %v60, %v3976
  %v3978 = vsel %vm3977, 1, 0
  %v3979 = vcvt.s32.f32 %v3978
  %v3981 = vsel %vm125, %v3979, 0
  %3983 = vmatprep.subr.mxu0 0.0
  %3984 = vmatpush1.msra.mxu0 0.0
  %3985 = vmatprep.subr.mxu0 0.0
  %3986 = vmatpush1.msra.mxu0 0.0
  %3987 = vmatprep.subr.mxu0 0.0
  %3988 = vmatpush1.msra.mxu0 0.0
  %3989 = vmatprep.subr.mxu0 0.0
  %3990 = vmatpush1.msra.mxu0 0.0
  %3991 = vmatprep.subr.mxu0 0.0
  %3992 = vmatpush1.msra.mxu0 0.0
  %3993 = vmatprep.subr.mxu0 0.0
  %3994 = vmatpush1.msra.mxu0 0.0
  %3995 = vmatprep.subr.mxu0 0.0
  %3996 = vmatpush1.msra.mxu0 0.0
  %3997 = vmatprep.subr.mxu0 0.0
  %3998 = vmatpush1.msra.mxu0 0.0
  %3999 = vmatprep.subr.mxu0 0.0
  %4000 = vmatpush1.msra.mxu0 %v3968
  %4001 = vmatprep.subr.mxu0 0.0
  %4002 = vmatpush1.msra.mxu0 %v3967
  %4003 = vmatprep.subr.mxu0 0.0
  %4004 = vmatpush1.msra.mxu0 %v3966
  %4005 = vmatprep.subr.mxu0 0.0
  %4006 = vmatpush1.msra.mxu0 %v3965
  %4007 = vmatprep.subr.mxu0 0.0
  %4008 = vmatpush1.msra.mxu0 %v3964
  %4009 = vmatprep.subr.mxu0 0.0
  %4010 = vmatpush1.msra.mxu0 %v3963
  %4011 = vmatprep.subr.mxu0 0.0
  %4012 = vmatpush1.msra.mxu0 %v3962
  %4013 = vmatprep.subr.mxu0 0.0
  %4014 = vmatpush1.msra.mxu0 %v3961
  %4015 = vmatprep.subr.mxu0 0.0
  %4016 = vmatpush2.msra.mxu0 0.0
  %4017 = vmatprep.subr.mxu0 0.0
  %4018 = vmatpush2.msra.mxu0 0.0
  %4019 = vmatprep.subr.mxu0 0.0
  %4020 = vmatpush2.msra.mxu0 0.0
  %4021 = vmatprep.subr.mxu0 0.0
  %4022 = vmatpush2.msra.mxu0 0.0
  %4023 = vmatprep.subr.mxu0 0.0
  %4024 = vmatpush2.msra.mxu0 0.0
  %4025 = vmatprep.subr.mxu0 0.0
  %4026 = vmatpush2.msra.mxu0 0.0
  %4027 = vmatprep.subr.mxu0 0.0
  %4028 = vmatpush2.msra.mxu0 0.0
  %4029 = vmatprep.subr.mxu0 0.0
  %4030 = vmatpush2.msra.mxu0 0.0
  %4031 = vmatprep.subr.mxu0 0.0
  %4032 = vmatpush2.msra.mxu0 0.0
  %4033 = vmatprep.subr.mxu0 0.0
  %4034 = vmatpush2.msra.mxu0 0.0
  %4035 = vmatprep.subr.mxu0 0.0
  %4036 = vmatpush2.msra.mxu0 0.0
  %4037 = vmatprep.subr.mxu0 0.0
  %4038 = vmatpush2.msra.mxu0 0.0
  %4039 = vmatprep.subr.mxu0 0.0
  %4040 = vmatpush2.msra.mxu0 0.0
  %4041 = vmatprep.subr.mxu0 0.0
  %4042 = vmatpush2.msra.mxu0 0.0
  %4043 = vmatprep.subr.mxu0 0.0
  %4044 = vmatpush2.msra.mxu0 0.0
  %4045 = vmatprep.subr.mxu0 0.0
  %4046 = vmatpush2.msra.mxu0 0.0
  %4047 = vmatprep.mubr.f32.mxu0 0.0
  %4048 = vmatmul.mubr.f32.gmra.mxu0 %v3981
  %v4049 = vpop.f32.mrf.mxu0
  %v4050 = vadd.f32 0.0, %v4049
  %v4051 = vpop.f32.mrf.mxu0
  %4052 = vdwg.mxu0
  %v4053 = vld [vmem:[%s12] sm:$0xff]
  %v4054 = vld [vmem:[%s12 + $0x8] sm:$0xff]
  %v4055 = vld [vmem:[%s12 + $0x10] sm:$0xff]
  %v4056 = vld [vmem:[%s12 + $0x18] sm:$0xff]
  %v4057 = vld [vmem:[%s13] sm:$0x1]
  %v4059 = vlaneseq
  %v4060 = vshrl.u32 %v4059, 7
  %v4061 = vsub.s32 0, %v4060
  %v4062 = vrot.slane %v4057, %v4061
  %v4065 = vsel %vm288, %v4050, 0
  %4067 = vmatprep.subr.mxu0 0.0
  %4068 = vmatpush1.msra.mxu0 0.0
  %4069 = vmatprep.subr.mxu0 0.0
  %4070 = vmatpush1.msra.mxu0 0.0
  %4071 = vmatprep.subr.mxu0 0.0
  %4072 = vmatpush1.msra.mxu0 0.0
  %4073 = vmatprep.subr.mxu0 0.0
  %4074 = vmatpush1.msra.mxu0 0.0
  %4075 = vmatprep.subr.mxu0 0.0
  %4076 = vmatpush1.msra.mxu0 0.0
  %4077 = vmatprep.subr.mxu0 0.0
  %4078 = vmatpush1.msra.mxu0 0.0
  %4079 = vmatprep.subr.mxu0 0.0
  %4080 = vmatpush1.msra.mxu0 0.0
  %4081 = vmatprep.subr.mxu0 0.0
  %4082 = vmatpush1.msra.mxu0 0.0
  %4083 = vmatprep.subr.mxu0 0.0
  %4084 = vmatpush1.msra.mxu0 0.0
  %4085 = vmatprep.subr.mxu0 0.0
  %4086 = vmatpush1.msra.mxu0 0.0
  %4087 = vmatprep.subr.mxu0 0.0
  %4088 = vmatpush1.msra.mxu0 0.0
  %4089 = vmatprep.subr.mxu0 0.0
  %4090 = vmatpush1.msra.mxu0 0.0
  %4091 = vmatprep.subr.mxu0 0.0
  %4092 = vmatpush1.msra.mxu0 %v4056
  %4093 = vmatprep.subr.mxu0 0.0
  %4094 = vmatpush1.msra.mxu0 %v4055
  %4095 = vmatprep.subr.mxu0 0.0
  %4096 = vmatpush1.msra.mxu0 %v4054
  %4097 = vmatprep.subr.mxu0 0.0
  %4098 = vmatpush1.msra.mxu0 %v4053
  %4099 = vmatprep.subr.mxu0 0.0
  %4100 = vmatpush2.msra.mxu0 0.0
  %4101 = vmatprep.subr.mxu0 0.0
  %4102 = vmatpush2.msra.mxu0 0.0
  %4103 = vmatprep.subr.mxu0 0.0
  %4104 = vmatpush2.msra.mxu0 0.0
  %4105 = vmatprep.subr.mxu0 0.0
  %4106 = vmatpush2.msra.mxu0 0.0
  %4107 = vmatprep.subr.mxu0 0.0
  %4108 = vmatpush2.msra.mxu0 0.0
  %4109 = vmatprep.subr.mxu0 0.0
  %4110 = vmatpush2.msra.mxu0 0.0
  %4111 = vmatprep.subr.mxu0 0.0
  %4112 = vmatpush2.msra.mxu0 0.0
  %4113 = vmatprep.subr.mxu0 0.0
  %4114 = vmatpush2.msra.mxu0 0.0
  %4115 = vmatprep.subr.mxu0 0.0
  %4116 = vmatpush2.msra.mxu0 0.0
  %4117 = vmatprep.subr.mxu0 0.0
  %4118 = vmatpush2.msra.mxu0 0.0
  %4119 = vmatprep.subr.mxu0 0.0
  %4120 = vmatpush2.msra.mxu0 0.0
  %4121 = vmatprep.subr.mxu0 0.0
  %4122 = vmatpush2.msra.mxu0 0.0
  %4123 = vmatprep.subr.mxu0 0.0
  %4124 = vmatpush2.msra.mxu0 0.0
  %4125 = vmatprep.subr.mxu0 0.0
  %4126 = vmatpush2.msra.mxu0 0.0
  %4127 = vmatprep.subr.mxu0 0.0
  %4128 = vmatpush2.msra.mxu0 0.0
  %4129 = vmatprep.subr.mxu0 0.0
  %4130 = vmatpush2.msra.mxu0 0.0
  %4131 = vmatprep.mubr.f32.mxu0 0.0
  %4132 = vmatmul.mubr.f32.gmra.mxu0 %v4065
  %v4133 = vpop.f32.mrf.mxu0
  %v4134 = vadd.f32 %v4062, %v4133
  %v4135 = vpop.f32.mrf.mxu0
  %4136 = vdwg.mxu0
  %4137 = vst [vmem:[%s14] sm:$0xff] %v4134
  // Predicated region
  $region58: #{sasrec_forward.1} parent=0 // pred_check
    _
  $region59: #{sasrec_forward.1} parent=0 // pred_check_branch
    %4139 = sbr.rel (0) target = $region61
  $region60: #{sasrec_forward.1} parent=0 // pred_region
    _
  $region61: #{sasrec_forward.1} parent=0 // pred_fallthru
    _
  // Predicated region
  $region62: #{sasrec_forward.1} parent=0 // pred_check
    _
  $region63: #{sasrec_forward.1} parent=0 // pred_check_branch
    %4141 = sbr.rel (0) target = $region65
  $region64: #{sasrec_forward.1} parent=0 // pred_region
    _
  $region65: #{sasrec_forward.1} parent=0 // pred_fallthru
    _

</llo_original>
